<compile_context>
chip_gen: v6e
topology: v6e:2x2x1
jax: 0.10.0
libtpu: 0.0.40
codegen_flags: <defaults>
</compile_context>

<pallas_src>
import functools

import numpy as np
import jax
import jax.numpy as jnp
from jax.experimental import pallas as pl
from jax.experimental.pallas import tpu as pltpu

_EPS = 1e-5
_LANE = 128            # channel dims padded to multiples of the 128-lane vreg
_MAX_ROW_BLOCK = 512   # rows of the flattened activation matrix per grid step

_CPARAMS = pltpu.CompilerParams(
    dimension_semantics=("parallel",),
    vmem_limit_bytes=48 * 1024 * 1024,
)


def _round_up(x, m):
    return (x + m - 1) // m * m


def _pad_axis(x, axis, target, value=0.0):
    pad = [(0, 0)] * x.ndim
    pad[axis] = (0, target - x.shape[axis])
    return jnp.pad(x, pad, constant_values=value)


def _bn_affine(st, count, gamma, beta):
    """Turn per-channel (sum, sumsq) into the BN affine y*a + b (training mode)."""
    mean = st[0] / count
    var = jnp.maximum(st[1] / count - mean * mean, 0.0)
    a = gamma * jax.lax.rsqrt(var + _EPS)
    b = beta - mean * a
    return a.reshape(1, -1), b.reshape(1, -1)


# ---------------------------------------------------------------------------
# Kernel 1: 1x1 conv (row-tiled matmul) + per-block BN statistics.  Optionally
# applies the previous stage's BatchNorm+ReLU (as a per-channel affine) first.
# ---------------------------------------------------------------------------
def _conv1x1_stats_kernel(*refs, pre_act, mm_dtype, n_valid, block_rows,
                          padded_rows):
    if pre_act:
        x_ref, a_ref, b_ref, w_ref, y_ref, st_ref = refs
    else:
        x_ref, w_ref, y_ref, st_ref = refs

    x = x_ref[...]
    if pre_act:
        x = jnp.maximum(x * a_ref[...] + b_ref[...], 0.0)

    y = jnp.dot(x.astype(mm_dtype), w_ref[...],
                preferred_element_type=jnp.float32)
    y_ref[...] = y

    if padded_rows != n_valid:  # keep zero-padded rows out of the statistics
        row0 = pl.program_id(0) * block_rows
        ridx = row0 + jax.lax.broadcasted_iota(jnp.int32, y.shape, 0)
        y = jnp.where(ridx < n_valid, y, 0.0)

    s = jnp.sum(y, axis=0, keepdims=True)
    q = jnp.sum(y * y, axis=0, keepdims=True)
    st_ref[...] = jnp.concatenate([s, q], axis=0)[None]


def _conv1x1_stats(x2d, w, a=None, b=None, *, mm_dtype):
    rows, cin = x2d.shape
    cout = w.shape[1]
    block_rows = min(_MAX_ROW_BLOCK, _round_up(rows, 8))
    rows_p = _round_up(rows, block_rows)
    if rows_p != rows:
        x2d = jnp.pad(x2d, ((0, rows_p - rows), (0, 0)))
    nblocks = rows_p // block_rows

    pre_act = a is not None
    kernel = functools.partial(
        _conv1x1_stats_kernel, pre_act=pre_act, mm_dtype=mm_dtype,
        n_valid=rows, block_rows=block_rows, padded_rows=rows_p)

    row_in = pl.BlockSpec((block_rows, cin), lambda i: (i, 0))
    vec = pl.BlockSpec((1, cin), lambda i: (0, 0))
    w_spec = pl.BlockSpec(w.shape, lambda i: (0, 0))
    in_specs = [row_in] + ([vec, vec] if pre_act else []) + [w_spec]
    args = [x2d] + ([a, b] if pre_act else []) + [w]

    y, st = pl.pallas_call(
        kernel,
        grid=(nblocks,),
        in_specs=in_specs,
        out_specs=(pl.BlockSpec((block_rows, cout), lambda i: (i, 0)),
                   pl.BlockSpec((1, 2, cout), lambda i: (i, 0, 0))),
        out_shape=(jax.ShapeDtypeStruct((rows_p, cout), jnp.float32),
                   jax.ShapeDtypeStruct((nblocks, 2, cout), jnp.float32)),
        compiler_params=_CPARAMS,
    )(*args)
    return y[:rows], jnp.sum(st, axis=0)


# ---------------------------------------------------------------------------
# Kernel 2: fused BN1+ReLU, 3x3 conv (padding 1) via a zero-haloed VMEM scratch
# and 9 MXU taps, plus per-image BN2 statistics.  The conv is evaluated at
# stride 1; for stride>1 the wrapper sub-samples the output and the statistics
# are masked in-kernel so they only see the kept positions.
# ---------------------------------------------------------------------------
def _conv3x3_stats_kernel(y1_ref, a_ref, b_ref, w2_ref, y2_ref, st_ref,
                          pad_ref, *, stride, mm_dtype):
    _, H, W, C = y1_ref.shape

    t = jnp.maximum(y1_ref[0] * a_ref[...] + b_ref[...], 0.0).astype(mm_dtype)
    # zero halo + interior write (no concatenate-based padding)
    pad_ref[0:1, :, :] = jnp.zeros((1, W + 2, C), mm_dtype)
    pad_ref[H + 1:H + 2, :, :] = jnp.zeros((1, W + 2, C), mm_dtype)
    pad_ref[:, 0:1, :] = jnp.zeros((H + 2, 1, C), mm_dtype)
    pad_ref[:, W + 1:W + 2, :] = jnp.zeros((H + 2, 1, C), mm_dtype)
    pad_ref[1:H + 1, 1:W + 1, :] = t

    acc = jnp.zeros((H * W, C), jnp.float32)
    for kh in range(3):
        for kw in range(3):
            tap = kh * 3 + kw
            patch = pad_ref[kh:kh + H, kw:kw + W, :].reshape(H * W, C)
            acc = acc + jnp.dot(patch, w2_ref[tap * C:(tap + 1) * C, :],
                                preferred_element_type=jnp.float32)

    y2_ref[...] = acc.reshape(1, H, W, C)

    if stride > 1:
        r = jax.lax.broadcasted_iota(jnp.int32, acc.shape, 0)
        keep = ((r // W) % stride == 0) & ((r % W) % stride == 0)
        acc = jnp.where(keep, acc, 0.0)
    s = jnp.sum(acc, axis=0, keepdims=True)
    q = jnp.sum(acc * acc, axis=0, keepdims=True)
    st_ref[...] = jnp.concatenate([s, q], axis=0)[None]


def _conv3x3_stats(y1_nhwc, a1, b1, w2_flat, *, stride, mm_dtype):
    N, H, W, C = y1_nhwc.shape
    kernel = functools.partial(_conv3x3_stats_kernel, stride=stride,
                               mm_dtype=mm_dtype)
    img = pl.BlockSpec((1, H, W, C), lambda n: (n, 0, 0, 0))
    vec = pl.BlockSpec((1, C), lambda n: (0, 0))
    wsp = pl.BlockSpec((9 * C, C), lambda n: (0, 0))
    # TODO(synk): very large H*W*C images would additionally need spatial tiling
    # of this kernel (currently one image per grid step).
    y2, st = pl.pallas_call(
        kernel,
        grid=(N,),
        in_specs=[img, vec, vec, wsp],
        out_specs=(img, pl.BlockSpec((1, 2, C), lambda n: (n, 0, 0))),
        out_shape=(jax.ShapeDtypeStruct((N, H, W, C), jnp.float32),
                   jax.ShapeDtypeStruct((N, 2, C), jnp.float32)),
        scratch_shapes=[pltpu.VMEM((H + 2, W + 2, C), mm_dtype)],
        compiler_params=_CPARAMS,
    )(y1_nhwc, a1, b1, w2_flat)
    return y2, jnp.sum(st, axis=0)


# ---------------------------------------------------------------------------
# Kernel 3: finalize — BN3 affine, residual (optionally BN-affined downsample),
# add, ReLU.  Row-tiled, lane-dense stores.
# ---------------------------------------------------------------------------
def _finalize_kernel(*refs, res_affine):
    if res_affine:
        y3_ref, a3_ref, b3_ref, r_ref, ad_ref, bd_ref, o_ref = refs
    else:
        y3_ref, a3_ref, b3_ref, r_ref, o_ref = refs
    out = y3_ref[...] * a3_ref[...] + b3_ref[...]
    res = r_ref[...]
    if res_affine:
        res = res * ad_ref[...] + bd_ref[...]
    o_ref[...] = jnp.maximum(out + res, 0.0)


def _finalize(y3, a3, b3, res, ad=None, bd=None):
    rows, c = y3.shape
    block_rows = min(_MAX_ROW_BLOCK, _round_up(rows, 8))
    rows_p = _round_up(rows, block_rows)
    if rows_p != rows:
        pad = ((0, rows_p - rows), (0, 0))
        y3, res = jnp.pad(y3, pad), jnp.pad(res, pad)
    nblocks = rows_p // block_rows

    res_affine = ad is not None
    kernel = functools.partial(_finalize_kernel, res_affine=res_affine)
    row = pl.BlockSpec((block_rows, c), lambda i: (i, 0))
    vec = pl.BlockSpec((1, c), lambda i: (0, 0))
    in_specs = [row, vec, vec, row] + ([vec, vec] if res_affine else [])
    args = [y3, a3, b3, res] + ([ad, bd] if res_affine else [])
    out = pl.pallas_call(
        kernel,
        grid=(nblocks,),
        in_specs=in_specs,
        out_specs=row,
        out_shape=jax.ShapeDtypeStruct((rows_p, c), jnp.float32),
        compiler_params=_CPARAMS,
    )(*args)
    return out[:rows]


# ---------------------------------------------------------------------------
# Forward wrapper (PyTorch-like: NCHW in / NCHW out).
# ---------------------------------------------------------------------------
def bottleneck_forward(x_nchw, params, *, stride=1, downsampling=False,
                       mm_dtype=jnp.float32):
    x = jnp.transpose(x_nchw, (0, 2, 3, 1)).astype(jnp.float32)   # NHWC
    N, H, W, cin = x.shape
    p = params["w1"].shape[1]
    cout = params["w3"].shape[1]
    if not downsampling:
        assert stride == 1 and cin == cout, (
            "identity residual requires stride == 1 and in_places == places*expansion")
    ho = (H + 2 - 3) // stride + 1
    wo = (W + 2 - 3) // stride + 1

    cin_p, p_p, cout_p = (_round_up(c, _LANE) for c in (cin, p, cout))

    # pad + pre-cast parameters once
    w1 = _pad_axis(_pad_axis(params["w1"], 0, cin_p), 1, p_p).astype(mm_dtype)
    w2 = _pad_axis(_pad_axis(params["w2"], 2, p_p), 3, p_p)
    w2 = w2.reshape(9 * p_p, p_p).astype(mm_dtype)
    w3 = _pad_axis(_pad_axis(params["w3"], 0, p_p), 1, cout_p).astype(mm_dtype)
    g1 = _pad_axis(params["g1"], 0, p_p, 1.0)
    b1 = _pad_axis(params["b1"], 0, p_p)
    g2 = _pad_axis(params["g2"], 0, p_p, 1.0)
    b2 = _pad_axis(params["b2"], 0, p_p)
    g3 = _pad_axis(params["g3"], 0, cout_p, 1.0)
    b3 = _pad_axis(params["b3"], 0, cout_p)

    # stage 1: 1x1 conv + BN1 stats
    rows1 = N * H * W
    x2d = _pad_axis(x.reshape(rows1, cin), 1, cin_p)
    y1_raw, st1 = _conv1x1_stats(x2d, w1, mm_dtype=mm_dtype)
    a1, b1a = _bn_affine(st1, rows1, g1, b1)

    # stage 2: fused BN1+ReLU, 3x3 conv, BN2 stats
    y2_full, st2 = _conv3x3_stats(y1_raw.reshape(N, H, W, p_p), a1, b1a, w2,
                                  stride=stride, mm_dtype=mm_dtype)
    # TODO(synk): for stride>1 the 3x3 conv computes all stride-1 positions and
    # the wrapper sub-samples; a strided in-kernel gather would save ~stride^2 x
    # of the conv2 FLOPs on the downsampling blocks.
    y2 = y2_full[:, ::stride, ::stride, :] if stride > 1 else y2_full
    rows_o = N * ho * wo
    a2, b2a = _bn_affine(st2, rows_o, g2, b2)

    # stage 3: fused BN2+ReLU, 1x1 conv -> expansion, BN3 stats
    y3_raw, st3 = _conv1x1_stats(y2.reshape(rows_o, p_p), w3, a2, b2a,
                                 mm_dtype=mm_dtype)
    a3, b3a = _bn_affine(st3, rows_o, g3, b3)

    # residual branch
    if downsampling:
        wd = _pad_axis(_pad_axis(params["wd"], 0, cin_p), 1, cout_p).astype(mm_dtype)
        gd = _pad_axis(params["gd"], 0, cout_p, 1.0)
        bd = _pad_axis(params["bd"], 0, cout_p)
        xs = x[:, ::stride, ::stride, :].reshape(rows_o, cin)
        d_raw, std = _conv1x1_stats(_pad_axis(xs, 1, cin_p), wd,
                                    mm_dtype=mm_dtype)
        ad, bda = _bn_affine(std, rows_o, gd, bd)
        out2d = _finalize(y3_raw, a3, b3a, d_raw, ad, bda)
    else:
        out2d = _finalize(y3_raw, a3, b3a, x2d)       # identity residual

    out = out2d[:, :cout].reshape(N, ho, wo, cout)
    return jnp.transpose(out, (0, 3, 1, 2))


# ---------------------------------------------------------------------------
# Parameters + pure-JAX reference (same math, XLA convs) for validation.
# ---------------------------------------------------------------------------
def init_params(key, in_places, places, expansion=4):
    cout = places * expansion
    ks = jax.random.split(key, 4)

    def nrm(k, shape, scale=0.1):
        return scale * jax.random.normal(k, shape, jnp.float32)

    return dict(
        w1=nrm(ks[0], (in_places, places)),
        g1=jnp.ones((places,), jnp.float32), b1=jnp.zeros((places,), jnp.float32),
        w2=nrm(ks[1], (3, 3, places, places)),
        g2=jnp.ones((places,), jnp.float32), b2=jnp.zeros((places,), jnp.float32),
        w3=nrm(ks[2], (places, cout)),
        g3=jnp.ones((cout,), jnp.float32), b3=jnp.zeros((cout,), jnp.float32),
        wd=nrm(ks[3], (in_places, cout)),
        gd=jnp.ones((cout,), jnp.float32), bd=jnp.zeros((cout,), jnp.float32),
    )


def reference_forward(x_nchw, params, *, stride=1, downsampling=False):
    x = jnp.transpose(x_nchw, (0, 2, 3, 1)).astype(jnp.float32)

    def conv(inp, w, s, pad):
        return jax.lax.conv_general_dilated(
            inp, w, window_strides=(s, s), padding=[(pad, pad), (pad, pad)],
            dimension_numbers=("NHWC", "HWIO", "NHWC"))

    def bn(y, g, b):
        mean = jnp.mean(y, axis=(0, 1, 2), keepdims=True)
        var = jnp.mean(jnp.square(y - mean), axis=(0, 1, 2), keepdims=True)
        return ((y - mean) * jax.lax.rsqrt(var + _EPS)
                * g.reshape(1, 1, 1, -1) + b.reshape(1, 1, 1, -1))

    y = jax.nn.relu(bn(conv(x, params["w1"][None, None], 1, 0),
                       params["g1"], params["b1"]))
    y = jax.nn.relu(bn(conv(y, params["w2"], stride, 1),
                       params["g2"], params["b2"]))
    y = bn(conv(y, params["w3"][None, None], 1, 0), params["g3"], params["b3"])
    if downsampling:
        r = bn(conv(x, params["wd"][None, None], stride, 0),
               params["gd"], params["bd"])
    else:
        r = x
    out = jax.nn.relu(y + r)
    return jnp.transpose(out, (0, 3, 1, 2))


if __name__ == "__main__":
    key = jax.random.PRNGKey(0)
    N, H, W, expansion = 2, 8, 8, 4

    configs = [
        # (in_places, places, stride, downsampling, mm_dtype, rtol, atol)
        (16, 8, 1, True,  jnp.float32,  2e-4, 2e-4),  # main config (as before)
        (32, 8, 1, False, jnp.float32,  2e-4, 2e-4),  # identity residual path
        (16, 8, 2, True,  jnp.float32,  2e-4, 2e-4),  # strided + downsample
        (16, 8, 1, True,  jnp.bfloat16, 1e-1, 1e-1),  # bf16 MXU-input fast path
    ]

    for idx, (in_places, places, stride, downsampling,
              mm_dtype, rtol, atol) in enumerate(configs):
        k = jax.random.fold_in(key, idx)
        kx, kp = jax.random.split(k)
        x = jax.random.normal(kx, (N, in_places, H, W), jnp.float32)  # NCHW
        params = init_params(kp, in_places, places, expansion)

        fwd = jax.jit(functools.partial(
            bottleneck_forward, stride=stride, downsampling=downsampling,
            mm_dtype=mm_dtype))
        out = jax.block_until_ready(fwd(x, params))

        cout = places * expansion
        ho = (H + 2 - 3) // stride + 1
        assert out.shape == (N, cout, ho, ho)

        ref = reference_forward(x, params, stride=stride,
                                downsampling=downsampling)
        np.testing.assert_allclose(np.asarray(out), np.asarray(ref),
                                   rtol=rtol, atol=atol)

    print("KERNEL_OK")
</pallas_src>

<mosaic_0001>
module attributes {stable_mosaic.version = 11 : i64} {
  func.func @_conv1x1_stats_kernel(%arg0: i32, %arg1: memref<128x128xf32, #tpu.memory_space<vmem>>, %arg2: memref<128x128xf32, #tpu.memory_space<vmem>>, %arg3: memref<128x128xf32, #tpu.memory_space<vmem>>, %arg4: memref<1x2x128xf32, #tpu.memory_space<vmem>>) attributes {dimension_semantics = [#tpu.dimension_semantics<parallel>], iteration_bounds = array<i64: 1>, scalar_prefetch = 0 : i64, scratch_operands = 0 : i64, tpu.core_type = #tpu.core_type<tc>, window_params = [{transform_indices = @transform_0, window_bounds = array<i64: 128, 128>}, {pipeline_mode = #tpu.pipeline_mode<synchronous>, transform_indices = @transform_1, window_bounds = array<i64: 128, 128>}, {transform_indices = @transform_2, window_bounds = array<i64: 128, 128>}, {transform_indices = @transform_3, window_bounds = array<i64: 1, 2, 128>}]} {
    %c0 = arith.constant 0 : index
    %c0_0 = arith.constant 0 : index
    %0 = vector.load %arg1[%c0, %c0_0] : memref<128x128xf32, #tpu.memory_space<vmem>>, vector<128x128xf32>
    %c0_1 = arith.constant 0 : index
    %c0_2 = arith.constant 0 : index
    %1 = vector.load %arg2[%c0_1, %c0_2] : memref<128x128xf32, #tpu.memory_space<vmem>>, vector<128x128xf32>
    %cst = arith.constant dense<0.000000e+00> : vector<128x128xf32>
    %2 = tpu.matmul %0, %1, %cst {dimension_numbers = #tpu.dot_dimension_numbers<[1], [0], [0], [1], [0, 0, 1, 1], [], []>} : vector<128x128xf32>, vector<128x128xf32>, vector<128x128xf32> -> vector<128x128xf32>
    %c0_3 = arith.constant 0 : index
    %c0_4 = arith.constant 0 : index
    %3 = vector.load %arg3[%c0_3, %c0_4] : memref<128x128xf32, #tpu.memory_space<vmem>>, vector<128x128xf32>
    tpu.vector_store %arg3[%c0_3, %c0_4], %2 {strides = array<i32>} : memref<128x128xf32, #tpu.memory_space<vmem>>, vector<128x128xf32>,
    %cst_5 = arith.constant dense<0.000000e+00> : vector<128xf32>
    %4 = vector.multi_reduction <add>, %2, %cst_5 [0] : vector<128x128xf32> to vector<128xf32>
    %5 = vector.shape_cast %4 : vector<128xf32> to vector<1x128xf32>
    %6 = arith.mulf %2, %2 : vector<128x128xf32>
    %cst_6 = arith.constant dense<0.000000e+00> : vector<128xf32>
    %7 = vector.multi_reduction <add>, %6, %cst_6 [0] : vector<128x128xf32> to vector<128xf32>
    %8 = vector.shape_cast %7 : vector<128xf32> to vector<1x128xf32>
    %9 = tpu.concatenate %5, %8 in 0 : vector<1x128xf32>, vector<1x128xf32> -> vector<2x128xf32>
    %10 = vector.shape_cast %9 : vector<2x128xf32> to vector<1x2x128xf32>
    %c0_7 = arith.constant 0 : index
    %c0_8 = arith.constant 0 : index
    %c0_9 = arith.constant 0 : index
    %11 = vector.load %arg4[%c0_7, %c0_8, %c0_9] : memref<1x2x128xf32, #tpu.memory_space<vmem>>, vector<1x2x128xf32>
    tpu.vector_store %arg4[%c0_7, %c0_8, %c0_9], %10 {strides = array<i32>} : memref<1x2x128xf32, #tpu.memory_space<vmem>>, vector<1x2x128xf32>,
    return
  }
  func.func @transform_0(%arg0: i32) -> (i32, i32) {
    %c0_i32 = arith.constant 0 : i32
    %c0_i32_0 = arith.constant 0 : i32
    return %arg0, %c0_i32 : i32, i32
  }
  func.func @transform_1(%arg0: i32) -> (i32, i32) {
    %c0_i32 = arith.constant 0 : i32
    %c0_i32_0 = arith.constant 0 : i32
    %c0_i32_1 = arith.constant 0 : i32
    return %c0_i32, %c0_i32_0 : i32, i32
  }
  func.func @transform_2(%arg0: i32) -> (i32, i32) {
    %c0_i32 = arith.constant 0 : i32
    %c0_i32_0 = arith.constant 0 : i32
    return %arg0, %c0_i32 : i32, i32
  }
  func.func @transform_3(%arg0: i32) -> (i32, i32, i32) {
    %c0_i32 = arith.constant 0 : i32
    %c0_i32_0 = arith.constant 0 : i32
    %c0_i32_1 = arith.constant 0 : i32
    return %arg0, %c0_i32, %c0_i32_0 : i32, i32, i32
  }
}

module attributes {stable_mosaic.version = 11 : i64} {
  func.func @_conv1x1_stats_kernel(%arg0: i32, %arg1: memref<128x128xf32, #tpu.memory_space<vmem>>, %arg2: memref<1x128xf32, #tpu.memory_space<vmem>>, %arg3: memref<1x128xf32, #tpu.memory_space<vmem>>, %arg4: memref<128x128xf32, #tpu.memory_space<vmem>>, %arg5: memref<128x128xf32, #tpu.memory_space<vmem>>, %arg6: memref<1x2x128xf32, #tpu.memory_space<vmem>>) attributes {dimension_semantics = [#tpu.dimension_semantics<parallel>], iteration_bounds = array<i64: 1>, scalar_prefetch = 0 : i64, scratch_operands = 0 : i64, tpu.core_type = #tpu.core_type<tc>, window_params = [{transform_indices = @transform_0, window_bounds = array<i64: 128, 128>}, {pipeline_mode = #tpu.pipeline_mode<synchronous>, transform_indices = @transform_1, window_bounds = array<i64: 1, 128>}, {pipeline_mode = #tpu.pipeline_mode<synchronous>, transform_indices = @transform_2, window_bounds = array<i64: 1, 128>}, {pipeline_mode = #tpu.pipeline_mode<synchronous>, transform_indices = @transform_3, window_bounds = array<i64: 128, 128>}, {transform_indices = @transform_4, window_bounds = array<i64: 128, 128>}, {transform_indices = @transform_5, window_bounds = array<i64: 1, 2, 128>}]} {
    %c0 = arith.constant 0 : index
    %c0_0 = arith.constant 0 : index
    %0 = vector.load %arg1[%c0, %c0_0] : memref<128x128xf32, #tpu.memory_space<vmem>>, vector<128x128xf32>
    %c0_1 = arith.constant 0 : index
    %c0_2 = arith.constant 0 : index
    %1 = vector.load %arg2[%c0_1, %c0_2] : memref<1x128xf32, #tpu.memory_space<vmem>>, vector<1x128xf32>
    %2 = vector.broadcast %1 : vector<1x128xf32> to vector<128x128xf32>
    %3 = arith.mulf %0, %2 : vector<128x128xf32>
    %c0_3 = arith.constant 0 : index
    %c0_4 = arith.constant 0 : index
    %4 = vector.load %arg3[%c0_3, %c0_4] : memref<1x128xf32, #tpu.memory_space<vmem>>, vector<1x128xf32>
    %5 = vector.broadcast %4 : vector<1x128xf32> to vector<128x128xf32>
    %6 = arith.addf %3, %5 : vector<128x128xf32>
    %cst = arith.constant 0.000000e+00 : f32
    %7 = vector.broadcast %cst : f32 to vector<128x128xf32>
    %8 = arith.maximumf %6, %7 : vector<128x128xf32>
    %c0_5 = arith.constant 0 : index
    %c0_6 = arith.constant 0 : index
    %9 = vector.load %arg4[%c0_5, %c0_6] : memref<128x128xf32, #tpu.memory_space<vmem>>, vector<128x128xf32>
    %cst_7 = arith.constant dense<0.000000e+00> : vector<128x128xf32>
    %10 = tpu.matmul %8, %9, %cst_7 {dimension_numbers = #tpu.dot_dimension_numbers<[1], [0], [0], [1], [0, 0, 1, 1], [], []>} : vector<128x128xf32>, vector<128x128xf32>, vector<128x128xf32> -> vector<128x128xf32>
    %c0_8 = arith.constant 0 : index
    %c0_9 = arith.constant 0 : index
    %11 = vector.load %arg5[%c0_8, %c0_9] : memref<128x128xf32, #tpu.memory_space<vmem>>, vector<128x128xf32>
    tpu.vector_store %arg5[%c0_8, %c0_9], %10 {strides = array<i32>} : memref<128x128xf32, #tpu.memory_space<vmem>>, vector<128x128xf32>,
    %cst_10 = arith.constant dense<0.000000e+00> : vector<128xf32>
    %12 = vector.multi_reduction <add>, %10, %cst_10 [0] : vector<128x128xf32> to vector<128xf32>
    %13 = vector.shape_cast %12 : vector<128xf32> to vector<1x128xf32>
    %14 = arith.mulf %10, %10 : vector<128x128xf32>
    %cst_11 = arith.constant dense<0.000000e+00> : vector<128xf32>
    %15 = vector.multi_reduction <add>, %14, %cst_11 [0] : vector<128x128xf32> to vector<128xf32>
    %16 = vector.shape_cast %15 : vector<128xf32> to vector<1x128xf32>
    %17 = tpu.concatenate %13, %16 in 0 : vector<1x128xf32>, vector<1x128xf32> -> vector<2x128xf32>
    %18 = vector.shape_cast %17 : vector<2x128xf32> to vector<1x2x128xf32>
    %c0_12 = arith.constant 0 : index
    %c0_13 = arith.constant 0 : index
    %c0_14 = arith.constant 0 : index
    %19 = vector.load %arg6[%c0_12, %c0_13, %c0_14] : memref<1x2x128xf32, #tpu.memory_space<vmem>>, vector<1x2x128xf32>
    tpu.vector_store %arg6[%c0_12, %c0_13, %c0_14], %18 {strides = array<i32>} : memref<1x2x128xf32, #tpu.memory_space<vmem>>, vector<1x2x128xf32>,
    return
  }
  func.func @transform_0(%arg0: i32) -> (i32, i32) {
    %c0_i32 = arith.constant 0 : i32
    %c0_i32_0 = arith.constant 0 : i32
    return %arg0, %c0_i32 : i32, i32
  }
  func.func @transform_1(%arg0: i32) -> (i32, i32) {
    %c0_i32 = arith.constant 0 : i32
    %c0_i32_0 = arith.constant 0 : i32
    %c0_i32_1 = arith.constant 0 : i32
    return %c0_i32, %c0_i32_0 : i32, i32
  }
  func.func @transform_2(%arg0: i32) -> (i32, i32) {
    %c0_i32 = arith.constant 0 : i32
    %c0_i32_0 = arith.constant 0 : i32
    %c0_i32_1 = arith.constant 0 : i32
    return %c0_i32, %c0_i32_0 : i32, i32
  }
  func.func @transform_3(%arg0: i32) -> (i32, i32) {
    %c0_i32 = arith.constant 0 : i32
    %c0_i32_0 = arith.constant 0 : i32
    %c0_i32_1 = arith.constant 0 : i32
    return %c0_i32, %c0_i32_0 : i32, i32
  }
  func.func @transform_4(%arg0: i32) -> (i32, i32) {
    %c0_i32 = arith.constant 0 : i32
    %c0_i32_0 = arith.constant 0 : i32
    return %arg0, %c0_i32 : i32, i32
  }
  func.func @transform_5(%arg0: i32) -> (i32, i32, i32) {
    %c0_i32 = arith.constant 0 : i32
    %c0_i32_0 = arith.constant 0 : i32
    %c0_i32_1 = arith.constant 0 : i32
    return %arg0, %c0_i32, %c0_i32_0 : i32, i32, i32
  }
}

module attributes {stable_mosaic.version = 11 : i64} {
  func.func @_conv3x3_stats_kernel(%arg0: i32, %arg1: memref<1x8x8x128xf32, #tpu.memory_space<vmem>>, %arg2: memref<1x128xf32, #tpu.memory_space<vmem>>, %arg3: memref<1x128xf32, #tpu.memory_space<vmem>>, %arg4: memref<1152x128xf32, #tpu.memory_space<vmem>>, %arg5: memref<1x8x8x128xf32, #tpu.memory_space<vmem>>, %arg6: memref<1x2x128xf32, #tpu.memory_space<vmem>>, %arg7: memref<10x10x128xf32, #tpu.memory_space<vmem>>) attributes {dimension_semantics = [#tpu.dimension_semantics<parallel>], iteration_bounds = array<i64: 2>, scalar_prefetch = 0 : i64, scratch_operands = 1 : i64, tpu.core_type = #tpu.core_type<tc>, window_params = [{transform_indices = @transform_0, window_bounds = array<i64: 1, 8, 8, 128>}, {pipeline_mode = #tpu.pipeline_mode<synchronous>, transform_indices = @transform_1, window_bounds = array<i64: 1, 128>}, {pipeline_mode = #tpu.pipeline_mode<synchronous>, transform_indices = @transform_2, window_bounds = array<i64: 1, 128>}, {pipeline_mode = #tpu.pipeline_mode<synchronous>, transform_indices = @transform_3, window_bounds = array<i64: 1152, 128>}, {transform_indices = @transform_4, window_bounds = array<i64: 1, 8, 8, 128>}, {transform_indices = @transform_5, window_bounds = array<i64: 1, 2, 128>}]} {
    %c0 = arith.constant 0 : index
    %c0_0 = arith.constant 0 : index
    %c0_1 = arith.constant 0 : index
    %c0_2 = arith.constant 0 : index
    %0 = vector.load %arg1[%c0, %c0_0, %c0_1, %c0_2] : memref<1x8x8x128xf32, #tpu.memory_space<vmem>>, vector<1x8x8x128xf32>
    %1 = vector.shape_cast %0 : vector<1x8x8x128xf32> to vector<8x8x128xf32>
    %c0_3 = arith.constant 0 : index
    %c0_4 = arith.constant 0 : index
    %2 = vector.load %arg2[%c0_3, %c0_4] : memref<1x128xf32, #tpu.memory_space<vmem>>, vector<1x128xf32>
    %3 = vector.shape_cast %2 : vector<1x128xf32> to vector<1x1x128xf32>
    %4 = vector.broadcast %3 : vector<1x1x128xf32> to vector<8x8x128xf32>
    %5 = arith.mulf %1, %4 : vector<8x8x128xf32>
    %c0_5 = arith.constant 0 : index
    %c0_6 = arith.constant 0 : index
    %6 = vector.load %arg3[%c0_5, %c0_6] : memref<1x128xf32, #tpu.memory_space<vmem>>, vector<1x128xf32>
    %7 = vector.shape_cast %6 : vector<1x128xf32> to vector<1x1x128xf32>
    %8 = vector.broadcast %7 : vector<1x1x128xf32> to vector<8x8x128xf32>
    %9 = arith.addf %5, %8 : vector<8x8x128xf32>
    %cst = arith.constant 0.000000e+00 : f32
    %10 = vector.broadcast %cst : f32 to vector<8x8x128xf32>
    %11 = arith.maximumf %9, %10 : vector<8x8x128xf32>
    %cst_7 = arith.constant 0.000000e+00 : f32
    %12 = vector.broadcast %cst_7 : f32 to vector<1x10x128xf32>
    %c0_8 = arith.constant 0 : index
    %c0_9 = arith.constant 0 : index
    %c0_10 = arith.constant 0 : index
    %13 = vector.load %arg7[%c0_8, %c0_9, %c0_10] : memref<10x10x128xf32, #tpu.memory_space<vmem>>, vector<1x10x128xf32>
    tpu.vector_store %arg7[%c0_8, %c0_9, %c0_10], %12 {strides = array<i32>} : memref<10x10x128xf32, #tpu.memory_space<vmem>>, vector<1x10x128xf32>,
    %cst_11 = arith.constant 0.000000e+00 : f32
    %14 = vector.broadcast %cst_11 : f32 to vector<1x10x128xf32>
    %c9 = arith.constant 9 : index
    %c0_12 = arith.constant 0 : index
    %c0_13 = arith.constant 0 : index
    %15 = vector.load %arg7[%c9, %c0_12, %c0_13] : memref<10x10x128xf32, #tpu.memory_space<vmem>>, vector<1x10x128xf32>
    tpu.vector_store %arg7[%c9, %c0_12, %c0_13], %14 {strides = array<i32>} : memref<10x10x128xf32, #tpu.memory_space<vmem>>, vector<1x10x128xf32>,
    %cst_14 = arith.constant 0.000000e+00 : f32
    %16 = vector.broadcast %cst_14 : f32 to vector<10x1x128xf32>
    %c0_15 = arith.constant 0 : index
    %c0_16 = arith.constant 0 : index
    %c0_17 = arith.constant 0 : index
    %17 = vector.load %arg7[%c0_15, %c0_16, %c0_17] : memref<10x10x128xf32, #tpu.memory_space<vmem>>, vector<10x1x128xf32>
    tpu.vector_store %arg7[%c0_15, %c0_16, %c0_17], %16 {strides = array<i32>} : memref<10x10x128xf32, #tpu.memory_space<vmem>>, vector<10x1x128xf32>,
    %cst_18 = arith.constant 0.000000e+00 : f32
    %18 = vector.broadcast %cst_18 : f32 to vector<10x1x128xf32>
    %c0_19 = arith.constant 0 : index
    %c9_20 = arith.constant 9 : index
    %c0_21 = arith.constant 0 : index
    %19 = vector.load %arg7[%c0_19, %c9_20, %c0_21] : memref<10x10x128xf32, #tpu.memory_space<vmem>>, vector<10x1x128xf32>
    tpu.vector_store %arg7[%c0_19, %c9_20, %c0_21], %18 {strides = array<i32>} : memref<10x10x128xf32, #tpu.memory_space<vmem>>, vector<10x1x128xf32>,
    %c1 = arith.constant 1 : index
    %c1_22 = arith.constant 1 : index
    %c0_23 = arith.constant 0 : index
    %20 = vector.load %arg7[%c1, %c1_22, %c0_23] : memref<10x10x128xf32, #tpu.memory_space<vmem>>, vector<8x8x128xf32>
    tpu.vector_store %arg7[%c1, %c1_22, %c0_23], %11 {strides = array<i32>} : memref<10x10x128xf32, #tpu.memory_space<vmem>>, vector<8x8x128xf32>,
    %cst_24 = arith.constant 0.000000e+00 : f32
    %21 = vector.broadcast %cst_24 : f32 to vector<64x128xf32>
    %c0_25 = arith.constant 0 : index
    %c0_26 = arith.constant 0 : index
    %c0_27 = arith.constant 0 : index
    %22 = vector.load %arg7[%c0_25, %c0_26, %c0_27] : memref<10x10x128xf32, #tpu.memory_space<vmem>>, vector<8x8x128xf32>
    %23 = vector.shape_cast %22 : vector<8x8x128xf32> to vector<64x128xf32>
    %c0_28 = arith.constant 0 : index
    %c0_29 = arith.constant 0 : index
    %24 = vector.load %arg4[%c0_28, %c0_29] : memref<1152x128xf32, #tpu.memory_space<vmem>>, vector<128x128xf32>
    %cst_30 = arith.constant dense<0.000000e+00> : vector<64x128xf32>
    %25 = tpu.matmul %23, %24, %cst_30 {dimension_numbers = #tpu.dot_dimension_numbers<[1], [0], [0], [1], [0, 0, 1, 1], [], []>} : vector<64x128xf32>, vector<128x128xf32>, vector<64x128xf32> -> vector<64x128xf32>
    %26 = arith.addf %21, %25 : vector<64x128xf32>
    %c0_31 = arith.constant 0 : index
    %c1_32 = arith.constant 1 : index
    %c0_33 = arith.constant 0 : index
    %27 = vector.load %arg7[%c0_31, %c1_32, %c0_33] : memref<10x10x128xf32, #tpu.memory_space<vmem>>, vector<8x8x128xf32>
    %28 = vector.shape_cast %27 : vector<8x8x128xf32> to vector<64x128xf32>
    %c128 = arith.constant 128 : index
    %c0_34 = arith.constant 0 : index
    %29 = vector.load %arg4[%c128, %c0_34] : memref<1152x128xf32, #tpu.memory_space<vmem>>, vector<128x128xf32>
    %cst_35 = arith.constant dense<0.000000e+00> : vector<64x128xf32>
    %30 = tpu.matmul %28, %29, %cst_35 {dimension_numbers = #tpu.dot_dimension_numbers<[1], [0], [0], [1], [0, 0, 1, 1], [], []>} : vector<64x128xf32>, vector<128x128xf32>, vector<64x128xf32> -> vector<64x128xf32>
    %31 = arith.addf %26, %30 : vector<64x128xf32>
    %c0_36 = arith.constant 0 : index
    %c2 = arith.constant 2 : index
    %c0_37 = arith.constant 0 : index
    %32 = vector.load %arg7[%c0_36, %c2, %c0_37] : memref<10x10x128xf32, #tpu.memory_space<vmem>>, vector<8x8x128xf32>
    %33 = vector.shape_cast %32 : vector<8x8x128xf32> to vector<64x128xf32>
    %c256 = arith.constant 256 : index
    %c0_38 = arith.constant 0 : index
    %34 = vector.load %arg4[%c256, %c0_38] : memref<1152x128xf32, #tpu.memory_space<vmem>>, vector<128x128xf32>
    %cst_39 = arith.constant dense<0.000000e+00> : vector<64x128xf32>
    %35 = tpu.matmul %33, %34, %cst_39 {dimension_numbers = #tpu.dot_dimension_numbers<[1], [0], [0], [1], [0, 0, 1, 1], [], []>} : vector<64x128xf32>, vector<128x128xf32>, vector<64x128xf32> -> vector<64x128xf32>
    %36 = arith.addf %31, %35 : vector<64x128xf32>
    %c1_40 = arith.constant 1 : index
    %c0_41 = arith.constant 0 : index
    %c0_42 = arith.constant 0 : index
    %37 = vector.load %arg7[%c1_40, %c0_41, %c0_42] : memref<10x10x128xf32, #tpu.memory_space<vmem>>, vector<8x8x128xf32>
    %38 = vector.shape_cast %37 : vector<8x8x128xf32> to vector<64x128xf32>
    %c384 = arith.constant 384 : index
    %c0_43 = arith.constant 0 : index
    %39 = vector.load %arg4[%c384, %c0_43] : memref<1152x128xf32, #tpu.memory_space<vmem>>, vector<128x128xf32>
    %cst_44 = arith.constant dense<0.000000e+00> : vector<64x128xf32>
    %40 = tpu.matmul %38, %39, %cst_44 {dimension_numbers = #tpu.dot_dimension_numbers<[1], [0], [0], [1], [0, 0, 1, 1], [], []>} : vector<64x128xf32>, vector<128x128xf32>, vector<64x128xf32> -> vector<64x128xf32>
    %41 = arith.addf %36, %40 : vector<64x128xf32>
    %c1_45 = arith.constant 1 : index
    %c1_46 = arith.constant 1 : index
    %c0_47 = arith.constant 0 : index
    %42 = vector.load %arg7[%c1_45, %c1_46, %c0_47] : memref<10x10x128xf32, #tpu.memory_space<vmem>>, vector<8x8x128xf32>
    %43 = vector.shape_cast %42 : vector<8x8x128xf32> to vector<64x128xf32>
    %c512 = arith.constant 512 : index
    %c0_48 = arith.constant 0 : index
    %44 = vector.load %arg4[%c512, %c0_48] : memref<1152x128xf32, #tpu.memory_space<vmem>>, vector<128x128xf32>
    %cst_49 = arith.constant dense<0.000000e+00> : vector<64x128xf32>
    %45 = tpu.matmul %43, %44, %cst_49 {dimension_numbers = #tpu.dot_dimension_numbers<[1], [0], [0], [1], [0, 0, 1, 1], [], []>} : vector<64x128xf32>, vector<128x128xf32>, vector<64x128xf32> -> vector<64x128xf32>
    %46 = arith.addf %41, %45 : vector<64x128xf32>
    %c1_50 = arith.constant 1 : index
    %c2_51 = arith.constant 2 : index
    %c0_52 = arith.constant 0 : index
    %47 = vector.load %arg7[%c1_50, %c2_51, %c0_52] : memref<10x10x128xf32, #tpu.memory_space<vmem>>, vector<8x8x128xf32>
    %48 = vector.shape_cast %47 : vector<8x8x128xf32> to vector<64x128xf32>
    %c640 = arith.constant 640 : index
    %c0_53 = arith.constant 0 : index
    %49 = vector.load %arg4[%c640, %c0_53] : memref<1152x128xf32, #tpu.memory_space<vmem>>, vector<128x128xf32>
    %cst_54 = arith.constant dense<0.000000e+00> : vector<64x128xf32>
    %50 = tpu.matmul %48, %49, %cst_54 {dimension_numbers = #tpu.dot_dimension_numbers<[1], [0], [0], [1], [0, 0, 1, 1], [], []>} : vector<64x128xf32>, vector<128x128xf32>, vector<64x128xf32> -> vector<64x128xf32>
    %51 = arith.addf %46, %50 : vector<64x128xf32>
    %c2_55 = arith.constant 2 : index
    %c0_56 = arith.constant 0 : index
    %c0_57 = arith.constant 0 : index
    %52 = vector.load %arg7[%c2_55, %c0_56, %c0_57] : memref<10x10x128xf32, #tpu.memory_space<vmem>>, vector<8x8x128xf32>
    %53 = vector.shape_cast %52 : vector<8x8x128xf32> to vector<64x128xf32>
    %c768 = arith.constant 768 : index
    %c0_58 = arith.constant 0 : index
    %54 = vector.load %arg4[%c768, %c0_58] : memref<1152x128xf32, #tpu.memory_space<vmem>>, vector<128x128xf32>
    %cst_59 = arith.constant dense<0.000000e+00> : vector<64x128xf32>
    %55 = tpu.matmul %53, %54, %cst_59 {dimension_numbers = #tpu.dot_dimension_numbers<[1], [0], [0], [1], [0, 0, 1, 1], [], []>} : vector<64x128xf32>, vector<128x128xf32>, vector<64x128xf32> -> vector<64x128xf32>
    %56 = arith.addf %51, %55 : vector<64x128xf32>
    %c2_60 = arith.constant 2 : index
    %c1_61 = arith.constant 1 : index
    %c0_62 = arith.constant 0 : index
    %57 = vector.load %arg7[%c2_60, %c1_61, %c0_62] : memref<10x10x128xf32, #tpu.memory_space<vmem>>, vector<8x8x128xf32>
    %58 = vector.shape_cast %57 : vector<8x8x128xf32> to vector<64x128xf32>
    %c896 = arith.constant 896 : index
    %c0_63 = arith.constant 0 : index
    %59 = vector.load %arg4[%c896, %c0_63] : memref<1152x128xf32, #tpu.memory_space<vmem>>, vector<128x128xf32>
    %cst_64 = arith.constant dense<0.000000e+00> : vector<64x128xf32>
    %60 = tpu.matmul %58, %59, %cst_64 {dimension_numbers = #tpu.dot_dimension_numbers<[1], [0], [0], [1], [0, 0, 1, 1], [], []>} : vector<64x128xf32>, vector<128x128xf32>, vector<64x128xf32> -> vector<64x128xf32>
    %61 = arith.addf %56, %60 : vector<64x128xf32>
    %c2_65 = arith.constant 2 : index
    %c2_66 = arith.constant 2 : index
    %c0_67 = arith.constant 0 : index
    %62 = vector.load %arg7[%c2_65, %c2_66, %c0_67] : memref<10x10x128xf32, #tpu.memory_space<vmem>>, vector<8x8x128xf32>
    %63 = vector.shape_cast %62 : vector<8x8x128xf32> to vector<64x128xf32>
    %c1024 = arith.constant 1024 : index
    %c0_68 = arith.constant 0 : index
    %64 = vector.load %arg4[%c1024, %c0_68] : memref<1152x128xf32, #tpu.memory_space<vmem>>, vector<128x128xf32>
    %cst_69 = arith.constant dense<0.000000e+00> : vector<64x128xf32>
    %65 = tpu.matmul %63, %64, %cst_69 {dimension_numbers = #tpu.dot_dimension_numbers<[1], [0], [0], [1], [0, 0, 1, 1], [], []>} : vector<64x128xf32>, vector<128x128xf32>, vector<64x128xf32> -> vector<64x128xf32>
    %66 = arith.addf %61, %65 : vector<64x128xf32>
    %67 = vector.shape_cast %66 : vector<64x128xf32> to vector<1x8x8x128xf32>
    %c0_70 = arith.constant 0 : index
    %c0_71 = arith.constant 0 : index
    %c0_72 = arith.constant 0 : index
    %c0_73 = arith.constant 0 : index
    %68 = vector.load %arg5[%c0_70, %c0_71, %c0_72, %c0_73] : memref<1x8x8x128xf32, #tpu.memory_space<vmem>>, vector<1x8x8x128xf32>
    tpu.vector_store %arg5[%c0_70, %c0_71, %c0_72, %c0_73], %67 {strides = array<i32>} : memref<1x8x8x128xf32, #tpu.memory_space<vmem>>, vector<1x8x8x128xf32>,
    %cst_74 = arith.constant dense<0.000000e+00> : vector<128xf32>
    %69 = vector.multi_reduction <add>, %66, %cst_74 [0] : vector<64x128xf32> to vector<128xf32>
    %70 = vector.shape_cast %69 : vector<128xf32> to vector<1x128xf32>
    %71 = arith.mulf %66, %66 : vector<64x128xf32>
    %cst_75 = arith.constant dense<0.000000e+00> : vector<128xf32>
    %72 = vector.multi_reduction <add>, %71, %cst_75 [0] : vector<64x128xf32> to vector<128xf32>
    %73 = vector.shape_cast %72 : vector<128xf32> to vector<1x128xf32>
    %74 = tpu.concatenate %70, %73 in 0 : vector<1x128xf32>, vector<1x128xf32> -> vector<2x128xf32>
    %75 = vector.shape_cast %74 : vector<2x128xf32> to vector<1x2x128xf32>
    %c0_76 = arith.constant 0 : index
    %c0_77 = arith.constant 0 : index
    %c0_78 = arith.constant 0 : index
    %76 = vector.load %arg6[%c0_76, %c0_77, %c0_78] : memref<1x2x128xf32, #tpu.memory_space<vmem>>, vector<1x2x128xf32>
    tpu.vector_store %arg6[%c0_76, %c0_77, %c0_78], %75 {strides = array<i32>} : memref<1x2x128xf32, #tpu.memory_space<vmem>>, vector<1x2x128xf32>,
    return
  }
  func.func @transform_0(%arg0: i32) -> (i32, i32, i32, i32) {
    %c0_i32 = arith.constant 0 : i32
    %c0_i32_0 = arith.constant 0 : i32
    %c0_i32_1 = arith.constant 0 : i32
    %c0_i32_2 = arith.constant 0 : i32
    return %arg0, %c0_i32, %c0_i32_0, %c0_i32_1 : i32, i32, i32, i32
  }
  func.func @transform_1(%arg0: i32) -> (i32, i32) {
    %c0_i32 = arith.constant 0 : i32
    %c0_i32_0 = arith.constant 0 : i32
    %c0_i32_1 = arith.constant 0 : i32
    return %c0_i32, %c0_i32_0 : i32, i32
  }
  func.func @transform_2(%arg0: i32) -> (i32, i32) {
    %c0_i32 = arith.constant 0 : i32
    %c0_i32_0 = arith.constant 0 : i32
    %c0_i32_1 = arith.constant 0 : i32
    return %c0_i32, %c0_i32_0 : i32, i32
  }
  func.func @transform_3(%arg0: i32) -> (i32, i32) {
    %c0_i32 = arith.constant 0 : i32
    %c0_i32_0 = arith.constant 0 : i32
    %c0_i32_1 = arith.constant 0 : i32
    return %c0_i32, %c0_i32_0 : i32, i32
  }
  func.func @transform_4(%arg0: i32) -> (i32, i32, i32, i32) {
    %c0_i32 = arith.constant 0 : i32
    %c0_i32_0 = arith.constant 0 : i32
    %c0_i32_1 = arith.constant 0 : i32
    %c0_i32_2 = arith.constant 0 : i32
    return %arg0, %c0_i32, %c0_i32_0, %c0_i32_1 : i32, i32, i32, i32
  }
  func.func @transform_5(%arg0: i32) -> (i32, i32, i32) {
    %c0_i32 = arith.constant 0 : i32
    %c0_i32_0 = arith.constant 0 : i32
    %c0_i32_1 = arith.constant 0 : i32
    return %arg0, %c0_i32, %c0_i32_0 : i32, i32, i32
  }
}

module attributes {stable_mosaic.version = 11 : i64} {
  func.func @_finalize_kernel(%arg0: i32, %arg1: memref<128x128xf32, #tpu.memory_space<vmem>>, %arg2: memref<1x128xf32, #tpu.memory_space<vmem>>, %arg3: memref<1x128xf32, #tpu.memory_space<vmem>>, %arg4: memref<128x128xf32, #tpu.memory_space<vmem>>, %arg5: memref<1x128xf32, #tpu.memory_space<vmem>>, %arg6: memref<1x128xf32, #tpu.memory_space<vmem>>, %arg7: memref<128x128xf32, #tpu.memory_space<vmem>>) attributes {dimension_semantics = [#tpu.dimension_semantics<parallel>], iteration_bounds = array<i64: 1>, scalar_prefetch = 0 : i64, scratch_operands = 0 : i64, tpu.core_type = #tpu.core_type<tc>, window_params = [{transform_indices = @transform_0, window_bounds = array<i64: 128, 128>}, {pipeline_mode = #tpu.pipeline_mode<synchronous>, transform_indices = @transform_1, window_bounds = array<i64: 1, 128>}, {pipeline_mode = #tpu.pipeline_mode<synchronous>, transform_indices = @transform_2, window_bounds = array<i64: 1, 128>}, {transform_indices = @transform_3, window_bounds = array<i64: 128, 128>}, {pipeline_mode = #tpu.pipeline_mode<synchronous>, transform_indices = @transform_4, window_bounds = array<i64: 1, 128>}, {pipeline_mode = #tpu.pipeline_mode<synchronous>, transform_indices = @transform_5, window_bounds = array<i64: 1, 128>}, {transform_indices = @transform_6, window_bounds = array<i64: 128, 128>}]} {
    %c0 = arith.constant 0 : index
    %c0_0 = arith.constant 0 : index
    %0 = vector.load %arg1[%c0, %c0_0] : memref<128x128xf32, #tpu.memory_space<vmem>>, vector<128x128xf32>
    %c0_1 = arith.constant 0 : index
    %c0_2 = arith.constant 0 : index
    %1 = vector.load %arg2[%c0_1, %c0_2] : memref<1x128xf32, #tpu.memory_space<vmem>>, vector<1x128xf32>
    %2 = vector.broadcast %1 : vector<1x128xf32> to vector<128x128xf32>
    %3 = arith.mulf %0, %2 : vector<128x128xf32>
    %c0_3 = arith.constant 0 : index
    %c0_4 = arith.constant 0 : index
    %4 = vector.load %arg3[%c0_3, %c0_4] : memref<1x128xf32, #tpu.memory_space<vmem>>, vector<1x128xf32>
    %5 = vector.broadcast %4 : vector<1x128xf32> to vector<128x128xf32>
    %6 = arith.addf %3, %5 : vector<128x128xf32>
    %c0_5 = arith.constant 0 : index
    %c0_6 = arith.constant 0 : index
    %7 = vector.load %arg4[%c0_5, %c0_6] : memref<128x128xf32, #tpu.memory_space<vmem>>, vector<128x128xf32>
    %c0_7 = arith.constant 0 : index
    %c0_8 = arith.constant 0 : index
    %8 = vector.load %arg5[%c0_7, %c0_8] : memref<1x128xf32, #tpu.memory_space<vmem>>, vector<1x128xf32>
    %9 = vector.broadcast %8 : vector<1x128xf32> to vector<128x128xf32>
    %10 = arith.mulf %7, %9 : vector<128x128xf32>
    %c0_9 = arith.constant 0 : index
    %c0_10 = arith.constant 0 : index
    %11 = vector.load %arg6[%c0_9, %c0_10] : memref<1x128xf32, #tpu.memory_space<vmem>>, vector<1x128xf32>
    %12 = vector.broadcast %11 : vector<1x128xf32> to vector<128x128xf32>
    %13 = arith.addf %10, %12 : vector<128x128xf32>
    %14 = arith.addf %6, %13 : vector<128x128xf32>
    %cst = arith.constant 0.000000e+00 : f32
    %15 = vector.broadcast %cst : f32 to vector<128x128xf32>
    %16 = arith.maximumf %14, %15 : vector<128x128xf32>
    %c0_11 = arith.constant 0 : index
    %c0_12 = arith.constant 0 : index
    %17 = vector.load %arg7[%c0_11, %c0_12] : memref<128x128xf32, #tpu.memory_space<vmem>>, vector<128x128xf32>
    tpu.vector_store %arg7[%c0_11, %c0_12], %16 {strides = array<i32>} : memref<128x128xf32, #tpu.memory_space<vmem>>, vector<128x128xf32>,
    return
  }
  func.func @transform_0(%arg0: i32) -> (i32, i32) {
    %c0_i32 = arith.constant 0 : i32
    %c0_i32_0 = arith.constant 0 : i32
    return %arg0, %c0_i32 : i32, i32
  }
  func.func @transform_1(%arg0: i32) -> (i32, i32) {
    %c0_i32 = arith.constant 0 : i32
    %c0_i32_0 = arith.constant 0 : i32
    %c0_i32_1 = arith.constant 0 : i32
    return %c0_i32, %c0_i32_0 : i32, i32
  }
  func.func @transform_2(%arg0: i32) -> (i32, i32) {
    %c0_i32 = arith.constant 0 : i32
    %c0_i32_0 = arith.constant 0 : i32
    %c0_i32_1 = arith.constant 0 : i32
    return %c0_i32, %c0_i32_0 : i32, i32
  }
  func.func @transform_3(%arg0: i32) -> (i32, i32) {
    %c0_i32 = arith.constant 0 : i32
    %c0_i32_0 = arith.constant 0 : i32
    return %arg0, %c0_i32 : i32, i32
  }
  func.func @transform_4(%arg0: i32) -> (i32, i32) {
    %c0_i32 = arith.constant 0 : i32
    %c0_i32_0 = arith.constant 0 : i32
    %c0_i32_1 = arith.constant 0 : i32
    return %c0_i32, %c0_i32_0 : i32, i32
  }
  func.func @transform_5(%arg0: i32) -> (i32, i32) {
    %c0_i32 = arith.constant 0 : i32
    %c0_i32_0 = arith.constant 0 : i32
    %c0_i32_1 = arith.constant 0 : i32
    return %c0_i32, %c0_i32_0 : i32, i32
  }
  func.func @transform_6(%arg0: i32) -> (i32, i32) {
    %c0_i32 = arith.constant 0 : i32
    %c0_i32_0 = arith.constant 0 : i32
    return %arg0, %c0_i32 : i32, i32
  }
}

</mosaic_0001>

<llo_original>
// kernel: bottleneck_forward.5
$region0: #{bottleneck_forward.5}
  #allocation0 [shape = 'u32[]', space=smem, size = 0x4, offset = 0x4, fixed_abs, tag = 'smem constant byte address 0x4 - core index']
  #allocation1 [shape = 'u32[144,128]{1,0:T(1,128)}', space=vmem, size = 0x12000, scoped, tag = 'internal scratch']
  %s0 = inlined_call_operand.vmem [shape: f32[128,128], index: 0, kind: input, shape index: {}]
  %s1 = inlined_call_operand.vmem [shape: f32[128,128], index: 1, kind: input, shape index: {}]
  %s2 = inlined_call_operand.vmem [shape: f32[128,128], index: 2, kind: output, shape index: {0}]
  %s3 = inlined_call_operand.vmem [shape: f32[1,2,128], index: 3, kind: output, shape index: {1}]
  %4 = xla_tuple %s2, %s3
  %s5 = sld [smem:[#allocation0]]
  $region26: #{bottleneck_forward.5} parent=0
    _
  %s7 = ssub.s32 1, %s5
  %s8 = scalar_select 0, %s7, %s5
  // Predicated region
  $region2: #{bottleneck_forward.5} parent=0 // pred_check
    _
  $region3: #{bottleneck_forward.5} parent=0 // pred_check_branch
    %10 = sbr.rel (0) target = $region5
  $region4: #{bottleneck_forward.5} parent=0 // pred_region
    _
  $region5: #{bottleneck_forward.5} parent=0 // pred_fallthru
    _
  // Predicated region
  $region6: #{bottleneck_forward.5} parent=0 // pred_check
    _
  $region7: #{bottleneck_forward.5} parent=0 // pred_check_branch
    %12 = sbr.rel (0) target = $region9
  $region8: #{bottleneck_forward.5} parent=0 // pred_region
    _
  $region9: #{bottleneck_forward.5} parent=0 // pred_fallthru
    _
  %v13 = vld [vmem:[%s0] sm:$0xff]
  %v14 = vld [vmem:[%s0 + $0x8] sm:$0xff]
  %v15 = vld [vmem:[%s0 + $0x10] sm:$0xff]
  %v16 = vld [vmem:[%s0 + $0x18] sm:$0xff]
  %v17 = vld [vmem:[%s0 + $0x20] sm:$0xff]
  %v18 = vld [vmem:[%s0 + $0x28] sm:$0xff]
  %v19 = vld [vmem:[%s0 + $0x30] sm:$0xff]
  %v20 = vld [vmem:[%s0 + $0x38] sm:$0xff]
  %v21 = vld [vmem:[%s0 + $0x40] sm:$0xff]
  %v22 = vld [vmem:[%s0 + $0x48] sm:$0xff]
  %v23 = vld [vmem:[%s0 + $0x50] sm:$0xff]
  %v24 = vld [vmem:[%s0 + $0x58] sm:$0xff]
  %v25 = vld [vmem:[%s0 + $0x60] sm:$0xff]
  %v26 = vld [vmem:[%s0 + $0x68] sm:$0xff]
  %v27 = vld [vmem:[%s0 + $0x70] sm:$0xff]
  %v28 = vld [vmem:[%s0 + $0x78] sm:$0xff]
  %v29 = vld [vmem:[%s1] sm:$0xff]
  %v30 = vld [vmem:[%s1 + $0x8] sm:$0xff]
  %v31 = vld [vmem:[%s1 + $0x10] sm:$0xff]
  %v32 = vld [vmem:[%s1 + $0x18] sm:$0xff]
  %v33 = vld [vmem:[%s1 + $0x20] sm:$0xff]
  %v34 = vld [vmem:[%s1 + $0x28] sm:$0xff]
  %v35 = vld [vmem:[%s1 + $0x30] sm:$0xff]
  %v36 = vld [vmem:[%s1 + $0x38] sm:$0xff]
  %v37 = vld [vmem:[%s1 + $0x40] sm:$0xff]
  %v38 = vld [vmem:[%s1 + $0x48] sm:$0xff]
  %v39 = vld [vmem:[%s1 + $0x50] sm:$0xff]
  %v40 = vld [vmem:[%s1 + $0x58] sm:$0xff]
  %v41 = vld [vmem:[%s1 + $0x60] sm:$0xff]
  %v42 = vld [vmem:[%s1 + $0x68] sm:$0xff]
  %v43 = vld [vmem:[%s1 + $0x70] sm:$0xff]
  %v44 = vld [vmem:[%s1 + $0x78] sm:$0xff]
  %45 = vmatprep.subr.mxu0 0.0
  %46 = vmatpush1.msra.mxu0 %v44
  %47 = vmatprep.subr.mxu0 0.0
  %48 = vmatpush1.msra.mxu0 %v43
  %49 = vmatprep.subr.mxu0 0.0
  %50 = vmatpush1.msra.mxu0 %v42
  %51 = vmatprep.subr.mxu0 0.0
  %52 = vmatpush1.msra.mxu0 %v41
  %53 = vmatprep.subr.mxu0 0.0
  %54 = vmatpush1.msra.mxu0 %v40
  %55 = vmatprep.subr.mxu0 0.0
  %56 = vmatpush1.msra.mxu0 %v39
  %57 = vmatprep.subr.mxu0 0.0
  %58 = vmatpush1.msra.mxu0 %v38
  %59 = vmatprep.subr.mxu0 0.0
  %60 = vmatpush1.msra.mxu0 %v37
  %61 = vmatprep.subr.mxu0 0.0
  %62 = vmatpush1.msra.mxu0 %v36
  %63 = vmatprep.subr.mxu0 0.0
  %64 = vmatpush1.msra.mxu0 %v35
  %65 = vmatprep.subr.mxu0 0.0
  %66 = vmatpush1.msra.mxu0 %v34
  %67 = vmatprep.subr.mxu0 0.0
  %68 = vmatpush1.msra.mxu0 %v33
  %69 = vmatprep.subr.mxu0 0.0
  %70 = vmatpush1.msra.mxu0 %v32
  %71 = vmatprep.subr.mxu0 0.0
  %72 = vmatpush1.msra.mxu0 %v31
  %73 = vmatprep.subr.mxu0 0.0
  %74 = vmatpush1.msra.mxu0 %v30
  %75 = vmatprep.subr.mxu0 0.0
  %76 = vmatpush1.msra.mxu0 %v29
  %77 = vmatprep.subr.mxu0 0.0
  %78 = vmatpush2.msra.mxu0 0.0
  %79 = vmatprep.subr.mxu0 0.0
  %80 = vmatpush2.msra.mxu0 0.0
  %81 = vmatprep.subr.mxu0 0.0
  %82 = vmatpush2.msra.mxu0 0.0
  %83 = vmatprep.subr.mxu0 0.0
  %84 = vmatpush2.msra.mxu0 0.0
  %85 = vmatprep.subr.mxu0 0.0
  %86 = vmatpush2.msra.mxu0 0.0
  %87 = vmatprep.subr.mxu0 0.0
  %88 = vmatpush2.msra.mxu0 0.0
  %89 = vmatprep.subr.mxu0 0.0
  %90 = vmatpush2.msra.mxu0 0.0
  %91 = vmatprep.subr.mxu0 0.0
  %92 = vmatpush2.msra.mxu0 0.0
  %93 = vmatprep.subr.mxu0 0.0
  %94 = vmatpush2.msra.mxu0 0.0
  %95 = vmatprep.subr.mxu0 0.0
  %96 = vmatpush2.msra.mxu0 0.0
  %97 = vmatprep.subr.mxu0 0.0
  %98 = vmatpush2.msra.mxu0 0.0
  %99 = vmatprep.subr.mxu0 0.0
  %100 = vmatpush2.msra.mxu0 0.0
  %101 = vmatprep.subr.mxu0 0.0
  %102 = vmatpush2.msra.mxu0 0.0
  %103 = vmatprep.subr.mxu0 0.0
  %104 = vmatpush2.msra.mxu0 0.0
  %105 = vmatprep.subr.mxu0 0.0
  %106 = vmatpush2.msra.mxu0 0.0
  %107 = vmatprep.subr.mxu0 0.0
  %108 = vmatpush2.msra.mxu0 0.0
  %109 = vmatprep.mubr.f32.mxu0 0.0
  %110 = vmatmul.mubr.f32.gmra.mxu0 %v13
  %v111 = vpop.f32.mrf.mxu0
  %v112 = vadd.f32 0.0, %v111
  %v113 = vpop.f32.mrf.mxu0
  %114 = vmatprep.mubr.f32.mxu0 0.0
  %115 = vmatmul.mubr.f32.gmra.mxu0 %v14
  %v116 = vpop.f32.mrf.mxu0
  %v117 = vadd.f32 0.0, %v116
  %v118 = vpop.f32.mrf.mxu0
  %119 = vmatprep.mubr.f32.mxu0 0.0
  %120 = vmatmul.mubr.f32.gmra.mxu0 %v15
  %v121 = vpop.f32.mrf.mxu0
  %v122 = vadd.f32 0.0, %v121
  %v123 = vpop.f32.mrf.mxu0
  %124 = vmatprep.mubr.f32.mxu0 0.0
  %125 = vmatmul.mubr.f32.gmra.mxu0 %v16
  %v126 = vpop.f32.mrf.mxu0
  %v127 = vadd.f32 0.0, %v126
  %v128 = vpop.f32.mrf.mxu0
  %129 = vmatprep.mubr.f32.mxu0 0.0
  %130 = vmatmul.mubr.f32.gmra.mxu0 %v17
  %v131 = vpop.f32.mrf.mxu0
  %v132 = vadd.f32 0.0, %v131
  %v133 = vpop.f32.mrf.mxu0
  %134 = vmatprep.mubr.f32.mxu0 0.0
  %135 = vmatmul.mubr.f32.gmra.mxu0 %v18
  %v136 = vpop.f32.mrf.mxu0
  %v137 = vadd.f32 0.0, %v136
  %v138 = vpop.f32.mrf.mxu0
  %139 = vmatprep.mubr.f32.mxu0 0.0
  %140 = vmatmul.mubr.f32.gmra.mxu0 %v19
  %v141 = vpop.f32.mrf.mxu0
  %v142 = vadd.f32 0.0, %v141
  %v143 = vpop.f32.mrf.mxu0
  %144 = vmatprep.mubr.f32.mxu0 0.0
  %145 = vmatmul.mubr.f32.gmra.mxu0 %v20
  %v146 = vpop.f32.mrf.mxu0
  %v147 = vadd.f32 0.0, %v146
  %v148 = vpop.f32.mrf.mxu0
  %149 = vmatprep.mubr.f32.mxu0 0.0
  %150 = vmatmul.mubr.f32.gmra.mxu0 %v21
  %v151 = vpop.f32.mrf.mxu0
  %v152 = vadd.f32 0.0, %v151
  %v153 = vpop.f32.mrf.mxu0
  %154 = vmatprep.mubr.f32.mxu0 0.0
  %155 = vmatmul.mubr.f32.gmra.mxu0 %v22
  %v156 = vpop.f32.mrf.mxu0
  %v157 = vadd.f32 0.0, %v156
  %v158 = vpop.f32.mrf.mxu0
  %159 = vmatprep.mubr.f32.mxu0 0.0
  %160 = vmatmul.mubr.f32.gmra.mxu0 %v23
  %v161 = vpop.f32.mrf.mxu0
  %v162 = vadd.f32 0.0, %v161
  %v163 = vpop.f32.mrf.mxu0
  %164 = vmatprep.mubr.f32.mxu0 0.0
  %165 = vmatmul.mubr.f32.gmra.mxu0 %v24
  %v166 = vpop.f32.mrf.mxu0
  %v167 = vadd.f32 0.0, %v166
  %v168 = vpop.f32.mrf.mxu0
  %169 = vmatprep.mubr.f32.mxu0 0.0
  %170 = vmatmul.mubr.f32.gmra.mxu0 %v25
  %v171 = vpop.f32.mrf.mxu0
  %v172 = vadd.f32 0.0, %v171
  %v173 = vpop.f32.mrf.mxu0
  %174 = vmatprep.mubr.f32.mxu0 0.0
  %175 = vmatmul.mubr.f32.gmra.mxu0 %v26
  %v176 = vpop.f32.mrf.mxu0
  %v177 = vadd.f32 0.0, %v176
  %v178 = vpop.f32.mrf.mxu0
  %179 = vmatprep.mubr.f32.mxu0 0.0
  %180 = vmatmul.mubr.f32.gmra.mxu0 %v27
  %v181 = vpop.f32.mrf.mxu0
  %v182 = vadd.f32 0.0, %v181
  %v183 = vpop.f32.mrf.mxu0
  %184 = vmatprep.mubr.f32.mxu0 0.0
  %185 = vmatmul.mubr.f32.gmra.mxu0 %v28
  %v186 = vpop.f32.mrf.mxu0
  %v187 = vadd.f32 0.0, %v186
  %v188 = vpop.f32.mrf.mxu0
  %189 = vdwg.mxu0
  %190 = vst [vmem:[%s2] sm:$0xff] %v112
  %191 = vst [vmem:[%s2 + $0x8] sm:$0xff] %v117
  %192 = vst [vmem:[%s2 + $0x10] sm:$0xff] %v122
  %193 = vst [vmem:[%s2 + $0x18] sm:$0xff] %v127
  %194 = vst [vmem:[%s2 + $0x20] sm:$0xff] %v132
  %195 = vst [vmem:[%s2 + $0x28] sm:$0xff] %v137
  %196 = vst [vmem:[%s2 + $0x30] sm:$0xff] %v142
  %197 = vst [vmem:[%s2 + $0x38] sm:$0xff] %v147
  %198 = vst [vmem:[%s2 + $0x40] sm:$0xff] %v152
  %199 = vst [vmem:[%s2 + $0x48] sm:$0xff] %v157
  %200 = vst [vmem:[%s2 + $0x50] sm:$0xff] %v162
  %201 = vst [vmem:[%s2 + $0x58] sm:$0xff] %v167
  %202 = vst [vmem:[%s2 + $0x60] sm:$0xff] %v172
  %203 = vst [vmem:[%s2 + $0x68] sm:$0xff] %v177
  %204 = vst [vmem:[%s2 + $0x70] sm:$0xff] %v182
  %205 = vst [vmem:[%s2 + $0x78] sm:$0xff] %v187
  %v206 = vadd.f32 %v112, %v117
  %v207 = vadd.f32 %v206, %v122
  %v208 = vadd.f32 %v207, %v127
  %v209 = vadd.f32 %v208, %v132
  %v210 = vadd.f32 %v209, %v137
  %v211 = vadd.f32 %v210, %v142
  %v212 = vadd.f32 %v211, %v147
  %v213 = vadd.f32 %v212, %v152
  %v214 = vadd.f32 %v213, %v157
  %v215 = vadd.f32 %v214, %v162
  %v216 = vadd.f32 %v215, %v167
  %v217 = vadd.f32 %v216, %v172
  %v218 = vadd.f32 %v217, %v177
  %v219 = vadd.f32 %v218, %v182
  %v220 = vadd.f32 %v219, %v187
  %v221 = vrot.slane %v220, 4
  %v222 = vadd.f32 %v220, %v221
  %v223 = vrot.slane %v222, 2
  %v224 = vadd.f32 %v222, %v223
  %v225 = vrot.slane %v224, 1
  %v226 = vadd.f32 %v224, %v225
  %v227 = vmul.f32 %v112, %v112
  %v228 = vmul.f32 %v117, %v117
  %v229 = vmul.f32 %v122, %v122
  %v230 = vmul.f32 %v127, %v127
  %v231 = vmul.f32 %v132, %v132
  %v232 = vmul.f32 %v137, %v137
  %v233 = vmul.f32 %v142, %v142
  %v234 = vmul.f32 %v147, %v147
  %v235 = vmul.f32 %v152, %v152
  %v236 = vmul.f32 %v157, %v157
  %v237 = vmul.f32 %v162, %v162
  %v238 = vmul.f32 %v167, %v167
  %v239 = vmul.f32 %v172, %v172
  %v240 = vmul.f32 %v177, %v177
  %v241 = vmul.f32 %v182, %v182
  %v242 = vmul.f32 %v187, %v187
  %v243 = vadd.f32 %v227, %v228
  %v244 = vadd.f32 %v243, %v229
  %v245 = vadd.f32 %v244, %v230
  %v246 = vadd.f32 %v245, %v231
  %v247 = vadd.f32 %v246, %v232
  %v248 = vadd.f32 %v247, %v233
  %v249 = vadd.f32 %v248, %v234
  %v250 = vadd.f32 %v249, %v235
  %v251 = vadd.f32 %v250, %v236
  %v252 = vadd.f32 %v251, %v237
  %v253 = vadd.f32 %v252, %v238
  %v254 = vadd.f32 %v253, %v239
  %v255 = vadd.f32 %v254, %v240
  %v256 = vadd.f32 %v255, %v241
  %v257 = vadd.f32 %v256, %v242
  %v258 = vrot.slane %v257, 4
  %v259 = vadd.f32 %v257, %v258
  %v260 = vrot.slane %v259, 2
  %v261 = vadd.f32 %v259, %v260
  %v262 = vrot.slane %v261, 1
  %v263 = vadd.f32 %v261, %v262
  %vm264 = vcmask 1040384
  %v265 = vsel %vm264, %v226, %v263
  %266 = vst [vmem:[%s3] sm:$0x3] %v265
  // Predicated region
  $region10: #{bottleneck_forward.5} parent=0 // pred_check
    _
  $region11: #{bottleneck_forward.5} parent=0 // pred_check_branch
    %268 = sbr.rel (0) target = $region13
  $region12: #{bottleneck_forward.5} parent=0 // pred_region
    _
  $region13: #{bottleneck_forward.5} parent=0 // pred_fallthru
    _
  // Predicated region
  $region14: #{bottleneck_forward.5} parent=0 // pred_check
    _
  $region15: #{bottleneck_forward.5} parent=0 // pred_check_branch
    %270 = sbr.rel (0) target = $region17
  $region16: #{bottleneck_forward.5} parent=0 // pred_region
    _
  $region17: #{bottleneck_forward.5} parent=0 // pred_fallthru
    _
  // Predicated region
  $region18: #{bottleneck_forward.5} parent=0 // pred_check
    _
  $region19: #{bottleneck_forward.5} parent=0 // pred_check_branch
    %272 = sbr.rel (0) target = $region21
  $region20: #{bottleneck_forward.5} parent=0 // pred_region
    _
  $region21: #{bottleneck_forward.5} parent=0 // pred_fallthru
    _
  // Predicated region
  $region22: #{bottleneck_forward.5} parent=0 // pred_check
    _
  $region23: #{bottleneck_forward.5} parent=0 // pred_check_branch
    %274 = sbr.rel (0) target = $region25
  $region24: #{bottleneck_forward.5} parent=0 // pred_region
    _
  $region25: #{bottleneck_forward.5} parent=0 // pred_fallthru
    _

// kernel: bottleneck_forward.7
$region0: #{bottleneck_forward.7}
  #allocation0 [shape = 'u32[]', space=smem, size = 0x4, offset = 0x4, fixed_abs, tag = 'smem constant byte address 0x4 - core index']
  #allocation1 [shape = 'u32[144,128]{1,0:T(1,128)}', space=vmem, size = 0x12000, scoped, tag = 'internal scratch']
  %s0 = inlined_call_operand.vmem [shape: f32[128,128], index: 0, kind: input, shape index: {}]
  %s1 = inlined_call_operand.vmem [shape: f32[1,128], index: 1, kind: input, shape index: {}]
  %s2 = inlined_call_operand.vmem [shape: f32[1,128], index: 2, kind: input, shape index: {}]
  %s3 = inlined_call_operand.vmem [shape: f32[128,128], index: 3, kind: input, shape index: {}]
  %s4 = inlined_call_operand.vmem [shape: f32[128,128], index: 4, kind: output, shape index: {0}]
  %s5 = inlined_call_operand.vmem [shape: f32[1,2,128], index: 5, kind: output, shape index: {1}]
  %6 = xla_tuple %s4, %s5
  %s7 = sld [smem:[#allocation0]]
  $region34: #{bottleneck_forward.7} parent=0
    _
  %s9 = ssub.s32 1, %s7
  %s10 = scalar_select 0, %s9, %s7
  // Predicated region
  $region2: #{bottleneck_forward.7} parent=0 // pred_check
    _
  $region3: #{bottleneck_forward.7} parent=0 // pred_check_branch
    %12 = sbr.rel (0) target = $region5
  $region4: #{bottleneck_forward.7} parent=0 // pred_region
    _
  $region5: #{bottleneck_forward.7} parent=0 // pred_fallthru
    _
  // Predicated region
  $region6: #{bottleneck_forward.7} parent=0 // pred_check
    _
  $region7: #{bottleneck_forward.7} parent=0 // pred_check_branch
    %14 = sbr.rel (0) target = $region9
  $region8: #{bottleneck_forward.7} parent=0 // pred_region
    _
  $region9: #{bottleneck_forward.7} parent=0 // pred_fallthru
    _
  // Predicated region
  $region10: #{bottleneck_forward.7} parent=0 // pred_check
    _
  $region11: #{bottleneck_forward.7} parent=0 // pred_check_branch
    %16 = sbr.rel (0) target = $region13
  $region12: #{bottleneck_forward.7} parent=0 // pred_region
    _
  $region13: #{bottleneck_forward.7} parent=0 // pred_fallthru
    _
  // Predicated region
  $region14: #{bottleneck_forward.7} parent=0 // pred_check
    _
  $region15: #{bottleneck_forward.7} parent=0 // pred_check_branch
    %18 = sbr.rel (0) target = $region17
  $region16: #{bottleneck_forward.7} parent=0 // pred_region
    _
  $region17: #{bottleneck_forward.7} parent=0 // pred_fallthru
    _
  %v19 = vld [vmem:[%s0] sm:$0xff]
  %v20 = vld [vmem:[%s0 + $0x8] sm:$0xff]
  %v21 = vld [vmem:[%s0 + $0x10] sm:$0xff]
  %v22 = vld [vmem:[%s0 + $0x18] sm:$0xff]
  %v23 = vld [vmem:[%s0 + $0x20] sm:$0xff]
  %v24 = vld [vmem:[%s0 + $0x28] sm:$0xff]
  %v25 = vld [vmem:[%s0 + $0x30] sm:$0xff]
  %v26 = vld [vmem:[%s0 + $0x38] sm:$0xff]
  %v27 = vld [vmem:[%s0 + $0x40] sm:$0xff]
  %v28 = vld [vmem:[%s0 + $0x48] sm:$0xff]
  %v29 = vld [vmem:[%s0 + $0x50] sm:$0xff]
  %v30 = vld [vmem:[%s0 + $0x58] sm:$0xff]
  %v31 = vld [vmem:[%s0 + $0x60] sm:$0xff]
  %v32 = vld [vmem:[%s0 + $0x68] sm:$0xff]
  %v33 = vld [vmem:[%s0 + $0x70] sm:$0xff]
  %v34 = vld [vmem:[%s0 + $0x78] sm:$0xff]
  %v35 = vld [vmem:[%s1] sm:$0x1]
  %v37 = vlaneseq
  %v38 = vshrl.u32 %v37, 7
  %v39 = vsub.s32 0, %v38
  %v40 = vrot.slane %v35, %v39
  %v42 = vmul.f32 %v19, %v40
  %v43 = vmul.f32 %v20, %v40
  %v44 = vmul.f32 %v21, %v40
  %v45 = vmul.f32 %v22, %v40
  %v46 = vmul.f32 %v23, %v40
  %v47 = vmul.f32 %v24, %v40
  %v48 = vmul.f32 %v25, %v40
  %v49 = vmul.f32 %v26, %v40
  %v50 = vmul.f32 %v27, %v40
  %v51 = vmul.f32 %v28, %v40
  %v52 = vmul.f32 %v29, %v40
  %v53 = vmul.f32 %v30, %v40
  %v54 = vmul.f32 %v31, %v40
  %v55 = vmul.f32 %v32, %v40
  %v56 = vmul.f32 %v33, %v40
  %v57 = vmul.f32 %v34, %v40
  %v58 = vld [vmem:[%s2] sm:$0x1]
  %v60 = vlaneseq
  %v61 = vshrl.u32 %v60, 7
  %v62 = vsub.s32 0, %v61
  %v63 = vrot.slane %v58, %v62
  %v65 = vadd.f32 %v42, %v63
  %v66 = vadd.f32 %v43, %v63
  %v67 = vadd.f32 %v44, %v63
  %v68 = vadd.f32 %v45, %v63
  %v69 = vadd.f32 %v46, %v63
  %v70 = vadd.f32 %v47, %v63
  %v71 = vadd.f32 %v48, %v63
  %v72 = vadd.f32 %v49, %v63
  %v73 = vadd.f32 %v50, %v63
  %v74 = vadd.f32 %v51, %v63
  %v75 = vadd.f32 %v52, %v63
  %v76 = vadd.f32 %v53, %v63
  %v77 = vadd.f32 %v54, %v63
  %v78 = vadd.f32 %v55, %v63
  %v79 = vadd.f32 %v56, %v63
  %v80 = vadd.f32 %v57, %v63
  %v81 = vmax.f32 %v65, 0.0
  %v82 = vmax.f32 %v66, 0.0
  %v83 = vmax.f32 %v67, 0.0
  %v84 = vmax.f32 %v68, 0.0
  %v85 = vmax.f32 %v69, 0.0
  %v86 = vmax.f32 %v70, 0.0
  %v87 = vmax.f32 %v71, 0.0
  %v88 = vmax.f32 %v72, 0.0
  %v89 = vmax.f32 %v73, 0.0
  %v90 = vmax.f32 %v74, 0.0
  %v91 = vmax.f32 %v75, 0.0
  %v92 = vmax.f32 %v76, 0.0
  %v93 = vmax.f32 %v77, 0.0
  %v94 = vmax.f32 %v78, 0.0
  %v95 = vmax.f32 %v79, 0.0
  %v96 = vmax.f32 %v80, 0.0
  %v97 = vld [vmem:[%s3] sm:$0xff]
  %v98 = vld [vmem:[%s3 + $0x8] sm:$0xff]
  %v99 = vld [vmem:[%s3 + $0x10] sm:$0xff]
  %v100 = vld [vmem:[%s3 + $0x18] sm:$0xff]
  %v101 = vld [vmem:[%s3 + $0x20] sm:$0xff]
  %v102 = vld [vmem:[%s3 + $0x28] sm:$0xff]
  %v103 = vld [vmem:[%s3 + $0x30] sm:$0xff]
  %v104 = vld [vmem:[%s3 + $0x38] sm:$0xff]
  %v105 = vld [vmem:[%s3 + $0x40] sm:$0xff]
  %v106 = vld [vmem:[%s3 + $0x48] sm:$0xff]
  %v107 = vld [vmem:[%s3 + $0x50] sm:$0xff]
  %v108 = vld [vmem:[%s3 + $0x58] sm:$0xff]
  %v109 = vld [vmem:[%s3 + $0x60] sm:$0xff]
  %v110 = vld [vmem:[%s3 + $0x68] sm:$0xff]
  %v111 = vld [vmem:[%s3 + $0x70] sm:$0xff]
  %v112 = vld [vmem:[%s3 + $0x78] sm:$0xff]
  %113 = vmatprep.subr.mxu0 0.0
  %114 = vmatpush1.msra.mxu0 %v112
  %115 = vmatprep.subr.mxu0 0.0
  %116 = vmatpush1.msra.mxu0 %v111
  %117 = vmatprep.subr.mxu0 0.0
  %118 = vmatpush1.msra.mxu0 %v110
  %119 = vmatprep.subr.mxu0 0.0
  %120 = vmatpush1.msra.mxu0 %v109
  %121 = vmatprep.subr.mxu0 0.0
  %122 = vmatpush1.msra.mxu0 %v108
  %123 = vmatprep.subr.mxu0 0.0
  %124 = vmatpush1.msra.mxu0 %v107
  %125 = vmatprep.subr.mxu0 0.0
  %126 = vmatpush1.msra.mxu0 %v106
  %127 = vmatprep.subr.mxu0 0.0
  %128 = vmatpush1.msra.mxu0 %v105
  %129 = vmatprep.subr.mxu0 0.0
  %130 = vmatpush1.msra.mxu0 %v104
  %131 = vmatprep.subr.mxu0 0.0
  %132 = vmatpush1.msra.mxu0 %v103
  %133 = vmatprep.subr.mxu0 0.0
  %134 = vmatpush1.msra.mxu0 %v102
  %135 = vmatprep.subr.mxu0 0.0
  %136 = vmatpush1.msra.mxu0 %v101
  %137 = vmatprep.subr.mxu0 0.0
  %138 = vmatpush1.msra.mxu0 %v100
  %139 = vmatprep.subr.mxu0 0.0
  %140 = vmatpush1.msra.mxu0 %v99
  %141 = vmatprep.subr.mxu0 0.0
  %142 = vmatpush1.msra.mxu0 %v98
  %143 = vmatprep.subr.mxu0 0.0
  %144 = vmatpush1.msra.mxu0 %v97
  %145 = vmatprep.subr.mxu0 0.0
  %146 = vmatpush2.msra.mxu0 0.0
  %147 = vmatprep.subr.mxu0 0.0
  %148 = vmatpush2.msra.mxu0 0.0
  %149 = vmatprep.subr.mxu0 0.0
  %150 = vmatpush2.msra.mxu0 0.0
  %151 = vmatprep.subr.mxu0 0.0
  %152 = vmatpush2.msra.mxu0 0.0
  %153 = vmatprep.subr.mxu0 0.0
  %154 = vmatpush2.msra.mxu0 0.0
  %155 = vmatprep.subr.mxu0 0.0
  %156 = vmatpush2.msra.mxu0 0.0
  %157 = vmatprep.subr.mxu0 0.0
  %158 = vmatpush2.msra.mxu0 0.0
  %159 = vmatprep.subr.mxu0 0.0
  %160 = vmatpush2.msra.mxu0 0.0
  %161 = vmatprep.subr.mxu0 0.0
  %162 = vmatpush2.msra.mxu0 0.0
  %163 = vmatprep.subr.mxu0 0.0
  %164 = vmatpush2.msra.mxu0 0.0
  %165 = vmatprep.subr.mxu0 0.0
  %166 = vmatpush2.msra.mxu0 0.0
  %167 = vmatprep.subr.mxu0 0.0
  %168 = vmatpush2.msra.mxu0 0.0
  %169 = vmatprep.subr.mxu0 0.0
  %170 = vmatpush2.msra.mxu0 0.0
  %171 = vmatprep.subr.mxu0 0.0
  %172 = vmatpush2.msra.mxu0 0.0
  %173 = vmatprep.subr.mxu0 0.0
  %174 = vmatpush2.msra.mxu0 0.0
  %175 = vmatprep.subr.mxu0 0.0
  %176 = vmatpush2.msra.mxu0 0.0
  %177 = vmatprep.mubr.f32.mxu0 0.0
  %178 = vmatmul.mubr.f32.gmra.mxu0 %v81
  %v179 = vpop.f32.mrf.mxu0
  %v180 = vadd.f32 0.0, %v179
  %v181 = vpop.f32.mrf.mxu0
  %182 = vmatprep.mubr.f32.mxu0 0.0
  %183 = vmatmul.mubr.f32.gmra.mxu0 %v82
  %v184 = vpop.f32.mrf.mxu0
  %v185 = vadd.f32 0.0, %v184
  %v186 = vpop.f32.mrf.mxu0
  %187 = vmatprep.mubr.f32.mxu0 0.0
  %188 = vmatmul.mubr.f32.gmra.mxu0 %v83
  %v189 = vpop.f32.mrf.mxu0
  %v190 = vadd.f32 0.0, %v189
  %v191 = vpop.f32.mrf.mxu0
  %192 = vmatprep.mubr.f32.mxu0 0.0
  %193 = vmatmul.mubr.f32.gmra.mxu0 %v84
  %v194 = vpop.f32.mrf.mxu0
  %v195 = vadd.f32 0.0, %v194
  %v196 = vpop.f32.mrf.mxu0
  %197 = vmatprep.mubr.f32.mxu0 0.0
  %198 = vmatmul.mubr.f32.gmra.mxu0 %v85
  %v199 = vpop.f32.mrf.mxu0
  %v200 = vadd.f32 0.0, %v199
  %v201 = vpop.f32.mrf.mxu0
  %202 = vmatprep.mubr.f32.mxu0 0.0
  %203 = vmatmul.mubr.f32.gmra.mxu0 %v86
  %v204 = vpop.f32.mrf.mxu0
  %v205 = vadd.f32 0.0, %v204
  %v206 = vpop.f32.mrf.mxu0
  %207 = vmatprep.mubr.f32.mxu0 0.0
  %208 = vmatmul.mubr.f32.gmra.mxu0 %v87
  %v209 = vpop.f32.mrf.mxu0
  %v210 = vadd.f32 0.0, %v209
  %v211 = vpop.f32.mrf.mxu0
  %212 = vmatprep.mubr.f32.mxu0 0.0
  %213 = vmatmul.mubr.f32.gmra.mxu0 %v88
  %v214 = vpop.f32.mrf.mxu0
  %v215 = vadd.f32 0.0, %v214
  %v216 = vpop.f32.mrf.mxu0
  %217 = vmatprep.mubr.f32.mxu0 0.0
  %218 = vmatmul.mubr.f32.gmra.mxu0 %v89
  %v219 = vpop.f32.mrf.mxu0
  %v220 = vadd.f32 0.0, %v219
  %v221 = vpop.f32.mrf.mxu0
  %222 = vmatprep.mubr.f32.mxu0 0.0
  %223 = vmatmul.mubr.f32.gmra.mxu0 %v90
  %v224 = vpop.f32.mrf.mxu0
  %v225 = vadd.f32 0.0, %v224
  %v226 = vpop.f32.mrf.mxu0
  %227 = vmatprep.mubr.f32.mxu0 0.0
  %228 = vmatmul.mubr.f32.gmra.mxu0 %v91
  %v229 = vpop.f32.mrf.mxu0
  %v230 = vadd.f32 0.0, %v229
  %v231 = vpop.f32.mrf.mxu0
  %232 = vmatprep.mubr.f32.mxu0 0.0
  %233 = vmatmul.mubr.f32.gmra.mxu0 %v92
  %v234 = vpop.f32.mrf.mxu0
  %v235 = vadd.f32 0.0, %v234
  %v236 = vpop.f32.mrf.mxu0
  %237 = vmatprep.mubr.f32.mxu0 0.0
  %238 = vmatmul.mubr.f32.gmra.mxu0 %v93
  %v239 = vpop.f32.mrf.mxu0
  %v240 = vadd.f32 0.0, %v239
  %v241 = vpop.f32.mrf.mxu0
  %242 = vmatprep.mubr.f32.mxu0 0.0
  %243 = vmatmul.mubr.f32.gmra.mxu0 %v94
  %v244 = vpop.f32.mrf.mxu0
  %v245 = vadd.f32 0.0, %v244
  %v246 = vpop.f32.mrf.mxu0
  %247 = vmatprep.mubr.f32.mxu0 0.0
  %248 = vmatmul.mubr.f32.gmra.mxu0 %v95
  %v249 = vpop.f32.mrf.mxu0
  %v250 = vadd.f32 0.0, %v249
  %v251 = vpop.f32.mrf.mxu0
  %252 = vmatprep.mubr.f32.mxu0 0.0
  %253 = vmatmul.mubr.f32.gmra.mxu0 %v96
  %v254 = vpop.f32.mrf.mxu0
  %v255 = vadd.f32 0.0, %v254
  %v256 = vpop.f32.mrf.mxu0
  %257 = vdwg.mxu0
  %258 = vst [vmem:[%s4] sm:$0xff] %v180
  %259 = vst [vmem:[%s4 + $0x8] sm:$0xff] %v185
  %260 = vst [vmem:[%s4 + $0x10] sm:$0xff] %v190
  %261 = vst [vmem:[%s4 + $0x18] sm:$0xff] %v195
  %262 = vst [vmem:[%s4 + $0x20] sm:$0xff] %v200
  %263 = vst [vmem:[%s4 + $0x28] sm:$0xff] %v205
  %264 = vst [vmem:[%s4 + $0x30] sm:$0xff] %v210
  %265 = vst [vmem:[%s4 + $0x38] sm:$0xff] %v215
  %266 = vst [vmem:[%s4 + $0x40] sm:$0xff] %v220
  %267 = vst [vmem:[%s4 + $0x48] sm:$0xff] %v225
  %268 = vst [vmem:[%s4 + $0x50] sm:$0xff] %v230
  %269 = vst [vmem:[%s4 + $0x58] sm:$0xff] %v235
  %270 = vst [vmem:[%s4 + $0x60] sm:$0xff] %v240
  %271 = vst [vmem:[%s4 + $0x68] sm:$0xff] %v245
  %272 = vst [vmem:[%s4 + $0x70] sm:$0xff] %v250
  %273 = vst [vmem:[%s4 + $0x78] sm:$0xff] %v255
  %v274 = vadd.f32 %v180, %v185
  %v275 = vadd.f32 %v274, %v190
  %v276 = vadd.f32 %v275, %v195
  %v277 = vadd.f32 %v276, %v200
  %v278 = vadd.f32 %v277, %v205
  %v279 = vadd.f32 %v278, %v210
  %v280 = vadd.f32 %v279, %v215
  %v281 = vadd.f32 %v280, %v220
  %v282 = vadd.f32 %v281, %v225
  %v283 = vadd.f32 %v282, %v230
  %v284 = vadd.f32 %v283, %v235
  %v285 = vadd.f32 %v284, %v240
  %v286 = vadd.f32 %v285, %v245
  %v287 = vadd.f32 %v286, %v250
  %v288 = vadd.f32 %v287, %v255
  %v289 = vrot.slane %v288, 4
  %v290 = vadd.f32 %v288, %v289
  %v291 = vrot.slane %v290, 2
  %v292 = vadd.f32 %v290, %v291
  %v293 = vrot.slane %v292, 1
  %v294 = vadd.f32 %v292, %v293
  %v295 = vmul.f32 %v180, %v180
  %v296 = vmul.f32 %v185, %v185
  %v297 = vmul.f32 %v190, %v190
  %v298 = vmul.f32 %v195, %v195
  %v299 = vmul.f32 %v200, %v200
  %v300 = vmul.f32 %v205, %v205
  %v301 = vmul.f32 %v210, %v210
  %v302 = vmul.f32 %v215, %v215
  %v303 = vmul.f32 %v220, %v220
  %v304 = vmul.f32 %v225, %v225
  %v305 = vmul.f32 %v230, %v230
  %v306 = vmul.f32 %v235, %v235
  %v307 = vmul.f32 %v240, %v240
  %v308 = vmul.f32 %v245, %v245
  %v309 = vmul.f32 %v250, %v250
  %v310 = vmul.f32 %v255, %v255
  %v311 = vadd.f32 %v295, %v296
  %v312 = vadd.f32 %v311, %v297
  %v313 = vadd.f32 %v312, %v298
  %v314 = vadd.f32 %v313, %v299
  %v315 = vadd.f32 %v314, %v300
  %v316 = vadd.f32 %v315, %v301
  %v317 = vadd.f32 %v316, %v302
  %v318 = vadd.f32 %v317, %v303
  %v319 = vadd.f32 %v318, %v304
  %v320 = vadd.f32 %v319, %v305
  %v321 = vadd.f32 %v320, %v306
  %v322 = vadd.f32 %v321, %v307
  %v323 = vadd.f32 %v322, %v308
  %v324 = vadd.f32 %v323, %v309
  %v325 = vadd.f32 %v324, %v310
  %v326 = vrot.slane %v325, 4
  %v327 = vadd.f32 %v325, %v326
  %v328 = vrot.slane %v327, 2
  %v329 = vadd.f32 %v327, %v328
  %v330 = vrot.slane %v329, 1
  %v331 = vadd.f32 %v329, %v330
  %vm332 = vcmask 1040384
  %v333 = vsel %vm332, %v294, %v331
  %334 = vst [vmem:[%s5] sm:$0x3] %v333
  // Predicated region
  $region18: #{bottleneck_forward.7} parent=0 // pred_check
    _
  $region19: #{bottleneck_forward.7} parent=0 // pred_check_branch
    %336 = sbr.rel (0) target = $region21
  $region20: #{bottleneck_forward.7} parent=0 // pred_region
    _
  $region21: #{bottleneck_forward.7} parent=0 // pred_fallthru
    _
  // Predicated region
  $region22: #{bottleneck_forward.7} parent=0 // pred_check
    _
  $region23: #{bottleneck_forward.7} parent=0 // pred_check_branch
    %338 = sbr.rel (0) target = $region25
  $region24: #{bottleneck_forward.7} parent=0 // pred_region
    _
  $region25: #{bottleneck_forward.7} parent=0 // pred_fallthru
    _
  // Predicated region
  $region26: #{bottleneck_forward.7} parent=0 // pred_check
    _
  $region27: #{bottleneck_forward.7} parent=0 // pred_check_branch
    %340 = sbr.rel (0) target = $region29
  $region28: #{bottleneck_forward.7} parent=0 // pred_region
    _
  $region29: #{bottleneck_forward.7} parent=0 // pred_fallthru
    _
  // Predicated region
  $region30: #{bottleneck_forward.7} parent=0 // pred_check
    _
  $region31: #{bottleneck_forward.7} parent=0 // pred_check_branch
    %342 = sbr.rel (0) target = $region33
  $region32: #{bottleneck_forward.7} parent=0 // pred_region
    _
  $region33: #{bottleneck_forward.7} parent=0 // pred_fallthru
    _

// kernel: bottleneck_forward.9
$region0: #{bottleneck_forward.9}
  #allocation0 [shape = 'u32[]', space=smem, size = 0x4, offset = 0x4, fixed_abs, tag = 'smem constant byte address 0x4 - core index']
  #allocation1 [shape = 'u32[144,128]{1,0:T(1,128)}', space=vmem, size = 0x12000, scoped, tag = 'internal scratch']
  %s0 = inlined_call_operand.vmem [shape: f32[128,128], index: 0, kind: input, shape index: {}]
  %s1 = inlined_call_operand.vmem [shape: f32[1,128], index: 1, kind: input, shape index: {}]
  %s2 = inlined_call_operand.vmem [shape: f32[1,128], index: 2, kind: input, shape index: {}]
  %s3 = inlined_call_operand.vmem [shape: f32[128,128], index: 3, kind: input, shape index: {}]
  %s4 = inlined_call_operand.vmem [shape: f32[1,128], index: 4, kind: input, shape index: {}]
  %s5 = inlined_call_operand.vmem [shape: f32[1,128], index: 5, kind: input, shape index: {}]
  %s6 = inlined_call_operand.hbm [shape: f32[128,128], index: 6, kind: output, shape index: {}]
  %s7 = sld [smem:[#allocation0]]
  $region34: #{bottleneck_forward.9} parent=0
    _
  %s9 = ssub.s32 1, %s7
  %s10 = scalar_select 0, %s9, %s7
  $region1: #{bottleneck_forward.9} parent=0
    #allocation2 [shape = 'u8[65536]{0}', space=vmem, size = 0x10000, scoped, tag = 'output window, operand 0, single buffered']
    #allocation3 [shape = 's32[1]{0}', space=sflag, size = 0x4, scoped, tag = 'scoped memory for bottleneck_forward.9']
    %11 = vsyncpa [#allocation3], 0
    // Predicated region
    $region2: #{bottleneck_forward.9} parent=1 // pred_check
      _
    $region3: #{bottleneck_forward.9} parent=1 // pred_check_branch
      %13 = sbr.rel (0) target = $region5
    $region4: #{bottleneck_forward.9} parent=1 // pred_region
      _
    $region5: #{bottleneck_forward.9} parent=1 // pred_fallthru
      _
    // Predicated region
    $region6: #{bottleneck_forward.9} parent=1 // pred_check
      _
    $region7: #{bottleneck_forward.9} parent=1 // pred_check_branch
      %15 = sbr.rel (0) target = $region9
    $region8: #{bottleneck_forward.9} parent=1 // pred_region
      _
    $region9: #{bottleneck_forward.9} parent=1 // pred_fallthru
      _
    // Predicated region
    $region10: #{bottleneck_forward.9} parent=1 // pred_check
      _
    $region11: #{bottleneck_forward.9} parent=1 // pred_check_branch
      %17 = sbr.rel (0) target = $region13
    $region12: #{bottleneck_forward.9} parent=1 // pred_region
      _
    $region13: #{bottleneck_forward.9} parent=1 // pred_fallthru
      _
    // Predicated region
    $region14: #{bottleneck_forward.9} parent=1 // pred_check
      _
    $region15: #{bottleneck_forward.9} parent=1 // pred_check_branch
      %19 = sbr.rel (0) target = $region17
    $region16: #{bottleneck_forward.9} parent=1 // pred_region
      _
    $region17: #{bottleneck_forward.9} parent=1 // pred_fallthru
      _
    // Predicated region
    $region18: #{bottleneck_forward.9} parent=1 // pred_check
      _
    $region19: #{bottleneck_forward.9} parent=1 // pred_check_branch
      %21 = sbr.rel (0) target = $region21
    $region20: #{bottleneck_forward.9} parent=1 // pred_region
      _
    $region21: #{bottleneck_forward.9} parent=1 // pred_fallthru
      _
    // Predicated region
    $region22: #{bottleneck_forward.9} parent=1 // pred_check
      _
    $region23: #{bottleneck_forward.9} parent=1 // pred_check_branch
      %23 = sbr.rel (0) target = $region25
    $region24: #{bottleneck_forward.9} parent=1 // pred_region
      _
    $region25: #{bottleneck_forward.9} parent=1 // pred_fallthru
      _
    %v24 = vld [vmem:[%s0] sm:$0xff]
    %v25 = vld [vmem:[%s0 + $0x8] sm:$0xff]
    %v26 = vld [vmem:[%s0 + $0x10] sm:$0xff]
    %v27 = vld [vmem:[%s0 + $0x18] sm:$0xff]
    %v28 = vld [vmem:[%s0 + $0x20] sm:$0xff]
    %v29 = vld [vmem:[%s0 + $0x28] sm:$0xff]
    %v30 = vld [vmem:[%s0 + $0x30] sm:$0xff]
    %v31 = vld [vmem:[%s0 + $0x38] sm:$0xff]
    %v32 = vld [vmem:[%s0 + $0x40] sm:$0xff]
    %v33 = vld [vmem:[%s0 + $0x48] sm:$0xff]
    %v34 = vld [vmem:[%s0 + $0x50] sm:$0xff]
    %v35 = vld [vmem:[%s0 + $0x58] sm:$0xff]
    %v36 = vld [vmem:[%s0 + $0x60] sm:$0xff]
    %v37 = vld [vmem:[%s0 + $0x68] sm:$0xff]
    %v38 = vld [vmem:[%s0 + $0x70] sm:$0xff]
    %v39 = vld [vmem:[%s0 + $0x78] sm:$0xff]
    %v40 = vld [vmem:[%s1] sm:$0x1]
    %v42 = vlaneseq
    %v43 = vshrl.u32 %v42, 7
    %v44 = vsub.s32 0, %v43
    %v45 = vrot.slane %v40, %v44
    %v47 = vmul.f32 %v24, %v45
    %v48 = vmul.f32 %v25, %v45
    %v49 = vmul.f32 %v26, %v45
    %v50 = vmul.f32 %v27, %v45
    %v51 = vmul.f32 %v28, %v45
    %v52 = vmul.f32 %v29, %v45
    %v53 = vmul.f32 %v30, %v45
    %v54 = vmul.f32 %v31, %v45
    %v55 = vmul.f32 %v32, %v45
    %v56 = vmul.f32 %v33, %v45
    %v57 = vmul.f32 %v34, %v45
    %v58 = vmul.f32 %v35, %v45
    %v59 = vmul.f32 %v36, %v45
    %v60 = vmul.f32 %v37, %v45
    %v61 = vmul.f32 %v38, %v45
    %v62 = vmul.f32 %v39, %v45
    %v63 = vld [vmem:[%s2] sm:$0x1]
    %v65 = vlaneseq
    %v66 = vshrl.u32 %v65, 7
    %v67 = vsub.s32 0, %v66
    %v68 = vrot.slane %v63, %v67
    %v70 = vadd.f32 %v47, %v68
    %v71 = vadd.f32 %v48, %v68
    %v72 = vadd.f32 %v49, %v68
    %v73 = vadd.f32 %v50, %v68
    %v74 = vadd.f32 %v51, %v68
    %v75 = vadd.f32 %v52, %v68
    %v76 = vadd.f32 %v53, %v68
    %v77 = vadd.f32 %v54, %v68
    %v78 = vadd.f32 %v55, %v68
    %v79 = vadd.f32 %v56, %v68
    %v80 = vadd.f32 %v57, %v68
    %v81 = vadd.f32 %v58, %v68
    %v82 = vadd.f32 %v59, %v68
    %v83 = vadd.f32 %v60, %v68
    %v84 = vadd.f32 %v61, %v68
    %v85 = vadd.f32 %v62, %v68
    %v86 = vld [vmem:[%s3] sm:$0xff]
    %v87 = vld [vmem:[%s3 + $0x8] sm:$0xff]
    %v88 = vld [vmem:[%s3 + $0x10] sm:$0xff]
    %v89 = vld [vmem:[%s3 + $0x18] sm:$0xff]
    %v90 = vld [vmem:[%s3 + $0x20] sm:$0xff]
    %v91 = vld [vmem:[%s3 + $0x28] sm:$0xff]
    %v92 = vld [vmem:[%s3 + $0x30] sm:$0xff]
    %v93 = vld [vmem:[%s3 + $0x38] sm:$0xff]
    %v94 = vld [vmem:[%s3 + $0x40] sm:$0xff]
    %v95 = vld [vmem:[%s3 + $0x48] sm:$0xff]
    %v96 = vld [vmem:[%s3 + $0x50] sm:$0xff]
    %v97 = vld [vmem:[%s3 + $0x58] sm:$0xff]
    %v98 = vld [vmem:[%s3 + $0x60] sm:$0xff]
    %v99 = vld [vmem:[%s3 + $0x68] sm:$0xff]
    %v100 = vld [vmem:[%s3 + $0x70] sm:$0xff]
    %v101 = vld [vmem:[%s3 + $0x78] sm:$0xff]
    %v102 = vld [vmem:[%s4] sm:$0x1]
    %v104 = vlaneseq
    %v105 = vshrl.u32 %v104, 7
    %v106 = vsub.s32 0, %v105
    %v107 = vrot.slane %v102, %v106
    %v109 = vmul.f32 %v86, %v107
    %v110 = vmul.f32 %v87, %v107
    %v111 = vmul.f32 %v88, %v107
    %v112 = vmul.f32 %v89, %v107
    %v113 = vmul.f32 %v90, %v107
    %v114 = vmul.f32 %v91, %v107
    %v115 = vmul.f32 %v92, %v107
    %v116 = vmul.f32 %v93, %v107
    %v117 = vmul.f32 %v94, %v107
    %v118 = vmul.f32 %v95, %v107
    %v119 = vmul.f32 %v96, %v107
    %v120 = vmul.f32 %v97, %v107
    %v121 = vmul.f32 %v98, %v107
    %v122 = vmul.f32 %v99, %v107
    %v123 = vmul.f32 %v100, %v107
    %v124 = vmul.f32 %v101, %v107
    %v125 = vld [vmem:[%s5] sm:$0x1]
    %v127 = vlaneseq
    %v128 = vshrl.u32 %v127, 7
    %v129 = vsub.s32 0, %v128
    %v130 = vrot.slane %v125, %v129
    %v132 = vadd.f32 %v109, %v130
    %v133 = vadd.f32 %v110, %v130
    %v134 = vadd.f32 %v111, %v130
    %v135 = vadd.f32 %v112, %v130
    %v136 = vadd.f32 %v113, %v130
    %v137 = vadd.f32 %v114, %v130
    %v138 = vadd.f32 %v115, %v130
    %v139 = vadd.f32 %v116, %v130
    %v140 = vadd.f32 %v117, %v130
    %v141 = vadd.f32 %v118, %v130
    %v142 = vadd.f32 %v119, %v130
    %v143 = vadd.f32 %v120, %v130
    %v144 = vadd.f32 %v121, %v130
    %v145 = vadd.f32 %v122, %v130
    %v146 = vadd.f32 %v123, %v130
    %v147 = vadd.f32 %v124, %v130
    %v148 = vadd.f32 %v70, %v132
    %v149 = vadd.f32 %v71, %v133
    %v150 = vadd.f32 %v72, %v134
    %v151 = vadd.f32 %v73, %v135
    %v152 = vadd.f32 %v74, %v136
    %v153 = vadd.f32 %v75, %v137
    %v154 = vadd.f32 %v76, %v138
    %v155 = vadd.f32 %v77, %v139
    %v156 = vadd.f32 %v78, %v140
    %v157 = vadd.f32 %v79, %v141
    %v158 = vadd.f32 %v80, %v142
    %v159 = vadd.f32 %v81, %v143
    %v160 = vadd.f32 %v82, %v144
    %v161 = vadd.f32 %v83, %v145
    %v162 = vadd.f32 %v84, %v146
    %v163 = vadd.f32 %v85, %v147
    %v164 = vmax.f32 %v148, 0.0
    %v165 = vmax.f32 %v149, 0.0
    %v166 = vmax.f32 %v150, 0.0
    %v167 = vmax.f32 %v151, 0.0
    %v168 = vmax.f32 %v152, 0.0
    %v169 = vmax.f32 %v153, 0.0
    %v170 = vmax.f32 %v154, 0.0
    %v171 = vmax.f32 %v155, 0.0
    %v172 = vmax.f32 %v156, 0.0
    %v173 = vmax.f32 %v157, 0.0
    %v174 = vmax.f32 %v158, 0.0
    %v175 = vmax.f32 %v159, 0.0
    %v176 = vmax.f32 %v160, 0.0
    %v177 = vmax.f32 %v161, 0.0
    %v178 = vmax.f32 %v162, 0.0
    %v179 = vmax.f32 %v163, 0.0
    %180 = vst [vmem:[#allocation2] sm:$0xff] %v164
    %181 = vst [vmem:[#allocation2 + $0x8] sm:$0xff] %v165
    %182 = vst [vmem:[#allocation2 + $0x10] sm:$0xff] %v166
    %183 = vst [vmem:[#allocation2 + $0x18] sm:$0xff] %v167
    %184 = vst [vmem:[#allocation2 + $0x20] sm:$0xff] %v168
    %185 = vst [vmem:[#allocation2 + $0x28] sm:$0xff] %v169
    %186 = vst [vmem:[#allocation2 + $0x30] sm:$0xff] %v170
    %187 = vst [vmem:[#allocation2 + $0x38] sm:$0xff] %v171
    %188 = vst [vmem:[#allocation2 + $0x40] sm:$0xff] %v172
    %189 = vst [vmem:[#allocation2 + $0x48] sm:$0xff] %v173
    %190 = vst [vmem:[#allocation2 + $0x50] sm:$0xff] %v174
    %191 = vst [vmem:[#allocation2 + $0x58] sm:$0xff] %v175
    %192 = vst [vmem:[#allocation2 + $0x60] sm:$0xff] %v176
    %193 = vst [vmem:[#allocation2 + $0x68] sm:$0xff] %v177
    %194 = vst [vmem:[#allocation2 + $0x70] sm:$0xff] %v178
    %195 = vst [vmem:[#allocation2 + $0x78] sm:$0xff] %v179
    // Predicated region
    $region26: #{bottleneck_forward.9} parent=1 // pred_check
      _
    $region27: #{bottleneck_forward.9} parent=1 // pred_check_branch
      %197 = sbr.rel (0) target = $region29
    $region28: #{bottleneck_forward.9} parent=1 // pred_region
      %s199 = ssub.s32 2048, 2048
      %200 = vsyncadd [#allocation3], %s199
      %s201 = sshll.u32 [#allocation2], 4
      %s202 = int_to_ptr.vmem [resolvable:$true] %s201
      %207 = dma.vmem_to_hbm [thread:$0]  %s202, 2048, %s6, [#allocation3], 128, 128, 8
    $region29: #{bottleneck_forward.9} parent=1 // pred_fallthru
      _
    // Predicated region
    $region30: #{bottleneck_forward.9} parent=1 // pred_check
      _
    $region31: #{bottleneck_forward.9} parent=1 // pred_check_branch
      %209 = sbr.rel (0) target = $region33
    $region32: #{bottleneck_forward.9} parent=1 // pred_region
      %210 = dma.done [#allocation3], 2048
    $region33: #{bottleneck_forward.9} parent=1 // pred_fallthru
      _
    %211 = vsyncpa [#allocation3], 1

// kernel: bottleneck_forward.6
$region0: #{bottleneck_forward.6}
  #allocation0 [shape = 'u32[]', space=smem, size = 0x4, offset = 0x4, fixed_abs, tag = 'smem constant byte address 0x4 - core index']
  #allocation1 [shape = 'u32[144,128]{1,0:T(1,128)}', space=vmem, size = 0x12000, scoped, tag = 'internal scratch']
  #allocation2 [shape = 'f32[10,10,128]{2,1,0:T(8,128)}', space=vmem, size = 0x14000, scoped, tag = 'scratch operand']
  %s0 = inlined_call_operand.vmem [shape: f32[2,8,8,128], index: 0, kind: input, shape index: {}]
  %s1 = inlined_call_operand.vmem [shape: f32[1,128], index: 1, kind: input, shape index: {}]
  %s2 = inlined_call_operand.vmem [shape: f32[1,128], index: 2, kind: input, shape index: {}]
  %s3 = inlined_call_operand.vmem [shape: f32[1152,128], index: 3, kind: input, shape index: {}]
  %s4 = inlined_call_operand.vmem [shape: f32[2,8,8,128], index: 4, kind: output, shape index: {0}]
  %s5 = inlined_call_operand.vmem [shape: f32[2,2,128], index: 5, kind: output, shape index: {1}]
  %6 = xla_tuple %s4, %s5
  %s7 = sld [smem:[#allocation0]]
  $region57: #{bottleneck_forward.6} parent=0
    _
  %s9 = ssub.s32 1, %s7
  %s10 = scalar_select 0, %s9, %s7
  loop: start=0, step=1, limit=4
  $region2: #{bottleneck_forward.6} parent=0 // loop_pre_header
    _
  $region3: #{bottleneck_forward.6} parent=0 // loop_header
    %s12 = sphi 0, %s16
    %p13 = scmp.ge.s32.totalorder %s12, 4
    %s22 = sphi 0, %s24
    %s25 = sphi 0, %s22
    %s26 = sphi 0, %s25
    %s42 = sphi 0, %s26
    %s46 = sphi 0, %s46
    %s48 = sphi 0, %s46
    %s49 = sphi 0, %s48
    %s63 = sphi 0, %s49
    %s67 = sphi 0, %s67
    %s69 = sphi 0, %s67
    %s70 = sphi 0, %s69
    %s84 = sphi 0, %s70
    %s88 = sphi 0, %s88
    %s90 = sphi 0, %s88
    %s91 = sphi 0, %s90
    %s105 = sphi 0, %s91
    %s111 = sphi 0, %s113
    %s114 = sphi 0, %s111
    %s115 = sphi 0, %s114
    %s131 = sphi 0, %s115
    %s137 = sphi 0, %s139
    %s140 = sphi 0, %s137
    %s141 = sphi 0, %s140
    %s157 = sphi 0, %s141
  $region4: #{bottleneck_forward.6} parent=0 // loop_header_branch
    %15 = sbr.rel (%p13) target = $region8
  $region5: #{bottleneck_forward.6} parent=0 // loop_body
    %s17 = ssub.s32 %s12, 1
    %s18 = ssub.s32 %s12, 2
    %s19 = sadd.s32 %s12, 1
    %s20 = ssub.s32 %s12, %s19
    %p21 = scmp.eq.s32.totalorder %s20, 0
    %s23 = sadd.s32 %s22, 1
    %s24 = scalar_select %p21, %s22, %s23
    %p27 = pneg %p21
    %p28 = scmp.eq.s32.totalorder %s12, 1
    %p29 = por %p27, %p28
    %p30 = scmp.ne.s32.totalorder %s22, %s25
    %p31 = scmp.eq.s32.totalorder %s12, 0
    %p32 = por %p30, %p31
    %p33 = scmp.ne.s32.totalorder %s22, %s25
    %p34 = scmp.eq.s32.totalorder %s17, 1
    %p35 = por %p33, %p34
    %p36 = scmp.ne.s32.totalorder %s25, %s26
    %p37 = scmp.eq.s32.totalorder %s17, 0
    %p38 = por %p36, %p37
    %p39 = scmp.ne.s32.totalorder %s25, %s26
    %p40 = scmp.eq.s32.totalorder %s18, 1
    %p41 = por %p39, %p40
    %p43 = scmp.ne.s32.totalorder %s26, %s42
    %p44 = scmp.eq.s32.totalorder %s18, 0
    %p45 = por %p43, %p44
    %s47 = sadd.s32 %s46, 1
    %p50 = scmp.eq.s32.totalorder %s12, 1
    %p51 = scmp.ne.s32.totalorder %s46, %s48
    %p52 = scmp.eq.s32.totalorder %s12, 0
    %p53 = por %p51, %p52
    %p54 = scmp.ne.s32.totalorder %s46, %s48
    %p55 = scmp.eq.s32.totalorder %s17, 1
    %p56 = por %p54, %p55
    %p57 = scmp.ne.s32.totalorder %s48, %s49
    %p58 = scmp.eq.s32.totalorder %s17, 0
    %p59 = por %p57, %p58
    %p60 = scmp.ne.s32.totalorder %s48, %s49
    %p61 = scmp.eq.s32.totalorder %s18, 1
    %p62 = por %p60, %p61
    %p64 = scmp.ne.s32.totalorder %s49, %s63
    %p65 = scmp.eq.s32.totalorder %s18, 0
    %p66 = por %p64, %p65
    %s68 = sadd.s32 %s67, 1
    %p71 = scmp.eq.s32.totalorder %s12, 1
    %p72 = scmp.ne.s32.totalorder %s67, %s69
    %p73 = scmp.eq.s32.totalorder %s12, 0
    %p74 = por %p72, %p73
    %p75 = scmp.ne.s32.totalorder %s67, %s69
    %p76 = scmp.eq.s32.totalorder %s17, 1
    %p77 = por %p75, %p76
    %p78 = scmp.ne.s32.totalorder %s69, %s70
    %p79 = scmp.eq.s32.totalorder %s17, 0
    %p80 = por %p78, %p79
    %p81 = scmp.ne.s32.totalorder %s69, %s70
    %p82 = scmp.eq.s32.totalorder %s18, 1
    %p83 = por %p81, %p82
    %p85 = scmp.ne.s32.totalorder %s70, %s84
    %p86 = scmp.eq.s32.totalorder %s18, 0
    %p87 = por %p85, %p86
    %s89 = sadd.s32 %s88, 1
    %p92 = scmp.eq.s32.totalorder %s12, 1
    %p93 = scmp.ne.s32.totalorder %s88, %s90
    %p94 = scmp.eq.s32.totalorder %s12, 0
    %p95 = por %p93, %p94
    %p96 = scmp.ne.s32.totalorder %s88, %s90
    %p97 = scmp.eq.s32.totalorder %s17, 1
    %p98 = por %p96, %p97
    %p99 = scmp.ne.s32.totalorder %s90, %s91
    %p100 = scmp.eq.s32.totalorder %s17, 0
    %p101 = por %p99, %p100
    %p102 = scmp.ne.s32.totalorder %s90, %s91
    %p103 = scmp.eq.s32.totalorder %s18, 1
    %p104 = por %p102, %p103
    %p106 = scmp.ne.s32.totalorder %s91, %s105
    %p107 = scmp.eq.s32.totalorder %s18, 0
    %p108 = por %p106, %p107
    %s109 = ssub.s32 %s12, %s19
    %p110 = scmp.eq.s32.totalorder %s109, 0
    %s112 = sadd.s32 %s111, 1
    %s113 = scalar_select %p110, %s111, %s112
    %p116 = pneg %p110
    %p117 = scmp.eq.s32.totalorder %s12, 1
    %p118 = por %p116, %p117
    %p119 = scmp.ne.s32.totalorder %s111, %s114
    %p120 = scmp.eq.s32.totalorder %s12, 0
    %p121 = por %p119, %p120
    %p122 = scmp.ne.s32.totalorder %s111, %s114
    %p123 = scmp.eq.s32.totalorder %s17, 1
    %p124 = por %p122, %p123
    %p125 = scmp.ne.s32.totalorder %s114, %s115
    %p126 = scmp.eq.s32.totalorder %s17, 0
    %p127 = por %p125, %p126
    %p128 = scmp.ne.s32.totalorder %s114, %s115
    %p129 = scmp.eq.s32.totalorder %s18, 1
    %p130 = por %p128, %p129
    %p132 = scmp.ne.s32.totalorder %s115, %s131
    %p133 = scmp.eq.s32.totalorder %s18, 0
    %p134 = por %p132, %p133
    %s135 = ssub.s32 %s12, %s19
    %p136 = scmp.eq.s32.totalorder %s135, 0
    %s138 = sadd.s32 %s137, 1
    %s139 = scalar_select %p136, %s137, %s138
    %p142 = pneg %p136
    %p143 = scmp.eq.s32.totalorder %s12, 1
    %p144 = por %p142, %p143
    %p145 = scmp.ne.s32.totalorder %s137, %s140
    %p146 = scmp.eq.s32.totalorder %s12, 0
    %p147 = por %p145, %p146
    %p148 = scmp.ne.s32.totalorder %s137, %s140
    %p149 = scmp.eq.s32.totalorder %s17, 1
    %p150 = por %p148, %p149
    %p151 = scmp.ne.s32.totalorder %s140, %s141
    %p152 = scmp.eq.s32.totalorder %s17, 0
    %p153 = por %p151, %p152
    %p154 = scmp.ne.s32.totalorder %s140, %s141
    %p155 = scmp.eq.s32.totalorder %s18, 1
    %p156 = por %p154, %p155
    %p158 = scmp.ne.s32.totalorder %s141, %s157
    %p159 = scmp.eq.s32.totalorder %s18, 0
    %p160 = por %p158, %p159
    %p161 = scmp.le.s32.totalorder 1, %s12
    %p162 = scmp.lt.s32.totalorder %s12, 3
    %p163 = pnand %p161, %p162
    %p164 = pneg %p163
    // Predicated region
    $region9: #{bottleneck_forward.6} parent=5 // pred_check
      _
    $region10: #{bottleneck_forward.6} parent=5 // pred_check_branch
      %166 = sbr.rel (%p163) target = $region12
    $region11: #{bottleneck_forward.6} parent=5 // pred_region
      %s167 = ssub.s32 %s12, 1
      // Predicated region
      $region13: #{bottleneck_forward.6} parent=11 // pred_check
        %p168 = pneg %p59
      $region14: #{bottleneck_forward.6} parent=11 // pred_check_branch
        %170 = sbr.rel (%p168) target = $region16
      $region15: #{bottleneck_forward.6} parent=11 // pred_region
        _
      $region16: #{bottleneck_forward.6} parent=11 // pred_fallthru
        _
      // Predicated region
      $region17: #{bottleneck_forward.6} parent=11 // pred_check
        %p171 = pneg %p80
      $region18: #{bottleneck_forward.6} parent=11 // pred_check_branch
        %173 = sbr.rel (%p171) target = $region20
      $region19: #{bottleneck_forward.6} parent=11 // pred_region
        _
      $region20: #{bottleneck_forward.6} parent=11 // pred_fallthru
        _
      // Predicated region
      $region21: #{bottleneck_forward.6} parent=11 // pred_check
        %p174 = pneg %p101
      $region22: #{bottleneck_forward.6} parent=11 // pred_check_branch
        %176 = sbr.rel (%p174) target = $region24
      $region23: #{bottleneck_forward.6} parent=11 // pred_region
        _
      $region24: #{bottleneck_forward.6} parent=11 // pred_fallthru
        _
    $region12: #{bottleneck_forward.6} parent=5 // pred_fallthru
      _
    %p177 = scmp.lt.s32.totalorder %s12, 2
    // Predicated region
    $region25: #{bottleneck_forward.6} parent=5 // pred_check
      %p178 = pneg %p177
    $region26: #{bottleneck_forward.6} parent=5 // pred_check_branch
      %180 = sbr.rel (%p178) target = $region28
    $region27: #{bottleneck_forward.6} parent=5 // pred_region
      // Predicated region
      $region29: #{bottleneck_forward.6} parent=27 // pred_check
        %p181 = pneg %p32
      $region30: #{bottleneck_forward.6} parent=27 // pred_check_branch
        %183 = sbr.rel (%p181) target = $region32
      $region31: #{bottleneck_forward.6} parent=27 // pred_region
        %p184 = scmp.lt.s32.totalorder %s12, 1
        %s185 = scalar_select %p184, %s12, 1
        %s186 = smul.addr %s185, 8
        %s187 = smul.addr %s186, 8
        %s188 = scalar_lea.vmem %s0, %s187
      $region32: #{bottleneck_forward.6} parent=27 // pred_fallthru
        _
    $region28: #{bottleneck_forward.6} parent=5 // pred_fallthru
      _
    %p189 = scmp.le.s32.totalorder 1, %s12
    %p190 = scmp.lt.s32.totalorder %s12, 3
    %p191 = pnand %p189, %p190
    %p192 = pneg %p191
    // Predicated region
    $region33: #{bottleneck_forward.6} parent=5 // pred_check
      _
    $region34: #{bottleneck_forward.6} parent=5 // pred_check_branch
      %194 = sbr.rel (%p191) target = $region36
    $region35: #{bottleneck_forward.6} parent=5 // pred_region
      %s195 = ssub.s32 %s12, 1
      %p196 = scmp.lt.s32.totalorder %s17, 1
      %s197 = scalar_select %p196, %s17, 1
      %s198 = smul.addr %s197, 8
      %s199 = smul.addr %s198, 8
      %s200 = scalar_lea.vmem %s0, %s199
      %p201 = pneg %p38
      %p202 = pneg %p35
      %p203 = pneg %p59
      %p204 = pneg %p56
      %p205 = pneg %p80
      %p206 = pneg %p77
      %p207 = pneg %p101
      %p208 = pneg %p98
      %p209 = pneg %p127
      %p210 = pneg %p124
      %p211 = scmp.lt.s32.totalorder %s17, 1
      %s212 = scalar_select %p211, %s17, 1
      %s213 = smul.addr %s212, 8
      %s214 = smul.addr %s213, 8
      %s215 = scalar_lea.vmem %s4, %s214
      %p216 = pneg %p153
      %p217 = pneg %p150
      %p218 = scmp.lt.s32.totalorder %s17, 1
      %s219 = scalar_select %p218, %s17, 1
      %s220 = smul.addr %s219, 2
      %s221 = scalar_lea.vmem %s5, %s220
      %p222 = scmp.lt.s32.totalorder %s17, 1
      %s223 = scalar_select %p222, %s17, 1
      %s224 = smul.addr %s223, 8
      %s225 = smul.addr %s224, 8
      %s226 = scalar_lea.vmem %s0, %s225
      %p227 = scmp.lt.s32.totalorder %s17, 1
      %s228 = scalar_select %p227, %s17, 1
      %s229 = smul.addr %s228, 8
      %s230 = smul.addr %s229, 8
      %s231 = scalar_lea.vmem %s4, %s230
      %p232 = scmp.lt.s32.totalorder %s17, 1
      %s233 = scalar_select %p232, %s17, 1
      %s234 = smul.addr %s233, 2
      %s235 = scalar_lea.vmem %s5, %s234
      %v236 = vld [vmem:[%s226] sm:$0xff]
      %v237 = vld [vmem:[%s226 + $0x8] sm:$0xff]
      %v238 = vld [vmem:[%s226 + $0x10] sm:$0xff]
      %v239 = vld [vmem:[%s226 + $0x18] sm:$0xff]
      %v240 = vld [vmem:[%s226 + $0x20] sm:$0xff]
      %v241 = vld [vmem:[%s226 + $0x28] sm:$0xff]
      %v242 = vld [vmem:[%s226 + $0x30] sm:$0xff]
      %v243 = vld [vmem:[%s226 + $0x38] sm:$0xff]
      %v244 = vld [vmem:[%s1] sm:$0x1]
      %v246 = vlaneseq
      %v247 = vshrl.u32 %v246, 7
      %v248 = vsub.s32 0, %v247
      %v249 = vrot.slane %v244, %v248
      %v251 = vmul.f32 %v236, %v249
      %v252 = vmul.f32 %v237, %v249
      %v253 = vmul.f32 %v238, %v249
      %v254 = vmul.f32 %v239, %v249
      %v255 = vmul.f32 %v240, %v249
      %v256 = vmul.f32 %v241, %v249
      %v257 = vmul.f32 %v242, %v249
      %v258 = vmul.f32 %v243, %v249
      %v259 = vld [vmem:[%s2] sm:$0x1]
      %v261 = vlaneseq
      %v262 = vshrl.u32 %v261, 7
      %v263 = vsub.s32 0, %v262
      %v264 = vrot.slane %v259, %v263
      %v266 = vadd.f32 %v251, %v264
      %v267 = vadd.f32 %v252, %v264
      %v268 = vadd.f32 %v253, %v264
      %v269 = vadd.f32 %v254, %v264
      %v270 = vadd.f32 %v255, %v264
      %v271 = vadd.f32 %v256, %v264
      %v272 = vadd.f32 %v257, %v264
      %v273 = vadd.f32 %v258, %v264
      %v274 = vmax.f32 %v266, 0.0
      %v275 = vmax.f32 %v267, 0.0
      %v276 = vmax.f32 %v268, 0.0
      %v277 = vmax.f32 %v269, 0.0
      %v278 = vmax.f32 %v270, 0.0
      %v279 = vmax.f32 %v271, 0.0
      %v280 = vmax.f32 %v272, 0.0
      %v281 = vmax.f32 %v273, 0.0
      %282 = vst [vmem:[#allocation2] sm:$0xff] 0.0
      %283 = vst [vmem:[#allocation2 + $0x8] sm:$0x3] 0.0
      %s284 = scalar_lea.vmem [#allocation2], 144
      %285 = vst [vmem:[%s284] sm:$0xff] 0.0
      %286 = vst [vmem:[%s284 + $0x8] sm:$0x3] 0.0
      %287 = vst [vmem:[#allocation2] sm:$0x1] 0.0
      %288 = vst [vmem:[#allocation2 + $0x10] sm:$0x1] 0.0
      %289 = vst [vmem:[#allocation2 + $0x20] sm:$0x1] 0.0
      %290 = vst [vmem:[#allocation2 + $0x30] sm:$0x1] 0.0
      %291 = vst [vmem:[#allocation2 + $0x40] sm:$0x1] 0.0
      %292 = vst [vmem:[#allocation2 + $0x50] sm:$0x1] 0.0
      %293 = vst [vmem:[#allocation2 + $0x60] sm:$0x1] 0.0
      %294 = vst [vmem:[#allocation2 + $0x70] sm:$0x1] 0.0
      %295 = vst [vmem:[#allocation2 + $0x80] sm:$0x1] 0.0
      %296 = vst [vmem:[#allocation2 + $0x90] sm:$0x1] 0.0
      %297 = vst [vmem:[#allocation2 + $0x9] sm:$0x1] 0.0
      %298 = vst [vmem:[#allocation2 + $0x19] sm:$0x1] 0.0
      %299 = vst [vmem:[#allocation2 + $0x29] sm:$0x1] 0.0
      %300 = vst [vmem:[#allocation2 + $0x39] sm:$0x1] 0.0
      %301 = vst [vmem:[#allocation2 + $0x49] sm:$0x1] 0.0
      %302 = vst [vmem:[#allocation2 + $0x59] sm:$0x1] 0.0
      %303 = vst [vmem:[#allocation2 + $0x69] sm:$0x1] 0.0
      %304 = vst [vmem:[#allocation2 + $0x79] sm:$0x1] 0.0
      %305 = vst [vmem:[#allocation2 + $0x89] sm:$0x1] 0.0
      %306 = vst [vmem:[#allocation2 + $0x99] sm:$0x1] 0.0
      %s307 = scalar_lea.vmem [#allocation2], 16
      %308 = vst [vmem:[%s307 + $0x1] sm:$0xff] %v274
      %309 = vst [vmem:[%s307 + $0x11] sm:$0xff] %v275
      %310 = vst [vmem:[%s307 + $0x21] sm:$0xff] %v276
      %311 = vst [vmem:[%s307 + $0x31] sm:$0xff] %v277
      %312 = vst [vmem:[%s307 + $0x41] sm:$0xff] %v278
      %313 = vst [vmem:[%s307 + $0x51] sm:$0xff] %v279
      %314 = vst [vmem:[%s307 + $0x61] sm:$0xff] %v280
      %315 = vst [vmem:[%s307 + $0x71] sm:$0xff] %v281
      %v316 = vld [vmem:[#allocation2] sm:$0xff]
      %v317 = vld [vmem:[#allocation2 + $0x10] sm:$0xff]
      %v318 = vld [vmem:[#allocation2 + $0x20] sm:$0xff]
      %v319 = vld [vmem:[#allocation2 + $0x30] sm:$0xff]
      %v320 = vld [vmem:[#allocation2 + $0x40] sm:$0xff]
      %v321 = vld [vmem:[#allocation2 + $0x50] sm:$0xff]
      %v322 = vld [vmem:[#allocation2 + $0x60] sm:$0xff]
      %v323 = vld [vmem:[#allocation2 + $0x70] sm:$0xff]
      %v324 = vld [vmem:[%s3] sm:$0xff]
      %v325 = vld [vmem:[%s3 + $0x8] sm:$0xff]
      %v326 = vld [vmem:[%s3 + $0x10] sm:$0xff]
      %v327 = vld [vmem:[%s3 + $0x18] sm:$0xff]
      %v328 = vld [vmem:[%s3 + $0x20] sm:$0xff]
      %v329 = vld [vmem:[%s3 + $0x28] sm:$0xff]
      %v330 = vld [vmem:[%s3 + $0x30] sm:$0xff]
      %v331 = vld [vmem:[%s3 + $0x38] sm:$0xff]
      %v332 = vld [vmem:[%s3 + $0x40] sm:$0xff]
      %v333 = vld [vmem:[%s3 + $0x48] sm:$0xff]
      %v334 = vld [vmem:[%s3 + $0x50] sm:$0xff]
      %v335 = vld [vmem:[%s3 + $0x58] sm:$0xff]
      %v336 = vld [vmem:[%s3 + $0x60] sm:$0xff]
      %v337 = vld [vmem:[%s3 + $0x68] sm:$0xff]
      %v338 = vld [vmem:[%s3 + $0x70] sm:$0xff]
      %v339 = vld [vmem:[%s3 + $0x78] sm:$0xff]
      %v340 = vld [vmem:[#allocation2 + $0x1] sm:$0xff]
      %v341 = vld [vmem:[#allocation2 + $0x11] sm:$0xff]
      %v342 = vld [vmem:[#allocation2 + $0x21] sm:$0xff]
      %v343 = vld [vmem:[#allocation2 + $0x31] sm:$0xff]
      %v344 = vld [vmem:[#allocation2 + $0x41] sm:$0xff]
      %v345 = vld [vmem:[#allocation2 + $0x51] sm:$0xff]
      %v346 = vld [vmem:[#allocation2 + $0x61] sm:$0xff]
      %v347 = vld [vmem:[#allocation2 + $0x71] sm:$0xff]
      %v348 = vld [vmem:[%s3 + $0x80] sm:$0xff]
      %v349 = vld [vmem:[%s3 + $0x88] sm:$0xff]
      %v350 = vld [vmem:[%s3 + $0x90] sm:$0xff]
      %v351 = vld [vmem:[%s3 + $0x98] sm:$0xff]
      %v352 = vld [vmem:[%s3 + $0xa0] sm:$0xff]
      %v353 = vld [vmem:[%s3 + $0xa8] sm:$0xff]
      %v354 = vld [vmem:[%s3 + $0xb0] sm:$0xff]
      %v355 = vld [vmem:[%s3 + $0xb8] sm:$0xff]
      %v356 = vld [vmem:[%s3 + $0xc0] sm:$0xff]
      %v357 = vld [vmem:[%s3 + $0xc8] sm:$0xff]
      %v358 = vld [vmem:[%s3 + $0xd0] sm:$0xff]
      %v359 = vld [vmem:[%s3 + $0xd8] sm:$0xff]
      %v360 = vld [vmem:[%s3 + $0xe0] sm:$0xff]
      %v361 = vld [vmem:[%s3 + $0xe8] sm:$0xff]
      %v362 = vld [vmem:[%s3 + $0xf0] sm:$0xff]
      %v363 = vld [vmem:[%s3 + $0xf8] sm:$0xff]
      %364 = vmatprep.subr.mxu0 0.0
      %365 = vmatpush1.msra.mxu0 %v363
      %366 = vmatprep.subr.mxu0 0.0
      %367 = vmatpush1.msra.mxu0 %v362
      %368 = vmatprep.subr.mxu0 0.0
      %369 = vmatpush1.msra.mxu0 %v361
      %370 = vmatprep.subr.mxu0 0.0
      %371 = vmatpush1.msra.mxu0 %v360
      %372 = vmatprep.subr.mxu0 0.0
      %373 = vmatpush1.msra.mxu0 %v359
      %374 = vmatprep.subr.mxu0 0.0
      %375 = vmatpush1.msra.mxu0 %v358
      %376 = vmatprep.subr.mxu0 0.0
      %377 = vmatpush1.msra.mxu0 %v357
      %378 = vmatprep.subr.mxu0 0.0
      %379 = vmatpush1.msra.mxu0 %v356
      %380 = vmatprep.subr.mxu0 0.0
      %381 = vmatpush1.msra.mxu0 %v355
      %382 = vmatprep.subr.mxu0 0.0
      %383 = vmatpush1.msra.mxu0 %v354
      %384 = vmatprep.subr.mxu0 0.0
      %385 = vmatpush1.msra.mxu0 %v353
      %386 = vmatprep.subr.mxu0 0.0
      %387 = vmatpush1.msra.mxu0 %v352
      %388 = vmatprep.subr.mxu0 0.0
      %389 = vmatpush1.msra.mxu0 %v351
      %390 = vmatprep.subr.mxu0 0.0
      %391 = vmatpush1.msra.mxu0 %v350
      %392 = vmatprep.subr.mxu0 0.0
      %393 = vmatpush1.msra.mxu0 %v349
      %394 = vmatprep.subr.mxu0 0.0
      %395 = vmatpush1.msra.mxu0 %v348
      %396 = vmatprep.subr.mxu0 0.0
      %397 = vmatpush2.msra.mxu0 0.0
      %398 = vmatprep.subr.mxu0 0.0
      %399 = vmatpush2.msra.mxu0 0.0
      %400 = vmatprep.subr.mxu0 0.0
      %401 = vmatpush2.msra.mxu0 0.0
      %402 = vmatprep.subr.mxu0 0.0
      %403 = vmatpush2.msra.mxu0 0.0
      %404 = vmatprep.subr.mxu0 0.0
      %405 = vmatpush2.msra.mxu0 0.0
      %406 = vmatprep.subr.mxu0 0.0
      %407 = vmatpush2.msra.mxu0 0.0
      %408 = vmatprep.subr.mxu0 0.0
      %409 = vmatpush2.msra.mxu0 0.0
      %410 = vmatprep.subr.mxu0 0.0
      %411 = vmatpush2.msra.mxu0 0.0
      %412 = vmatprep.subr.mxu0 0.0
      %413 = vmatpush2.msra.mxu0 0.0
      %414 = vmatprep.subr.mxu0 0.0
      %415 = vmatpush2.msra.mxu0 0.0
      %416 = vmatprep.subr.mxu0 0.0
      %417 = vmatpush2.msra.mxu0 0.0
      %418 = vmatprep.subr.mxu0 0.0
      %419 = vmatpush2.msra.mxu0 0.0
      %420 = vmatprep.subr.mxu0 0.0
      %421 = vmatpush2.msra.mxu0 0.0
      %422 = vmatprep.subr.mxu0 0.0
      %423 = vmatpush2.msra.mxu0 0.0
      %424 = vmatprep.subr.mxu0 0.0
      %425 = vmatpush2.msra.mxu0 0.0
      %426 = vmatprep.subr.mxu0 0.0
      %427 = vmatpush2.msra.mxu0 0.0
      %428 = vmatprep.mubr.f32.mxu0 0.0
      %429 = vmatmul.mubr.f32.gmra.mxu0 %v340
      %v430 = vpop.f32.mrf.mxu0
      %v431 = vadd.f32 0.0, %v430
      %v432 = vpop.f32.mrf.mxu0
      %433 = vmatprep.mubr.f32.mxu0 0.0
      %434 = vmatmul.mubr.f32.gmra.mxu0 %v341
      %v435 = vpop.f32.mrf.mxu0
      %v436 = vadd.f32 0.0, %v435
      %v437 = vpop.f32.mrf.mxu0
      %438 = vmatprep.mubr.f32.mxu0 0.0
      %439 = vmatmul.mubr.f32.gmra.mxu0 %v342
      %v440 = vpop.f32.mrf.mxu0
      %v441 = vadd.f32 0.0, %v440
      %v442 = vpop.f32.mrf.mxu0
      %443 = vmatprep.mubr.f32.mxu0 0.0
      %444 = vmatmul.mubr.f32.gmra.mxu0 %v343
      %v445 = vpop.f32.mrf.mxu0
      %v446 = vadd.f32 0.0, %v445
      %v447 = vpop.f32.mrf.mxu0
      %448 = vmatprep.mubr.f32.mxu0 0.0
      %449 = vmatmul.mubr.f32.gmra.mxu0 %v344
      %v450 = vpop.f32.mrf.mxu0
      %v451 = vadd.f32 0.0, %v450
      %v452 = vpop.f32.mrf.mxu0
      %453 = vmatprep.mubr.f32.mxu0 0.0
      %454 = vmatmul.mubr.f32.gmra.mxu0 %v345
      %v455 = vpop.f32.mrf.mxu0
      %v456 = vadd.f32 0.0, %v455
      %v457 = vpop.f32.mrf.mxu0
      %458 = vmatprep.mubr.f32.mxu0 0.0
      %459 = vmatmul.mubr.f32.gmra.mxu0 %v346
      %v460 = vpop.f32.mrf.mxu0
      %v461 = vadd.f32 0.0, %v460
      %v462 = vpop.f32.mrf.mxu0
      %463 = vmatprep.mubr.f32.mxu0 0.0
      %464 = vmatmul.mubr.f32.gmra.mxu0 %v347
      %v465 = vpop.f32.mrf.mxu0
      %v466 = vadd.f32 0.0, %v465
      %v467 = vpop.f32.mrf.mxu0
      %468 = vdwg.mxu0
      %469 = vmatprep.subr.mxu0 0.0
      %470 = vmatpush1.msra.mxu0 %v339
      %471 = vmatprep.subr.mxu0 0.0
      %472 = vmatpush1.msra.mxu0 %v338
      %473 = vmatprep.subr.mxu0 0.0
      %474 = vmatpush1.msra.mxu0 %v337
      %475 = vmatprep.subr.mxu0 0.0
      %476 = vmatpush1.msra.mxu0 %v336
      %477 = vmatprep.subr.mxu0 0.0
      %478 = vmatpush1.msra.mxu0 %v335
      %479 = vmatprep.subr.mxu0 0.0
      %480 = vmatpush1.msra.mxu0 %v334
      %481 = vmatprep.subr.mxu0 0.0
      %482 = vmatpush1.msra.mxu0 %v333
      %483 = vmatprep.subr.mxu0 0.0
      %484 = vmatpush1.msra.mxu0 %v332
      %485 = vmatprep.subr.mxu0 0.0
      %486 = vmatpush1.msra.mxu0 %v331
      %487 = vmatprep.subr.mxu0 0.0
      %488 = vmatpush1.msra.mxu0 %v330
      %489 = vmatprep.subr.mxu0 0.0
      %490 = vmatpush1.msra.mxu0 %v329
      %491 = vmatprep.subr.mxu0 0.0
      %492 = vmatpush1.msra.mxu0 %v328
      %493 = vmatprep.subr.mxu0 0.0
      %494 = vmatpush1.msra.mxu0 %v327
      %495 = vmatprep.subr.mxu0 0.0
      %496 = vmatpush1.msra.mxu0 %v326
      %497 = vmatprep.subr.mxu0 0.0
      %498 = vmatpush1.msra.mxu0 %v325
      %499 = vmatprep.subr.mxu0 0.0
      %500 = vmatpush1.msra.mxu0 %v324
      %501 = vmatprep.subr.mxu0 0.0
      %502 = vmatpush2.msra.mxu0 0.0
      %503 = vmatprep.subr.mxu0 0.0
      %504 = vmatpush2.msra.mxu0 0.0
      %505 = vmatprep.subr.mxu0 0.0
      %506 = vmatpush2.msra.mxu0 0.0
      %507 = vmatprep.subr.mxu0 0.0
      %508 = vmatpush2.msra.mxu0 0.0
      %509 = vmatprep.subr.mxu0 0.0
      %510 = vmatpush2.msra.mxu0 0.0
      %511 = vmatprep.subr.mxu0 0.0
      %512 = vmatpush2.msra.mxu0 0.0
      %513 = vmatprep.subr.mxu0 0.0
      %514 = vmatpush2.msra.mxu0 0.0
      %515 = vmatprep.subr.mxu0 0.0
      %516 = vmatpush2.msra.mxu0 0.0
      %517 = vmatprep.subr.mxu0 0.0
      %518 = vmatpush2.msra.mxu0 0.0
      %519 = vmatprep.subr.mxu0 0.0
      %520 = vmatpush2.msra.mxu0 0.0
      %521 = vmatprep.subr.mxu0 0.0
      %522 = vmatpush2.msra.mxu0 0.0
      %523 = vmatprep.subr.mxu0 0.0
      %524 = vmatpush2.msra.mxu0 0.0
      %525 = vmatprep.subr.mxu0 0.0
      %526 = vmatpush2.msra.mxu0 0.0
      %527 = vmatprep.subr.mxu0 0.0
      %528 = vmatpush2.msra.mxu0 0.0
      %529 = vmatprep.subr.mxu0 0.0
      %530 = vmatpush2.msra.mxu0 0.0
      %531 = vmatprep.subr.mxu0 0.0
      %532 = vmatpush2.msra.mxu0 0.0
      %533 = vmatprep.mubr.f32.mxu0 0.0
      %534 = vmatmul.mubr.f32.gmra.mxu0 %v316
      %v535 = vpop.f32.mrf.mxu0
      %v536 = vadd.f32 %v431, %v535
      %v537 = vpop.f32.mrf.mxu0
      %538 = vmatprep.mubr.f32.mxu0 0.0
      %539 = vmatmul.mubr.f32.gmra.mxu0 %v317
      %v540 = vpop.f32.mrf.mxu0
      %v541 = vadd.f32 %v436, %v540
      %v542 = vpop.f32.mrf.mxu0
      %543 = vmatprep.mubr.f32.mxu0 0.0
      %544 = vmatmul.mubr.f32.gmra.mxu0 %v318
      %v545 = vpop.f32.mrf.mxu0
      %v546 = vadd.f32 %v441, %v545
      %v547 = vpop.f32.mrf.mxu0
      %548 = vmatprep.mubr.f32.mxu0 0.0
      %549 = vmatmul.mubr.f32.gmra.mxu0 %v319
      %v550 = vpop.f32.mrf.mxu0
      %v551 = vadd.f32 %v446, %v550
      %v552 = vpop.f32.mrf.mxu0
      %553 = vmatprep.mubr.f32.mxu0 0.0
      %554 = vmatmul.mubr.f32.gmra.mxu0 %v320
      %v555 = vpop.f32.mrf.mxu0
      %v556 = vadd.f32 %v451, %v555
      %v557 = vpop.f32.mrf.mxu0
      %558 = vmatprep.mubr.f32.mxu0 0.0
      %559 = vmatmul.mubr.f32.gmra.mxu0 %v321
      %v560 = vpop.f32.mrf.mxu0
      %v561 = vadd.f32 %v456, %v560
      %v562 = vpop.f32.mrf.mxu0
      %563 = vmatprep.mubr.f32.mxu0 0.0
      %564 = vmatmul.mubr.f32.gmra.mxu0 %v322
      %v565 = vpop.f32.mrf.mxu0
      %v566 = vadd.f32 %v461, %v565
      %v567 = vpop.f32.mrf.mxu0
      %568 = vmatprep.mubr.f32.mxu0 0.0
      %569 = vmatmul.mubr.f32.gmra.mxu0 %v323
      %v570 = vpop.f32.mrf.mxu0
      %v571 = vadd.f32 %v466, %v570
      %v572 = vpop.f32.mrf.mxu0
      %573 = vdwg.mxu0
      %v574 = vld [vmem:[#allocation2 + $0x2] sm:$0xff]
      %v575 = vld [vmem:[#allocation2 + $0x12] sm:$0xff]
      %v576 = vld [vmem:[#allocation2 + $0x22] sm:$0xff]
      %v577 = vld [vmem:[#allocation2 + $0x32] sm:$0xff]
      %v578 = vld [vmem:[#allocation2 + $0x42] sm:$0xff]
      %v579 = vld [vmem:[#allocation2 + $0x52] sm:$0xff]
      %v580 = vld [vmem:[#allocation2 + $0x62] sm:$0xff]
      %v581 = vld [vmem:[#allocation2 + $0x72] sm:$0xff]
      %v582 = vld [vmem:[%s3 + $0x100] sm:$0xff]
      %v583 = vld [vmem:[%s3 + $0x108] sm:$0xff]
      %v584 = vld [vmem:[%s3 + $0x110] sm:$0xff]
      %v585 = vld [vmem:[%s3 + $0x118] sm:$0xff]
      %v586 = vld [vmem:[%s3 + $0x120] sm:$0xff]
      %v587 = vld [vmem:[%s3 + $0x128] sm:$0xff]
      %v588 = vld [vmem:[%s3 + $0x130] sm:$0xff]
      %v589 = vld [vmem:[%s3 + $0x138] sm:$0xff]
      %v590 = vld [vmem:[%s3 + $0x140] sm:$0xff]
      %v591 = vld [vmem:[%s3 + $0x148] sm:$0xff]
      %v592 = vld [vmem:[%s3 + $0x150] sm:$0xff]
      %v593 = vld [vmem:[%s3 + $0x158] sm:$0xff]
      %v594 = vld [vmem:[%s3 + $0x160] sm:$0xff]
      %v595 = vld [vmem:[%s3 + $0x168] sm:$0xff]
      %v596 = vld [vmem:[%s3 + $0x170] sm:$0xff]
      %v597 = vld [vmem:[%s3 + $0x178] sm:$0xff]
      %598 = vmatprep.subr.mxu0 0.0
      %599 = vmatpush1.msra.mxu0 %v597
      %600 = vmatprep.subr.mxu0 0.0
      %601 = vmatpush1.msra.mxu0 %v596
      %602 = vmatprep.subr.mxu0 0.0
      %603 = vmatpush1.msra.mxu0 %v595
      %604 = vmatprep.subr.mxu0 0.0
      %605 = vmatpush1.msra.mxu0 %v594
      %606 = vmatprep.subr.mxu0 0.0
      %607 = vmatpush1.msra.mxu0 %v593
      %608 = vmatprep.subr.mxu0 0.0
      %609 = vmatpush1.msra.mxu0 %v592
      %610 = vmatprep.subr.mxu0 0.0
      %611 = vmatpush1.msra.mxu0 %v591
      %612 = vmatprep.subr.mxu0 0.0
      %613 = vmatpush1.msra.mxu0 %v590
      %614 = vmatprep.subr.mxu0 0.0
      %615 = vmatpush1.msra.mxu0 %v589
      %616 = vmatprep.subr.mxu0 0.0
      %617 = vmatpush1.msra.mxu0 %v588
      %618 = vmatprep.subr.mxu0 0.0
      %619 = vmatpush1.msra.mxu0 %v587
      %620 = vmatprep.subr.mxu0 0.0
      %621 = vmatpush1.msra.mxu0 %v586
      %622 = vmatprep.subr.mxu0 0.0
      %623 = vmatpush1.msra.mxu0 %v585
      %624 = vmatprep.subr.mxu0 0.0
      %625 = vmatpush1.msra.mxu0 %v584
      %626 = vmatprep.subr.mxu0 0.0
      %627 = vmatpush1.msra.mxu0 %v583
      %628 = vmatprep.subr.mxu0 0.0
      %629 = vmatpush1.msra.mxu0 %v582
      %630 = vmatprep.subr.mxu0 0.0
      %631 = vmatpush2.msra.mxu0 0.0
      %632 = vmatprep.subr.mxu0 0.0
      %633 = vmatpush2.msra.mxu0 0.0
      %634 = vmatprep.subr.mxu0 0.0
      %635 = vmatpush2.msra.mxu0 0.0
      %636 = vmatprep.subr.mxu0 0.0
      %637 = vmatpush2.msra.mxu0 0.0
      %638 = vmatprep.subr.mxu0 0.0
      %639 = vmatpush2.msra.mxu0 0.0
      %640 = vmatprep.subr.mxu0 0.0
      %641 = vmatpush2.msra.mxu0 0.0
      %642 = vmatprep.subr.mxu0 0.0
      %643 = vmatpush2.msra.mxu0 0.0
      %644 = vmatprep.subr.mxu0 0.0
      %645 = vmatpush2.msra.mxu0 0.0
      %646 = vmatprep.subr.mxu0 0.0
      %647 = vmatpush2.msra.mxu0 0.0
      %648 = vmatprep.subr.mxu0 0.0
      %649 = vmatpush2.msra.mxu0 0.0
      %650 = vmatprep.subr.mxu0 0.0
      %651 = vmatpush2.msra.mxu0 0.0
      %652 = vmatprep.subr.mxu0 0.0
      %653 = vmatpush2.msra.mxu0 0.0
      %654 = vmatprep.subr.mxu0 0.0
      %655 = vmatpush2.msra.mxu0 0.0
      %656 = vmatprep.subr.mxu0 0.0
      %657 = vmatpush2.msra.mxu0 0.0
      %658 = vmatprep.subr.mxu0 0.0
      %659 = vmatpush2.msra.mxu0 0.0
      %660 = vmatprep.subr.mxu0 0.0
      %661 = vmatpush2.msra.mxu0 0.0
      %662 = vmatprep.mubr.f32.mxu0 0.0
      %663 = vmatmul.mubr.f32.gmra.mxu0 %v574
      %v664 = vpop.f32.mrf.mxu0
      %v665 = vadd.f32 0.0, %v664
      %v666 = vpop.f32.mrf.mxu0
      %667 = vmatprep.mubr.f32.mxu0 0.0
      %668 = vmatmul.mubr.f32.gmra.mxu0 %v575
      %v669 = vpop.f32.mrf.mxu0
      %v670 = vadd.f32 0.0, %v669
      %v671 = vpop.f32.mrf.mxu0
      %672 = vmatprep.mubr.f32.mxu0 0.0
      %673 = vmatmul.mubr.f32.gmra.mxu0 %v576
      %v674 = vpop.f32.mrf.mxu0
      %v675 = vadd.f32 0.0, %v674
      %v676 = vpop.f32.mrf.mxu0
      %677 = vmatprep.mubr.f32.mxu0 0.0
      %678 = vmatmul.mubr.f32.gmra.mxu0 %v577
      %v679 = vpop.f32.mrf.mxu0
      %v680 = vadd.f32 0.0, %v679
      %v681 = vpop.f32.mrf.mxu0
      %682 = vmatprep.mubr.f32.mxu0 0.0
      %683 = vmatmul.mubr.f32.gmra.mxu0 %v578
      %v684 = vpop.f32.mrf.mxu0
      %v685 = vadd.f32 0.0, %v684
      %v686 = vpop.f32.mrf.mxu0
      %687 = vmatprep.mubr.f32.mxu0 0.0
      %688 = vmatmul.mubr.f32.gmra.mxu0 %v579
      %v689 = vpop.f32.mrf.mxu0
      %v690 = vadd.f32 0.0, %v689
      %v691 = vpop.f32.mrf.mxu0
      %692 = vmatprep.mubr.f32.mxu0 0.0
      %693 = vmatmul.mubr.f32.gmra.mxu0 %v580
      %v694 = vpop.f32.mrf.mxu0
      %v695 = vadd.f32 0.0, %v694
      %v696 = vpop.f32.mrf.mxu0
      %697 = vmatprep.mubr.f32.mxu0 0.0
      %698 = vmatmul.mubr.f32.gmra.mxu0 %v581
      %v699 = vpop.f32.mrf.mxu0
      %v700 = vadd.f32 0.0, %v699
      %v701 = vpop.f32.mrf.mxu0
      %702 = vdwg.mxu0
      %v703 = vadd.f32 %v536, %v665
      %v704 = vadd.f32 %v541, %v670
      %v705 = vadd.f32 %v546, %v675
      %v706 = vadd.f32 %v551, %v680
      %v707 = vadd.f32 %v556, %v685
      %v708 = vadd.f32 %v561, %v690
      %v709 = vadd.f32 %v566, %v695
      %v710 = vadd.f32 %v571, %v700
      %v711 = vld [vmem:[%s307] sm:$0xff]
      %v712 = vld [vmem:[%s307 + $0x10] sm:$0xff]
      %v713 = vld [vmem:[%s307 + $0x20] sm:$0xff]
      %v714 = vld [vmem:[%s307 + $0x30] sm:$0xff]
      %v715 = vld [vmem:[%s307 + $0x40] sm:$0xff]
      %v716 = vld [vmem:[%s307 + $0x50] sm:$0xff]
      %v717 = vld [vmem:[%s307 + $0x60] sm:$0xff]
      %v718 = vld [vmem:[%s307 + $0x70] sm:$0xff]
      %v719 = vld [vmem:[%s3 + $0x180] sm:$0xff]
      %v720 = vld [vmem:[%s3 + $0x188] sm:$0xff]
      %v721 = vld [vmem:[%s3 + $0x190] sm:$0xff]
      %v722 = vld [vmem:[%s3 + $0x198] sm:$0xff]
      %v723 = vld [vmem:[%s3 + $0x1a0] sm:$0xff]
      %v724 = vld [vmem:[%s3 + $0x1a8] sm:$0xff]
      %v725 = vld [vmem:[%s3 + $0x1b0] sm:$0xff]
      %v726 = vld [vmem:[%s3 + $0x1b8] sm:$0xff]
      %v727 = vld [vmem:[%s3 + $0x1c0] sm:$0xff]
      %v728 = vld [vmem:[%s3 + $0x1c8] sm:$0xff]
      %v729 = vld [vmem:[%s3 + $0x1d0] sm:$0xff]
      %v730 = vld [vmem:[%s3 + $0x1d8] sm:$0xff]
      %v731 = vld [vmem:[%s3 + $0x1e0] sm:$0xff]
      %v732 = vld [vmem:[%s3 + $0x1e8] sm:$0xff]
      %v733 = vld [vmem:[%s3 + $0x1f0] sm:$0xff]
      %v734 = vld [vmem:[%s3 + $0x1f8] sm:$0xff]
      %735 = vmatprep.subr.mxu0 0.0
      %736 = vmatpush1.msra.mxu0 %v734
      %737 = vmatprep.subr.mxu0 0.0
      %738 = vmatpush1.msra.mxu0 %v733
      %739 = vmatprep.subr.mxu0 0.0
      %740 = vmatpush1.msra.mxu0 %v732
      %741 = vmatprep.subr.mxu0 0.0
      %742 = vmatpush1.msra.mxu0 %v731
      %743 = vmatprep.subr.mxu0 0.0
      %744 = vmatpush1.msra.mxu0 %v730
      %745 = vmatprep.subr.mxu0 0.0
      %746 = vmatpush1.msra.mxu0 %v729
      %747 = vmatprep.subr.mxu0 0.0
      %748 = vmatpush1.msra.mxu0 %v728
      %749 = vmatprep.subr.mxu0 0.0
      %750 = vmatpush1.msra.mxu0 %v727
      %751 = vmatprep.subr.mxu0 0.0
      %752 = vmatpush1.msra.mxu0 %v726
      %753 = vmatprep.subr.mxu0 0.0
      %754 = vmatpush1.msra.mxu0 %v725
      %755 = vmatprep.subr.mxu0 0.0
      %756 = vmatpush1.msra.mxu0 %v724
      %757 = vmatprep.subr.mxu0 0.0
      %758 = vmatpush1.msra.mxu0 %v723
      %759 = vmatprep.subr.mxu0 0.0
      %760 = vmatpush1.msra.mxu0 %v722
      %761 = vmatprep.subr.mxu0 0.0
      %762 = vmatpush1.msra.mxu0 %v721
      %763 = vmatprep.subr.mxu0 0.0
      %764 = vmatpush1.msra.mxu0 %v720
      %765 = vmatprep.subr.mxu0 0.0
      %766 = vmatpush1.msra.mxu0 %v719
      %767 = vmatprep.subr.mxu0 0.0
      %768 = vmatpush2.msra.mxu0 0.0
      %769 = vmatprep.subr.mxu0 0.0
      %770 = vmatpush2.msra.mxu0 0.0
      %771 = vmatprep.subr.mxu0 0.0
      %772 = vmatpush2.msra.mxu0 0.0
      %773 = vmatprep.subr.mxu0 0.0
      %774 = vmatpush2.msra.mxu0 0.0
      %775 = vmatprep.subr.mxu0 0.0
      %776 = vmatpush2.msra.mxu0 0.0
      %777 = vmatprep.subr.mxu0 0.0
      %778 = vmatpush2.msra.mxu0 0.0
      %779 = vmatprep.subr.mxu0 0.0
      %780 = vmatpush2.msra.mxu0 0.0
      %781 = vmatprep.subr.mxu0 0.0
      %782 = vmatpush2.msra.mxu0 0.0
      %783 = vmatprep.subr.mxu0 0.0
      %784 = vmatpush2.msra.mxu0 0.0
      %785 = vmatprep.subr.mxu0 0.0
      %786 = vmatpush2.msra.mxu0 0.0
      %787 = vmatprep.subr.mxu0 0.0
      %788 = vmatpush2.msra.mxu0 0.0
      %789 = vmatprep.subr.mxu0 0.0
      %790 = vmatpush2.msra.mxu0 0.0
      %791 = vmatprep.subr.mxu0 0.0
      %792 = vmatpush2.msra.mxu0 0.0
      %793 = vmatprep.subr.mxu0 0.0
      %794 = vmatpush2.msra.mxu0 0.0
      %795 = vmatprep.subr.mxu0 0.0
      %796 = vmatpush2.msra.mxu0 0.0
      %797 = vmatprep.subr.mxu0 0.0
      %798 = vmatpush2.msra.mxu0 0.0
      %799 = vmatprep.mubr.f32.mxu0 0.0
      %800 = vmatmul.mubr.f32.gmra.mxu0 %v711
      %v801 = vpop.f32.mrf.mxu0
      %v802 = vadd.f32 0.0, %v801
      %v803 = vpop.f32.mrf.mxu0
      %804 = vmatprep.mubr.f32.mxu0 0.0
      %805 = vmatmul.mubr.f32.gmra.mxu0 %v712
      %v806 = vpop.f32.mrf.mxu0
      %v807 = vadd.f32 0.0, %v806
      %v808 = vpop.f32.mrf.mxu0
      %809 = vmatprep.mubr.f32.mxu0 0.0
      %810 = vmatmul.mubr.f32.gmra.mxu0 %v713
      %v811 = vpop.f32.mrf.mxu0
      %v812 = vadd.f32 0.0, %v811
      %v813 = vpop.f32.mrf.mxu0
      %814 = vmatprep.mubr.f32.mxu0 0.0
      %815 = vmatmul.mubr.f32.gmra.mxu0 %v714
      %v816 = vpop.f32.mrf.mxu0
      %v817 = vadd.f32 0.0, %v816
      %v818 = vpop.f32.mrf.mxu0
      %819 = vmatprep.mubr.f32.mxu0 0.0
      %820 = vmatmul.mubr.f32.gmra.mxu0 %v715
      %v821 = vpop.f32.mrf.mxu0
      %v822 = vadd.f32 0.0, %v821
      %v823 = vpop.f32.mrf.mxu0
      %824 = vmatprep.mubr.f32.mxu0 0.0
      %825 = vmatmul.mubr.f32.gmra.mxu0 %v716
      %v826 = vpop.f32.mrf.mxu0
      %v827 = vadd.f32 0.0, %v826
      %v828 = vpop.f32.mrf.mxu0
      %829 = vmatprep.mubr.f32.mxu0 0.0
      %830 = vmatmul.mubr.f32.gmra.mxu0 %v717
      %v831 = vpop.f32.mrf.mxu0
      %v832 = vadd.f32 0.0, %v831
      %v833 = vpop.f32.mrf.mxu0
      %834 = vmatprep.mubr.f32.mxu0 0.0
      %835 = vmatmul.mubr.f32.gmra.mxu0 %v718
      %v836 = vpop.f32.mrf.mxu0
      %v837 = vadd.f32 0.0, %v836
      %v838 = vpop.f32.mrf.mxu0
      %839 = vdwg.mxu0
      %v840 = vadd.f32 %v703, %v802
      %v841 = vadd.f32 %v704, %v807
      %v842 = vadd.f32 %v705, %v812
      %v843 = vadd.f32 %v706, %v817
      %v844 = vadd.f32 %v707, %v822
      %v845 = vadd.f32 %v708, %v827
      %v846 = vadd.f32 %v709, %v832
      %v847 = vadd.f32 %v710, %v837
      %v848 = vld [vmem:[%s307 + $0x1] sm:$0xff]
      %v849 = vld [vmem:[%s307 + $0x11] sm:$0xff]
      %v850 = vld [vmem:[%s307 + $0x21] sm:$0xff]
      %v851 = vld [vmem:[%s307 + $0x31] sm:$0xff]
      %v852 = vld [vmem:[%s307 + $0x41] sm:$0xff]
      %v853 = vld [vmem:[%s307 + $0x51] sm:$0xff]
      %v854 = vld [vmem:[%s307 + $0x61] sm:$0xff]
      %v855 = vld [vmem:[%s307 + $0x71] sm:$0xff]
      %v856 = vld [vmem:[%s3 + $0x200] sm:$0xff]
      %v857 = vld [vmem:[%s3 + $0x208] sm:$0xff]
      %v858 = vld [vmem:[%s3 + $0x210] sm:$0xff]
      %v859 = vld [vmem:[%s3 + $0x218] sm:$0xff]
      %v860 = vld [vmem:[%s3 + $0x220] sm:$0xff]
      %v861 = vld [vmem:[%s3 + $0x228] sm:$0xff]
      %v862 = vld [vmem:[%s3 + $0x230] sm:$0xff]
      %v863 = vld [vmem:[%s3 + $0x238] sm:$0xff]
      %v864 = vld [vmem:[%s3 + $0x240] sm:$0xff]
      %v865 = vld [vmem:[%s3 + $0x248] sm:$0xff]
      %v866 = vld [vmem:[%s3 + $0x250] sm:$0xff]
      %v867 = vld [vmem:[%s3 + $0x258] sm:$0xff]
      %v868 = vld [vmem:[%s3 + $0x260] sm:$0xff]
      %v869 = vld [vmem:[%s3 + $0x268] sm:$0xff]
      %v870 = vld [vmem:[%s3 + $0x270] sm:$0xff]
      %v871 = vld [vmem:[%s3 + $0x278] sm:$0xff]
      %872 = vmatprep.subr.mxu0 0.0
      %873 = vmatpush1.msra.mxu0 %v871
      %874 = vmatprep.subr.mxu0 0.0
      %875 = vmatpush1.msra.mxu0 %v870
      %876 = vmatprep.subr.mxu0 0.0
      %877 = vmatpush1.msra.mxu0 %v869
      %878 = vmatprep.subr.mxu0 0.0
      %879 = vmatpush1.msra.mxu0 %v868
      %880 = vmatprep.subr.mxu0 0.0
      %881 = vmatpush1.msra.mxu0 %v867
      %882 = vmatprep.subr.mxu0 0.0
      %883 = vmatpush1.msra.mxu0 %v866
      %884 = vmatprep.subr.mxu0 0.0
      %885 = vmatpush1.msra.mxu0 %v865
      %886 = vmatprep.subr.mxu0 0.0
      %887 = vmatpush1.msra.mxu0 %v864
      %888 = vmatprep.subr.mxu0 0.0
      %889 = vmatpush1.msra.mxu0 %v863
      %890 = vmatprep.subr.mxu0 0.0
      %891 = vmatpush1.msra.mxu0 %v862
      %892 = vmatprep.subr.mxu0 0.0
      %893 = vmatpush1.msra.mxu0 %v861
      %894 = vmatprep.subr.mxu0 0.0
      %895 = vmatpush1.msra.mxu0 %v860
      %896 = vmatprep.subr.mxu0 0.0
      %897 = vmatpush1.msra.mxu0 %v859
      %898 = vmatprep.subr.mxu0 0.0
      %899 = vmatpush1.msra.mxu0 %v858
      %900 = vmatprep.subr.mxu0 0.0
      %901 = vmatpush1.msra.mxu0 %v857
      %902 = vmatprep.subr.mxu0 0.0
      %903 = vmatpush1.msra.mxu0 %v856
      %904 = vmatprep.subr.mxu0 0.0
      %905 = vmatpush2.msra.mxu0 0.0
      %906 = vmatprep.subr.mxu0 0.0
      %907 = vmatpush2.msra.mxu0 0.0
      %908 = vmatprep.subr.mxu0 0.0
      %909 = vmatpush2.msra.mxu0 0.0
      %910 = vmatprep.subr.mxu0 0.0
      %911 = vmatpush2.msra.mxu0 0.0
      %912 = vmatprep.subr.mxu0 0.0
      %913 = vmatpush2.msra.mxu0 0.0
      %914 = vmatprep.subr.mxu0 0.0
      %915 = vmatpush2.msra.mxu0 0.0
      %916 = vmatprep.subr.mxu0 0.0
      %917 = vmatpush2.msra.mxu0 0.0
      %918 = vmatprep.subr.mxu0 0.0
      %919 = vmatpush2.msra.mxu0 0.0
      %920 = vmatprep.subr.mxu0 0.0
      %921 = vmatpush2.msra.mxu0 0.0
      %922 = vmatprep.subr.mxu0 0.0
      %923 = vmatpush2.msra.mxu0 0.0
      %924 = vmatprep.subr.mxu0 0.0
      %925 = vmatpush2.msra.mxu0 0.0
      %926 = vmatprep.subr.mxu0 0.0
      %927 = vmatpush2.msra.mxu0 0.0
      %928 = vmatprep.subr.mxu0 0.0
      %929 = vmatpush2.msra.mxu0 0.0
      %930 = vmatprep.subr.mxu0 0.0
      %931 = vmatpush2.msra.mxu0 0.0
      %932 = vmatprep.subr.mxu0 0.0
      %933 = vmatpush2.msra.mxu0 0.0
      %934 = vmatprep.subr.mxu0 0.0
      %935 = vmatpush2.msra.mxu0 0.0
      %936 = vmatprep.mubr.f32.mxu0 0.0
      %937 = vmatmul.mubr.f32.gmra.mxu0 %v848
      %v938 = vpop.f32.mrf.mxu0
      %v939 = vadd.f32 0.0, %v938
      %v940 = vpop.f32.mrf.mxu0
      %941 = vmatprep.mubr.f32.mxu0 0.0
      %942 = vmatmul.mubr.f32.gmra.mxu0 %v849
      %v943 = vpop.f32.mrf.mxu0
      %v944 = vadd.f32 0.0, %v943
      %v945 = vpop.f32.mrf.mxu0
      %946 = vmatprep.mubr.f32.mxu0 0.0
      %947 = vmatmul.mubr.f32.gmra.mxu0 %v850
      %v948 = vpop.f32.mrf.mxu0
      %v949 = vadd.f32 0.0, %v948
      %v950 = vpop.f32.mrf.mxu0
      %951 = vmatprep.mubr.f32.mxu0 0.0
      %952 = vmatmul.mubr.f32.gmra.mxu0 %v851
      %v953 = vpop.f32.mrf.mxu0
      %v954 = vadd.f32 0.0, %v953
      %v955 = vpop.f32.mrf.mxu0
      %956 = vmatprep.mubr.f32.mxu0 0.0
      %957 = vmatmul.mubr.f32.gmra.mxu0 %v852
      %v958 = vpop.f32.mrf.mxu0
      %v959 = vadd.f32 0.0, %v958
      %v960 = vpop.f32.mrf.mxu0
      %961 = vmatprep.mubr.f32.mxu0 0.0
      %962 = vmatmul.mubr.f32.gmra.mxu0 %v853
      %v963 = vpop.f32.mrf.mxu0
      %v964 = vadd.f32 0.0, %v963
      %v965 = vpop.f32.mrf.mxu0
      %966 = vmatprep.mubr.f32.mxu0 0.0
      %967 = vmatmul.mubr.f32.gmra.mxu0 %v854
      %v968 = vpop.f32.mrf.mxu0
      %v969 = vadd.f32 0.0, %v968
      %v970 = vpop.f32.mrf.mxu0
      %971 = vmatprep.mubr.f32.mxu0 0.0
      %972 = vmatmul.mubr.f32.gmra.mxu0 %v855
      %v973 = vpop.f32.mrf.mxu0
      %v974 = vadd.f32 0.0, %v973
      %v975 = vpop.f32.mrf.mxu0
      %976 = vdwg.mxu0
      %v977 = vadd.f32 %v840, %v939
      %v978 = vadd.f32 %v841, %v944
      %v979 = vadd.f32 %v842, %v949
      %v980 = vadd.f32 %v843, %v954
      %v981 = vadd.f32 %v844, %v959
      %v982 = vadd.f32 %v845, %v964
      %v983 = vadd.f32 %v846, %v969
      %v984 = vadd.f32 %v847, %v974
      %v985 = vld [vmem:[%s307 + $0x2] sm:$0xff]
      %v986 = vld [vmem:[%s307 + $0x12] sm:$0xff]
      %v987 = vld [vmem:[%s307 + $0x22] sm:$0xff]
      %v988 = vld [vmem:[%s307 + $0x32] sm:$0xff]
      %v989 = vld [vmem:[%s307 + $0x42] sm:$0xff]
      %v990 = vld [vmem:[%s307 + $0x52] sm:$0xff]
      %v991 = vld [vmem:[%s307 + $0x62] sm:$0xff]
      %v992 = vld [vmem:[%s307 + $0x72] sm:$0xff]
      %v993 = vld [vmem:[%s3 + $0x280] sm:$0xff]
      %v994 = vld [vmem:[%s3 + $0x288] sm:$0xff]
      %v995 = vld [vmem:[%s3 + $0x290] sm:$0xff]
      %v996 = vld [vmem:[%s3 + $0x298] sm:$0xff]
      %v997 = vld [vmem:[%s3 + $0x2a0] sm:$0xff]
      %v998 = vld [vmem:[%s3 + $0x2a8] sm:$0xff]
      %v999 = vld [vmem:[%s3 + $0x2b0] sm:$0xff]
      %v1000 = vld [vmem:[%s3 + $0x2b8] sm:$0xff]
      %v1001 = vld [vmem:[%s3 + $0x2c0] sm:$0xff]
      %v1002 = vld [vmem:[%s3 + $0x2c8] sm:$0xff]
      %v1003 = vld [vmem:[%s3 + $0x2d0] sm:$0xff]
      %v1004 = vld [vmem:[%s3 + $0x2d8] sm:$0xff]
      %v1005 = vld [vmem:[%s3 + $0x2e0] sm:$0xff]
      %v1006 = vld [vmem:[%s3 + $0x2e8] sm:$0xff]
      %v1007 = vld [vmem:[%s3 + $0x2f0] sm:$0xff]
      %v1008 = vld [vmem:[%s3 + $0x2f8] sm:$0xff]
      %1009 = vmatprep.subr.mxu0 0.0
      %1010 = vmatpush1.msra.mxu0 %v1008
      %1011 = vmatprep.subr.mxu0 0.0
      %1012 = vmatpush1.msra.mxu0 %v1007
      %1013 = vmatprep.subr.mxu0 0.0
      %1014 = vmatpush1.msra.mxu0 %v1006
      %1015 = vmatprep.subr.mxu0 0.0
      %1016 = vmatpush1.msra.mxu0 %v1005
      %1017 = vmatprep.subr.mxu0 0.0
      %1018 = vmatpush1.msra.mxu0 %v1004
      %1019 = vmatprep.subr.mxu0 0.0
      %1020 = vmatpush1.msra.mxu0 %v1003
      %1021 = vmatprep.subr.mxu0 0.0
      %1022 = vmatpush1.msra.mxu0 %v1002
      %1023 = vmatprep.subr.mxu0 0.0
      %1024 = vmatpush1.msra.mxu0 %v1001
      %1025 = vmatprep.subr.mxu0 0.0
      %1026 = vmatpush1.msra.mxu0 %v1000
      %1027 = vmatprep.subr.mxu0 0.0
      %1028 = vmatpush1.msra.mxu0 %v999
      %1029 = vmatprep.subr.mxu0 0.0
      %1030 = vmatpush1.msra.mxu0 %v998
      %1031 = vmatprep.subr.mxu0 0.0
      %1032 = vmatpush1.msra.mxu0 %v997
      %1033 = vmatprep.subr.mxu0 0.0
      %1034 = vmatpush1.msra.mxu0 %v996
      %1035 = vmatprep.subr.mxu0 0.0
      %1036 = vmatpush1.msra.mxu0 %v995
      %1037 = vmatprep.subr.mxu0 0.0
      %1038 = vmatpush1.msra.mxu0 %v994
      %1039 = vmatprep.subr.mxu0 0.0
      %1040 = vmatpush1.msra.mxu0 %v993
      %1041 = vmatprep.subr.mxu0 0.0
      %1042 = vmatpush2.msra.mxu0 0.0
      %1043 = vmatprep.subr.mxu0 0.0
      %1044 = vmatpush2.msra.mxu0 0.0
      %1045 = vmatprep.subr.mxu0 0.0
      %1046 = vmatpush2.msra.mxu0 0.0
      %1047 = vmatprep.subr.mxu0 0.0
      %1048 = vmatpush2.msra.mxu0 0.0
      %1049 = vmatprep.subr.mxu0 0.0
      %1050 = vmatpush2.msra.mxu0 0.0
      %1051 = vmatprep.subr.mxu0 0.0
      %1052 = vmatpush2.msra.mxu0 0.0
      %1053 = vmatprep.subr.mxu0 0.0
      %1054 = vmatpush2.msra.mxu0 0.0
      %1055 = vmatprep.subr.mxu0 0.0
      %1056 = vmatpush2.msra.mxu0 0.0
      %1057 = vmatprep.subr.mxu0 0.0
      %1058 = vmatpush2.msra.mxu0 0.0
      %1059 = vmatprep.subr.mxu0 0.0
      %1060 = vmatpush2.msra.mxu0 0.0
      %1061 = vmatprep.subr.mxu0 0.0
      %1062 = vmatpush2.msra.mxu0 0.0
      %1063 = vmatprep.subr.mxu0 0.0
      %1064 = vmatpush2.msra.mxu0 0.0
      %1065 = vmatprep.subr.mxu0 0.0
      %1066 = vmatpush2.msra.mxu0 0.0
      %1067 = vmatprep.subr.mxu0 0.0
      %1068 = vmatpush2.msra.mxu0 0.0
      %1069 = vmatprep.subr.mxu0 0.0
      %1070 = vmatpush2.msra.mxu0 0.0
      %1071 = vmatprep.subr.mxu0 0.0
      %1072 = vmatpush2.msra.mxu0 0.0
      %1073 = vmatprep.mubr.f32.mxu0 0.0
      %1074 = vmatmul.mubr.f32.gmra.mxu0 %v985
      %v1075 = vpop.f32.mrf.mxu0
      %v1076 = vadd.f32 0.0, %v1075
      %v1077 = vpop.f32.mrf.mxu0
      %1078 = vmatprep.mubr.f32.mxu0 0.0
      %1079 = vmatmul.mubr.f32.gmra.mxu0 %v986
      %v1080 = vpop.f32.mrf.mxu0
      %v1081 = vadd.f32 0.0, %v1080
      %v1082 = vpop.f32.mrf.mxu0
      %1083 = vmatprep.mubr.f32.mxu0 0.0
      %1084 = vmatmul.mubr.f32.gmra.mxu0 %v987
      %v1085 = vpop.f32.mrf.mxu0
      %v1086 = vadd.f32 0.0, %v1085
      %v1087 = vpop.f32.mrf.mxu0
      %1088 = vmatprep.mubr.f32.mxu0 0.0
      %1089 = vmatmul.mubr.f32.gmra.mxu0 %v988
      %v1090 = vpop.f32.mrf.mxu0
      %v1091 = vadd.f32 0.0, %v1090
      %v1092 = vpop.f32.mrf.mxu0
      %1093 = vmatprep.mubr.f32.mxu0 0.0
      %1094 = vmatmul.mubr.f32.gmra.mxu0 %v989
      %v1095 = vpop.f32.mrf.mxu0
      %v1096 = vadd.f32 0.0, %v1095
      %v1097 = vpop.f32.mrf.mxu0
      %1098 = vmatprep.mubr.f32.mxu0 0.0
      %1099 = vmatmul.mubr.f32.gmra.mxu0 %v990
      %v1100 = vpop.f32.mrf.mxu0
      %v1101 = vadd.f32 0.0, %v1100
      %v1102 = vpop.f32.mrf.mxu0
      %1103 = vmatprep.mubr.f32.mxu0 0.0
      %1104 = vmatmul.mubr.f32.gmra.mxu0 %v991
      %v1105 = vpop.f32.mrf.mxu0
      %v1106 = vadd.f32 0.0, %v1105
      %v1107 = vpop.f32.mrf.mxu0
      %1108 = vmatprep.mubr.f32.mxu0 0.0
      %1109 = vmatmul.mubr.f32.gmra.mxu0 %v992
      %v1110 = vpop.f32.mrf.mxu0
      %v1111 = vadd.f32 0.0, %v1110
      %v1112 = vpop.f32.mrf.mxu0
      %1113 = vdwg.mxu0
      %v1114 = vadd.f32 %v977, %v1076
      %v1115 = vadd.f32 %v978, %v1081
      %v1116 = vadd.f32 %v979, %v1086
      %v1117 = vadd.f32 %v980, %v1091
      %v1118 = vadd.f32 %v981, %v1096
      %v1119 = vadd.f32 %v982, %v1101
      %v1120 = vadd.f32 %v983, %v1106
      %v1121 = vadd.f32 %v984, %v1111
      %s1122 = scalar_lea.vmem [#allocation2], 32
      %v1123 = vld [vmem:[%s1122] sm:$0xff]
      %v1124 = vld [vmem:[%s1122 + $0x10] sm:$0xff]
      %v1125 = vld [vmem:[%s1122 + $0x20] sm:$0xff]
      %v1126 = vld [vmem:[%s1122 + $0x30] sm:$0xff]
      %v1127 = vld [vmem:[%s1122 + $0x40] sm:$0xff]
      %v1128 = vld [vmem:[%s1122 + $0x50] sm:$0xff]
      %v1129 = vld [vmem:[%s1122 + $0x60] sm:$0xff]
      %v1130 = vld [vmem:[%s1122 + $0x70] sm:$0xff]
      %v1131 = vld [vmem:[%s3 + $0x300] sm:$0xff]
      %v1132 = vld [vmem:[%s3 + $0x308] sm:$0xff]
      %v1133 = vld [vmem:[%s3 + $0x310] sm:$0xff]
      %v1134 = vld [vmem:[%s3 + $0x318] sm:$0xff]
      %v1135 = vld [vmem:[%s3 + $0x320] sm:$0xff]
      %v1136 = vld [vmem:[%s3 + $0x328] sm:$0xff]
      %v1137 = vld [vmem:[%s3 + $0x330] sm:$0xff]
      %v1138 = vld [vmem:[%s3 + $0x338] sm:$0xff]
      %v1139 = vld [vmem:[%s3 + $0x340] sm:$0xff]
      %v1140 = vld [vmem:[%s3 + $0x348] sm:$0xff]
      %v1141 = vld [vmem:[%s3 + $0x350] sm:$0xff]
      %v1142 = vld [vmem:[%s3 + $0x358] sm:$0xff]
      %v1143 = vld [vmem:[%s3 + $0x360] sm:$0xff]
      %v1144 = vld [vmem:[%s3 + $0x368] sm:$0xff]
      %v1145 = vld [vmem:[%s3 + $0x370] sm:$0xff]
      %v1146 = vld [vmem:[%s3 + $0x378] sm:$0xff]
      %1147 = vmatprep.subr.mxu0 0.0
      %1148 = vmatpush1.msra.mxu0 %v1146
      %1149 = vmatprep.subr.mxu0 0.0
      %1150 = vmatpush1.msra.mxu0 %v1145
      %1151 = vmatprep.subr.mxu0 0.0
      %1152 = vmatpush1.msra.mxu0 %v1144
      %1153 = vmatprep.subr.mxu0 0.0
      %1154 = vmatpush1.msra.mxu0 %v1143
      %1155 = vmatprep.subr.mxu0 0.0
      %1156 = vmatpush1.msra.mxu0 %v1142
      %1157 = vmatprep.subr.mxu0 0.0
      %1158 = vmatpush1.msra.mxu0 %v1141
      %1159 = vmatprep.subr.mxu0 0.0
      %1160 = vmatpush1.msra.mxu0 %v1140
      %1161 = vmatprep.subr.mxu0 0.0
      %1162 = vmatpush1.msra.mxu0 %v1139
      %1163 = vmatprep.subr.mxu0 0.0
      %1164 = vmatpush1.msra.mxu0 %v1138
      %1165 = vmatprep.subr.mxu0 0.0
      %1166 = vmatpush1.msra.mxu0 %v1137
      %1167 = vmatprep.subr.mxu0 0.0
      %1168 = vmatpush1.msra.mxu0 %v1136
      %1169 = vmatprep.subr.mxu0 0.0
      %1170 = vmatpush1.msra.mxu0 %v1135
      %1171 = vmatprep.subr.mxu0 0.0
      %1172 = vmatpush1.msra.mxu0 %v1134
      %1173 = vmatprep.subr.mxu0 0.0
      %1174 = vmatpush1.msra.mxu0 %v1133
      %1175 = vmatprep.subr.mxu0 0.0
      %1176 = vmatpush1.msra.mxu0 %v1132
      %1177 = vmatprep.subr.mxu0 0.0
      %1178 = vmatpush1.msra.mxu0 %v1131
      %1179 = vmatprep.subr.mxu0 0.0
      %1180 = vmatpush2.msra.mxu0 0.0
      %1181 = vmatprep.subr.mxu0 0.0
      %1182 = vmatpush2.msra.mxu0 0.0
      %1183 = vmatprep.subr.mxu0 0.0
      %1184 = vmatpush2.msra.mxu0 0.0
      %1185 = vmatprep.subr.mxu0 0.0
      %1186 = vmatpush2.msra.mxu0 0.0
      %1187 = vmatprep.subr.mxu0 0.0
      %1188 = vmatpush2.msra.mxu0 0.0
      %1189 = vmatprep.subr.mxu0 0.0
      %1190 = vmatpush2.msra.mxu0 0.0
      %1191 = vmatprep.subr.mxu0 0.0
      %1192 = vmatpush2.msra.mxu0 0.0
      %1193 = vmatprep.subr.mxu0 0.0
      %1194 = vmatpush2.msra.mxu0 0.0
      %1195 = vmatprep.subr.mxu0 0.0
      %1196 = vmatpush2.msra.mxu0 0.0
      %1197 = vmatprep.subr.mxu0 0.0
      %1198 = vmatpush2.msra.mxu0 0.0
      %1199 = vmatprep.subr.mxu0 0.0
      %1200 = vmatpush2.msra.mxu0 0.0
      %1201 = vmatprep.subr.mxu0 0.0
      %1202 = vmatpush2.msra.mxu0 0.0
      %1203 = vmatprep.subr.mxu0 0.0
      %1204 = vmatpush2.msra.mxu0 0.0
      %1205 = vmatprep.subr.mxu0 0.0
      %1206 = vmatpush2.msra.mxu0 0.0
      %1207 = vmatprep.subr.mxu0 0.0
      %1208 = vmatpush2.msra.mxu0 0.0
      %1209 = vmatprep.subr.mxu0 0.0
      %1210 = vmatpush2.msra.mxu0 0.0
      %1211 = vmatprep.mubr.f32.mxu0 0.0
      %1212 = vmatmul.mubr.f32.gmra.mxu0 %v1123
      %v1213 = vpop.f32.mrf.mxu0
      %v1214 = vadd.f32 0.0, %v1213
      %v1215 = vpop.f32.mrf.mxu0
      %1216 = vmatprep.mubr.f32.mxu0 0.0
      %1217 = vmatmul.mubr.f32.gmra.mxu0 %v1124
      %v1218 = vpop.f32.mrf.mxu0
      %v1219 = vadd.f32 0.0, %v1218
      %v1220 = vpop.f32.mrf.mxu0
      %1221 = vmatprep.mubr.f32.mxu0 0.0
      %1222 = vmatmul.mubr.f32.gmra.mxu0 %v1125
      %v1223 = vpop.f32.mrf.mxu0
      %v1224 = vadd.f32 0.0, %v1223
      %v1225 = vpop.f32.mrf.mxu0
      %1226 = vmatprep.mubr.f32.mxu0 0.0
      %1227 = vmatmul.mubr.f32.gmra.mxu0 %v1126
      %v1228 = vpop.f32.mrf.mxu0
      %v1229 = vadd.f32 0.0, %v1228
      %v1230 = vpop.f32.mrf.mxu0
      %1231 = vmatprep.mubr.f32.mxu0 0.0
      %1232 = vmatmul.mubr.f32.gmra.mxu0 %v1127
      %v1233 = vpop.f32.mrf.mxu0
      %v1234 = vadd.f32 0.0, %v1233
      %v1235 = vpop.f32.mrf.mxu0
      %1236 = vmatprep.mubr.f32.mxu0 0.0
      %1237 = vmatmul.mubr.f32.gmra.mxu0 %v1128
      %v1238 = vpop.f32.mrf.mxu0
      %v1239 = vadd.f32 0.0, %v1238
      %v1240 = vpop.f32.mrf.mxu0
      %1241 = vmatprep.mubr.f32.mxu0 0.0
      %1242 = vmatmul.mubr.f32.gmra.mxu0 %v1129
      %v1243 = vpop.f32.mrf.mxu0
      %v1244 = vadd.f32 0.0, %v1243
      %v1245 = vpop.f32.mrf.mxu0
      %1246 = vmatprep.mubr.f32.mxu0 0.0
      %1247 = vmatmul.mubr.f32.gmra.mxu0 %v1130
      %v1248 = vpop.f32.mrf.mxu0
      %v1249 = vadd.f32 0.0, %v1248
      %v1250 = vpop.f32.mrf.mxu0
      %1251 = vdwg.mxu0
      %v1252 = vadd.f32 %v1114, %v1214
      %v1253 = vadd.f32 %v1115, %v1219
      %v1254 = vadd.f32 %v1116, %v1224
      %v1255 = vadd.f32 %v1117, %v1229
      %v1256 = vadd.f32 %v1118, %v1234
      %v1257 = vadd.f32 %v1119, %v1239
      %v1258 = vadd.f32 %v1120, %v1244
      %v1259 = vadd.f32 %v1121, %v1249
      %v1260 = vld [vmem:[%s1122 + $0x1] sm:$0xff]
      %v1261 = vld [vmem:[%s1122 + $0x11] sm:$0xff]
      %v1262 = vld [vmem:[%s1122 + $0x21] sm:$0xff]
      %v1263 = vld [vmem:[%s1122 + $0x31] sm:$0xff]
      %v1264 = vld [vmem:[%s1122 + $0x41] sm:$0xff]
      %v1265 = vld [vmem:[%s1122 + $0x51] sm:$0xff]
      %v1266 = vld [vmem:[%s1122 + $0x61] sm:$0xff]
      %v1267 = vld [vmem:[%s1122 + $0x71] sm:$0xff]
      %v1268 = vld [vmem:[%s3 + $0x380] sm:$0xff]
      %v1269 = vld [vmem:[%s3 + $0x388] sm:$0xff]
      %v1270 = vld [vmem:[%s3 + $0x390] sm:$0xff]
      %v1271 = vld [vmem:[%s3 + $0x398] sm:$0xff]
      %v1272 = vld [vmem:[%s3 + $0x3a0] sm:$0xff]
      %v1273 = vld [vmem:[%s3 + $0x3a8] sm:$0xff]
      %v1274 = vld [vmem:[%s3 + $0x3b0] sm:$0xff]
      %v1275 = vld [vmem:[%s3 + $0x3b8] sm:$0xff]
      %v1276 = vld [vmem:[%s3 + $0x3c0] sm:$0xff]
      %v1277 = vld [vmem:[%s3 + $0x3c8] sm:$0xff]
      %v1278 = vld [vmem:[%s3 + $0x3d0] sm:$0xff]
      %v1279 = vld [vmem:[%s3 + $0x3d8] sm:$0xff]
      %v1280 = vld [vmem:[%s3 + $0x3e0] sm:$0xff]
      %v1281 = vld [vmem:[%s3 + $0x3e8] sm:$0xff]
      %v1282 = vld [vmem:[%s3 + $0x3f0] sm:$0xff]
      %v1283 = vld [vmem:[%s3 + $0x3f8] sm:$0xff]
      %1284 = vmatprep.subr.mxu0 0.0
      %1285 = vmatpush1.msra.mxu0 %v1283
      %1286 = vmatprep.subr.mxu0 0.0
      %1287 = vmatpush1.msra.mxu0 %v1282
      %1288 = vmatprep.subr.mxu0 0.0
      %1289 = vmatpush1.msra.mxu0 %v1281
      %1290 = vmatprep.subr.mxu0 0.0
      %1291 = vmatpush1.msra.mxu0 %v1280
      %1292 = vmatprep.subr.mxu0 0.0
      %1293 = vmatpush1.msra.mxu0 %v1279
      %1294 = vmatprep.subr.mxu0 0.0
      %1295 = vmatpush1.msra.mxu0 %v1278
      %1296 = vmatprep.subr.mxu0 0.0
      %1297 = vmatpush1.msra.mxu0 %v1277
      %1298 = vmatprep.subr.mxu0 0.0
      %1299 = vmatpush1.msra.mxu0 %v1276
      %1300 = vmatprep.subr.mxu0 0.0
      %1301 = vmatpush1.msra.mxu0 %v1275
      %1302 = vmatprep.subr.mxu0 0.0
      %1303 = vmatpush1.msra.mxu0 %v1274
      %1304 = vmatprep.subr.mxu0 0.0
      %1305 = vmatpush1.msra.mxu0 %v1273
      %1306 = vmatprep.subr.mxu0 0.0
      %1307 = vmatpush1.msra.mxu0 %v1272
      %1308 = vmatprep.subr.mxu0 0.0
      %1309 = vmatpush1.msra.mxu0 %v1271
      %1310 = vmatprep.subr.mxu0 0.0
      %1311 = vmatpush1.msra.mxu0 %v1270
      %1312 = vmatprep.subr.mxu0 0.0
      %1313 = vmatpush1.msra.mxu0 %v1269
      %1314 = vmatprep.subr.mxu0 0.0
      %1315 = vmatpush1.msra.mxu0 %v1268
      %1316 = vmatprep.subr.mxu0 0.0
      %1317 = vmatpush2.msra.mxu0 0.0
      %1318 = vmatprep.subr.mxu0 0.0
      %1319 = vmatpush2.msra.mxu0 0.0
      %1320 = vmatprep.subr.mxu0 0.0
      %1321 = vmatpush2.msra.mxu0 0.0
      %1322 = vmatprep.subr.mxu0 0.0
      %1323 = vmatpush2.msra.mxu0 0.0
      %1324 = vmatprep.subr.mxu0 0.0
      %1325 = vmatpush2.msra.mxu0 0.0
      %1326 = vmatprep.subr.mxu0 0.0
      %1327 = vmatpush2.msra.mxu0 0.0
      %1328 = vmatprep.subr.mxu0 0.0
      %1329 = vmatpush2.msra.mxu0 0.0
      %1330 = vmatprep.subr.mxu0 0.0
      %1331 = vmatpush2.msra.mxu0 0.0
      %1332 = vmatprep.subr.mxu0 0.0
      %1333 = vmatpush2.msra.mxu0 0.0
      %1334 = vmatprep.subr.mxu0 0.0
      %1335 = vmatpush2.msra.mxu0 0.0
      %1336 = vmatprep.subr.mxu0 0.0
      %1337 = vmatpush2.msra.mxu0 0.0
      %1338 = vmatprep.subr.mxu0 0.0
      %1339 = vmatpush2.msra.mxu0 0.0
      %1340 = vmatprep.subr.mxu0 0.0
      %1341 = vmatpush2.msra.mxu0 0.0
      %1342 = vmatprep.subr.mxu0 0.0
      %1343 = vmatpush2.msra.mxu0 0.0
      %1344 = vmatprep.subr.mxu0 0.0
      %1345 = vmatpush2.msra.mxu0 0.0
      %1346 = vmatprep.subr.mxu0 0.0
      %1347 = vmatpush2.msra.mxu0 0.0
      %1348 = vmatprep.mubr.f32.mxu0 0.0
      %1349 = vmatmul.mubr.f32.gmra.mxu0 %v1260
      %v1350 = vpop.f32.mrf.mxu0
      %v1351 = vadd.f32 0.0, %v1350
      %v1352 = vpop.f32.mrf.mxu0
      %1353 = vmatprep.mubr.f32.mxu0 0.0
      %1354 = vmatmul.mubr.f32.gmra.mxu0 %v1261
      %v1355 = vpop.f32.mrf.mxu0
      %v1356 = vadd.f32 0.0, %v1355
      %v1357 = vpop.f32.mrf.mxu0
      %1358 = vmatprep.mubr.f32.mxu0 0.0
      %1359 = vmatmul.mubr.f32.gmra.mxu0 %v1262
      %v1360 = vpop.f32.mrf.mxu0
      %v1361 = vadd.f32 0.0, %v1360
      %v1362 = vpop.f32.mrf.mxu0
      %1363 = vmatprep.mubr.f32.mxu0 0.0
      %1364 = vmatmul.mubr.f32.gmra.mxu0 %v1263
      %v1365 = vpop.f32.mrf.mxu0
      %v1366 = vadd.f32 0.0, %v1365
      %v1367 = vpop.f32.mrf.mxu0
      %1368 = vmatprep.mubr.f32.mxu0 0.0
      %1369 = vmatmul.mubr.f32.gmra.mxu0 %v1264
      %v1370 = vpop.f32.mrf.mxu0
      %v1371 = vadd.f32 0.0, %v1370
      %v1372 = vpop.f32.mrf.mxu0
      %1373 = vmatprep.mubr.f32.mxu0 0.0
      %1374 = vmatmul.mubr.f32.gmra.mxu0 %v1265
      %v1375 = vpop.f32.mrf.mxu0
      %v1376 = vadd.f32 0.0, %v1375
      %v1377 = vpop.f32.mrf.mxu0
      %1378 = vmatprep.mubr.f32.mxu0 0.0
      %1379 = vmatmul.mubr.f32.gmra.mxu0 %v1266
      %v1380 = vpop.f32.mrf.mxu0
      %v1381 = vadd.f32 0.0, %v1380
      %v1382 = vpop.f32.mrf.mxu0
      %1383 = vmatprep.mubr.f32.mxu0 0.0
      %1384 = vmatmul.mubr.f32.gmra.mxu0 %v1267
      %v1385 = vpop.f32.mrf.mxu0
      %v1386 = vadd.f32 0.0, %v1385
      %v1387 = vpop.f32.mrf.mxu0
      %1388 = vdwg.mxu0
      %v1389 = vadd.f32 %v1252, %v1351
      %v1390 = vadd.f32 %v1253, %v1356
      %v1391 = vadd.f32 %v1254, %v1361
      %v1392 = vadd.f32 %v1255, %v1366
      %v1393 = vadd.f32 %v1256, %v1371
      %v1394 = vadd.f32 %v1257, %v1376
      %v1395 = vadd.f32 %v1258, %v1381
      %v1396 = vadd.f32 %v1259, %v1386
      %v1397 = vld [vmem:[%s1122 + $0x2] sm:$0xff]
      %v1398 = vld [vmem:[%s1122 + $0x12] sm:$0xff]
      %v1399 = vld [vmem:[%s1122 + $0x22] sm:$0xff]
      %v1400 = vld [vmem:[%s1122 + $0x32] sm:$0xff]
      %v1401 = vld [vmem:[%s1122 + $0x42] sm:$0xff]
      %v1402 = vld [vmem:[%s1122 + $0x52] sm:$0xff]
      %v1403 = vld [vmem:[%s1122 + $0x62] sm:$0xff]
      %v1404 = vld [vmem:[%s1122 + $0x72] sm:$0xff]
      %v1405 = vld [vmem:[%s3 + $0x400] sm:$0xff]
      %v1406 = vld [vmem:[%s3 + $0x408] sm:$0xff]
      %v1407 = vld [vmem:[%s3 + $0x410] sm:$0xff]
      %v1408 = vld [vmem:[%s3 + $0x418] sm:$0xff]
      %v1409 = vld [vmem:[%s3 + $0x420] sm:$0xff]
      %v1410 = vld [vmem:[%s3 + $0x428] sm:$0xff]
      %v1411 = vld [vmem:[%s3 + $0x430] sm:$0xff]
      %v1412 = vld [vmem:[%s3 + $0x438] sm:$0xff]
      %v1413 = vld [vmem:[%s3 + $0x440] sm:$0xff]
      %v1414 = vld [vmem:[%s3 + $0x448] sm:$0xff]
      %v1415 = vld [vmem:[%s3 + $0x450] sm:$0xff]
      %v1416 = vld [vmem:[%s3 + $0x458] sm:$0xff]
      %v1417 = vld [vmem:[%s3 + $0x460] sm:$0xff]
      %v1418 = vld [vmem:[%s3 + $0x468] sm:$0xff]
      %v1419 = vld [vmem:[%s3 + $0x470] sm:$0xff]
      %v1420 = vld [vmem:[%s3 + $0x478] sm:$0xff]
      %1421 = vmatprep.subr.mxu0 0.0
      %1422 = vmatpush1.msra.mxu0 %v1420
      %1423 = vmatprep.subr.mxu0 0.0
      %1424 = vmatpush1.msra.mxu0 %v1419
      %1425 = vmatprep.subr.mxu0 0.0
      %1426 = vmatpush1.msra.mxu0 %v1418
      %1427 = vmatprep.subr.mxu0 0.0
      %1428 = vmatpush1.msra.mxu0 %v1417
      %1429 = vmatprep.subr.mxu0 0.0
      %1430 = vmatpush1.msra.mxu0 %v1416
      %1431 = vmatprep.subr.mxu0 0.0
      %1432 = vmatpush1.msra.mxu0 %v1415
      %1433 = vmatprep.subr.mxu0 0.0
      %1434 = vmatpush1.msra.mxu0 %v1414
      %1435 = vmatprep.subr.mxu0 0.0
      %1436 = vmatpush1.msra.mxu0 %v1413
      %1437 = vmatprep.subr.mxu0 0.0
      %1438 = vmatpush1.msra.mxu0 %v1412
      %1439 = vmatprep.subr.mxu0 0.0
      %1440 = vmatpush1.msra.mxu0 %v1411
      %1441 = vmatprep.subr.mxu0 0.0
      %1442 = vmatpush1.msra.mxu0 %v1410
      %1443 = vmatprep.subr.mxu0 0.0
      %1444 = vmatpush1.msra.mxu0 %v1409
      %1445 = vmatprep.subr.mxu0 0.0
      %1446 = vmatpush1.msra.mxu0 %v1408
      %1447 = vmatprep.subr.mxu0 0.0
      %1448 = vmatpush1.msra.mxu0 %v1407
      %1449 = vmatprep.subr.mxu0 0.0
      %1450 = vmatpush1.msra.mxu0 %v1406
      %1451 = vmatprep.subr.mxu0 0.0
      %1452 = vmatpush1.msra.mxu0 %v1405
      %1453 = vmatprep.subr.mxu0 0.0
      %1454 = vmatpush2.msra.mxu0 0.0
      %1455 = vmatprep.subr.mxu0 0.0
      %1456 = vmatpush2.msra.mxu0 0.0
      %1457 = vmatprep.subr.mxu0 0.0
      %1458 = vmatpush2.msra.mxu0 0.0
      %1459 = vmatprep.subr.mxu0 0.0
      %1460 = vmatpush2.msra.mxu0 0.0
      %1461 = vmatprep.subr.mxu0 0.0
      %1462 = vmatpush2.msra.mxu0 0.0
      %1463 = vmatprep.subr.mxu0 0.0
      %1464 = vmatpush2.msra.mxu0 0.0
      %1465 = vmatprep.subr.mxu0 0.0
      %1466 = vmatpush2.msra.mxu0 0.0
      %1467 = vmatprep.subr.mxu0 0.0
      %1468 = vmatpush2.msra.mxu0 0.0
      %1469 = vmatprep.subr.mxu0 0.0
      %1470 = vmatpush2.msra.mxu0 0.0
      %1471 = vmatprep.subr.mxu0 0.0
      %1472 = vmatpush2.msra.mxu0 0.0
      %1473 = vmatprep.subr.mxu0 0.0
      %1474 = vmatpush2.msra.mxu0 0.0
      %1475 = vmatprep.subr.mxu0 0.0
      %1476 = vmatpush2.msra.mxu0 0.0
      %1477 = vmatprep.subr.mxu0 0.0
      %1478 = vmatpush2.msra.mxu0 0.0
      %1479 = vmatprep.subr.mxu0 0.0
      %1480 = vmatpush2.msra.mxu0 0.0
      %1481 = vmatprep.subr.mxu0 0.0
      %1482 = vmatpush2.msra.mxu0 0.0
      %1483 = vmatprep.subr.mxu0 0.0
      %1484 = vmatpush2.msra.mxu0 0.0
      %1485 = vmatprep.mubr.f32.mxu0 0.0
      %1486 = vmatmul.mubr.f32.gmra.mxu0 %v1397
      %v1487 = vpop.f32.mrf.mxu0
      %v1488 = vadd.f32 0.0, %v1487
      %v1489 = vpop.f32.mrf.mxu0
      %1490 = vmatprep.mubr.f32.mxu0 0.0
      %1491 = vmatmul.mubr.f32.gmra.mxu0 %v1398
      %v1492 = vpop.f32.mrf.mxu0
      %v1493 = vadd.f32 0.0, %v1492
      %v1494 = vpop.f32.mrf.mxu0
      %1495 = vmatprep.mubr.f32.mxu0 0.0
      %1496 = vmatmul.mubr.f32.gmra.mxu0 %v1399
      %v1497 = vpop.f32.mrf.mxu0
      %v1498 = vadd.f32 0.0, %v1497
      %v1499 = vpop.f32.mrf.mxu0
      %1500 = vmatprep.mubr.f32.mxu0 0.0
      %1501 = vmatmul.mubr.f32.gmra.mxu0 %v1400
      %v1502 = vpop.f32.mrf.mxu0
      %v1503 = vadd.f32 0.0, %v1502
      %v1504 = vpop.f32.mrf.mxu0
      %1505 = vmatprep.mubr.f32.mxu0 0.0
      %1506 = vmatmul.mubr.f32.gmra.mxu0 %v1401
      %v1507 = vpop.f32.mrf.mxu0
      %v1508 = vadd.f32 0.0, %v1507
      %v1509 = vpop.f32.mrf.mxu0
      %1510 = vmatprep.mubr.f32.mxu0 0.0
      %1511 = vmatmul.mubr.f32.gmra.mxu0 %v1402
      %v1512 = vpop.f32.mrf.mxu0
      %v1513 = vadd.f32 0.0, %v1512
      %v1514 = vpop.f32.mrf.mxu0
      %1515 = vmatprep.mubr.f32.mxu0 0.0
      %1516 = vmatmul.mubr.f32.gmra.mxu0 %v1403
      %v1517 = vpop.f32.mrf.mxu0
      %v1518 = vadd.f32 0.0, %v1517
      %v1519 = vpop.f32.mrf.mxu0
      %1520 = vmatprep.mubr.f32.mxu0 0.0
      %1521 = vmatmul.mubr.f32.gmra.mxu0 %v1404
      %v1522 = vpop.f32.mrf.mxu0
      %v1523 = vadd.f32 0.0, %v1522
      %v1524 = vpop.f32.mrf.mxu0
      %1525 = vdwg.mxu0
      %v1526 = vadd.f32 %v1389, %v1488
      %v1527 = vadd.f32 %v1390, %v1493
      %v1528 = vadd.f32 %v1391, %v1498
      %v1529 = vadd.f32 %v1392, %v1503
      %v1530 = vadd.f32 %v1393, %v1508
      %v1531 = vadd.f32 %v1394, %v1513
      %v1532 = vadd.f32 %v1395, %v1518
      %v1533 = vadd.f32 %v1396, %v1523
      %1534 = vst [vmem:[%s231] sm:$0xff] %v1526
      %1535 = vst [vmem:[%s231 + $0x8] sm:$0xff] %v1527
      %1536 = vst [vmem:[%s231 + $0x10] sm:$0xff] %v1528
      %1537 = vst [vmem:[%s231 + $0x18] sm:$0xff] %v1529
      %1538 = vst [vmem:[%s231 + $0x20] sm:$0xff] %v1530
      %1539 = vst [vmem:[%s231 + $0x28] sm:$0xff] %v1531
      %1540 = vst [vmem:[%s231 + $0x30] sm:$0xff] %v1532
      %1541 = vst [vmem:[%s231 + $0x38] sm:$0xff] %v1533
      %v1542 = vadd.f32 %v1526, %v1527
      %v1543 = vadd.f32 %v1542, %v1528
      %v1544 = vadd.f32 %v1543, %v1529
      %v1545 = vadd.f32 %v1544, %v1530
      %v1546 = vadd.f32 %v1545, %v1531
      %v1547 = vadd.f32 %v1546, %v1532
      %v1548 = vadd.f32 %v1547, %v1533
      %v1549 = vrot.slane %v1548, 4
      %v1550 = vadd.f32 %v1548, %v1549
      %v1551 = vrot.slane %v1550, 2
      %v1552 = vadd.f32 %v1550, %v1551
      %v1553 = vrot.slane %v1552, 1
      %v1554 = vadd.f32 %v1552, %v1553
      %v1555 = vmul.f32 %v1526, %v1526
      %v1556 = vmul.f32 %v1527, %v1527
      %v1557 = vmul.f32 %v1528, %v1528
      %v1558 = vmul.f32 %v1529, %v1529
      %v1559 = vmul.f32 %v1530, %v1530
      %v1560 = vmul.f32 %v1531, %v1531
      %v1561 = vmul.f32 %v1532, %v1532
      %v1562 = vmul.f32 %v1533, %v1533
      %v1563 = vadd.f32 %v1555, %v1556
      %v1564 = vadd.f32 %v1563, %v1557
      %v1565 = vadd.f32 %v1564, %v1558
      %v1566 = vadd.f32 %v1565, %v1559
      %v1567 = vadd.f32 %v1566, %v1560
      %v1568 = vadd.f32 %v1567, %v1561
      %v1569 = vadd.f32 %v1568, %v1562
      %v1570 = vrot.slane %v1569, 4
      %v1571 = vadd.f32 %v1569, %v1570
      %v1572 = vrot.slane %v1571, 2
      %v1573 = vadd.f32 %v1571, %v1572
      %v1574 = vrot.slane %v1573, 1
      %v1575 = vadd.f32 %v1573, %v1574
      %vm1576 = vcmask 1040384
      %v1577 = vsel %vm1576, %v1554, %v1575
      %1578 = vst [vmem:[%s235] sm:$0x3] %v1577
      %p1579 = scmp.lt.s32.totalorder %s17, 1
      %s1580 = scalar_select %p1579, %s17, 1
      %s1581 = smul.addr %s1580, 8
      %s1582 = smul.addr %s1581, 8
      %s1583 = scalar_lea.vmem %s4, %s1582
      %p1584 = scmp.lt.s32.totalorder %s17, 1
      %s1585 = scalar_select %p1584, %s17, 1
      %s1586 = smul.addr %s1585, 2
      %s1587 = scalar_lea.vmem %s5, %s1586
      // Predicated region
      $region37: #{bottleneck_forward.6} parent=35 // pred_check
        %p1588 = pneg %p124
      $region38: #{bottleneck_forward.6} parent=35 // pred_check_branch
        %1590 = sbr.rel (%p1588) target = $region40
      $region39: #{bottleneck_forward.6} parent=35 // pred_region
        _
      $region40: #{bottleneck_forward.6} parent=35 // pred_fallthru
        _
      // Predicated region
      $region41: #{bottleneck_forward.6} parent=35 // pred_check
        %p1591 = pneg %p150
      $region42: #{bottleneck_forward.6} parent=35 // pred_check_branch
        %1593 = sbr.rel (%p1591) target = $region44
      $region43: #{bottleneck_forward.6} parent=35 // pred_region
        _
      $region44: #{bottleneck_forward.6} parent=35 // pred_fallthru
        _
    $region36: #{bottleneck_forward.6} parent=5 // pred_fallthru
      _
    %p1594 = scmp.le.s32.totalorder 2, %s12
    // Predicated region
    $region45: #{bottleneck_forward.6} parent=5 // pred_check
      %p1595 = pneg %p1594
    $region46: #{bottleneck_forward.6} parent=5 // pred_check_branch
      %1597 = sbr.rel (%p1595) target = $region48
    $region47: #{bottleneck_forward.6} parent=5 // pred_region
      %s1598 = ssub.s32 %s12, 2
      // Predicated region
      $region49: #{bottleneck_forward.6} parent=47 // pred_check
        %p1599 = pneg %p130
      $region50: #{bottleneck_forward.6} parent=47 // pred_check_branch
        %1601 = sbr.rel (%p1599) target = $region52
      $region51: #{bottleneck_forward.6} parent=47 // pred_region
        %p1602 = scmp.lt.s32.totalorder %s18, 1
        %s1603 = scalar_select %p1602, %s18, 1
        %s1604 = smul.addr %s1603, 8
        %s1605 = smul.addr %s1604, 8
        %s1606 = scalar_lea.vmem %s4, %s1605
      $region52: #{bottleneck_forward.6} parent=47 // pred_fallthru
        _
      // Predicated region
      $region53: #{bottleneck_forward.6} parent=47 // pred_check
        %p1607 = pneg %p156
      $region54: #{bottleneck_forward.6} parent=47 // pred_check_branch
        %1609 = sbr.rel (%p1607) target = $region56
      $region55: #{bottleneck_forward.6} parent=47 // pred_region
        %p1610 = scmp.lt.s32.totalorder %s18, 1
        %s1611 = scalar_select %p1610, %s18, 1
        %s1612 = smul.addr %s1611, 2
        %s1613 = scalar_lea.vmem %s5, %s1612
      $region56: #{bottleneck_forward.6} parent=47 // pred_fallthru
        _
    $region48: #{bottleneck_forward.6} parent=5 // pred_fallthru
      _
  $region6: #{bottleneck_forward.6} parent=0 // loop_footer
    %s16 = sadd.s32 1, %s12
  $region7: #{bottleneck_forward.6} parent=0 // loop_footer_branch
    %11 = sbr.rel target = $region3
  $region8: #{bottleneck_forward.6} parent=0 // loop_exit
    _

</llo_original>
